<compile_context>
chip_gen: v7x
topology: tpu7x:2x2x1
jax: 0.10.0
libtpu: 0.0.40
codegen_flags: <defaults>
</compile_context>

<pallas_src>
import math

import jax
import jax.numpy as jnp
from jax.experimental import pallas as pl
from jax.experimental.pallas import tpu as pltpu

LN_EPS = 1e-5  # PyTorch nn.LayerNorm default


def _ln(y, g, b):
    mu = jnp.mean(y, axis=-1, keepdims=True)
    yc = y - mu
    var = jnp.mean(yc * yc, axis=-1, keepdims=True)
    return yc * jax.lax.rsqrt(var + LN_EPS) * g + b


def _mm(a, w):  # bf16 operands, f32 accumulation on the MXU
    return jnp.dot(a.astype(jnp.bfloat16), w, preferred_element_type=jnp.float32)


def transformer_kernel(x_ref, cls_ref, wemb_ref, bemb_ref, hmap_ref, hexp_ref,
                       wqkv_ref, bqkv_ref, wo_ref, bo_ref, g1_ref, be1_ref,
                       w1_ref, b1_ref, w2_ref, b2_ref, g2_ref, be2_ref,
                       wc_ref, bc_ref, out_ref, t_ref):
    l = pl.program_id(1)
    n_layers = pl.num_programs(1)
    TB = x_ref.shape[0]
    D = wemb_ref.shape[1]

    # ---- first layer step: build the 2-token slab (cls rows, then features)
    @pl.when(l == 0)
    def _():
        t_ref[:TB, :] = jnp.broadcast_to(cls_ref[...], (TB, D))
        t_ref[TB:, :] = _mm(x_ref[...], wemb_ref[...]) + bemb_ref[...]

    t = t_ref[...]                                           # (2*TB, D)

    # fused Q/K/V projection for both tokens: one MXU push per layer step
    qkv = _mm(t, wqkv_ref[...]) + bqkv_ref[...]              # (2*TB, 3D)
    q, k, v = qkv[:, :D], qkv[:, D:2 * D], qkv[:, 2 * D:]
    q0, q1 = q[:TB], q[TB:]
    k0, k1 = k[:TB], k[TB:]
    v0, v1 = v[:TB], v[TB:]
    hmap = hmap_ref[...]   # (D, H) bf16: per-head lane-sum, 1/sqrt(dh) folded in
    hexp = hexp_ref[...]   # (H, D) bf16: per-head scalar -> lane broadcast

    @pl.when(l < n_layers - 1)
    def _():
        # batched per-head scores for all 4 (query, key) pairs: one matmul
        qk = jnp.concatenate([q0 * k0, q0 * k1, q1 * k0, q1 * k1], axis=0)
        s = _mm(qk, hmap)                                    # (4*TB, H)
        s00, s01 = s[:TB], s[TB:2 * TB]
        s10, s11 = s[2 * TB:3 * TB], s[3 * TB:]
        m0 = jnp.maximum(s00, s01)
        m1 = jnp.maximum(s10, s11)
        e00 = jnp.exp(s00 - m0)
        e01 = jnp.exp(s01 - m0)
        e10 = jnp.exp(s10 - m1)
        e11 = jnp.exp(s11 - m1)
        d0 = e00 + e01
        d1 = e10 + e11
        wstk = jnp.concatenate([e00 / d0, e01 / d0, e10 / d1, e11 / d1], axis=0)
        wexp = _mm(wstk, hexp)                               # (4*TB, D)
        a = jnp.concatenate(
            [wexp[:TB] * v0 + wexp[TB:2 * TB] * v1,
             wexp[2 * TB:3 * TB] * v0 + wexp[3 * TB:] * v1], axis=0)
        o = _mm(a, wo_ref[...]) + bo_ref[...]                # (2*TB, D)
        # TODO(synk): dropout layers are identity here (eval-mode forward)
        u = _ln(t + o, g1_ref[...], be1_ref[...])
        h = jnp.maximum(_mm(u, w1_ref[...]) + b1_ref[...], 0.0).astype(jnp.bfloat16)
        f = _mm(h, w2_ref[...]) + b2_ref[...]
        t_ref[...] = _ln(u + f, g2_ref[...], be2_ref[...])

    @pl.when(l == n_layers - 1)
    def _():
        # Only the cls token feeds the classifier -> skip the token-1 path.
        qk = jnp.concatenate([q0 * k0, q0 * k1], axis=0)     # (2*TB, D)
        s = _mm(qk, hmap)                                    # (2*TB, H)
        s00, s01 = s[:TB], s[TB:]
        m = jnp.maximum(s00, s01)
        e00 = jnp.exp(s00 - m)
        e01 = jnp.exp(s01 - m)
        d = e00 + e01
        wstk = jnp.concatenate([e00 / d, e01 / d], axis=0)   # (2*TB, H)
        wexp = _mm(wstk, hexp)                               # (2*TB, D)
        a0 = wexp[:TB] * v0 + wexp[TB:] * v1                 # (TB, D)
        o0 = _mm(a0, wo_ref[...]) + bo_ref[...]
        u0 = _ln(t[:TB] + o0, g1_ref[...], be1_ref[...])
        h0 = jnp.maximum(_mm(u0, w1_ref[...]) + b1_ref[...], 0.0).astype(jnp.bfloat16)
        f0 = _mm(h0, w2_ref[...]) + b2_ref[...]
        u0 = _ln(u0 + f0, g2_ref[...], be2_ref[...])
        out_ref[...] = _mm(u0, wc_ref[...]) + bc_ref[...]


def _num_tensorcores():
    try:
        kind = jax.devices()[0].device_kind.lower()
    except Exception:
        return 1
    return 2 if any(tag in kind for tag in ("v7", "7x", "v5p", "v4", "v3")) else 1


def _default_batch_tile(B):
    # Only split the batch over the two TensorCores of 2-TC chips when the
    # per-core tile is big enough that activation compute dominates the
    # duplicated weight stream; otherwise keep the whole batch on one core.
    n_tc = _num_tensorcores()
    if (n_tc > 1 and B % n_tc == 0 and (B // n_tc) % 8 == 0
            and (B // n_tc) >= 256):
        return B // n_tc
    return B


def transformer_tabular_classifier(x, params, *, num_heads, tb=None):
    B, F = x.shape
    (cls, wemb, bemb, wq, bq, wk, bk, wv, bv, wo, bo,
     g1, be1, w1, b1, w2, b2, g2, be2, wc, bc) = params
    D = wemb.shape[1]
    L = wq.shape[0]
    FF = w1.shape[2]
    C = wc.shape[1]
    H = num_heads
    dh = D // H
    assert D % H == 0 and L >= 1

    if tb is None:
        tb = _default_batch_tile(B)
    assert B % tb == 0, "batch must be a multiple of the batch tile"

    bf16 = jnp.bfloat16
    # fuse the Q/K/V projections into one (D, 3D) matrix per layer
    wqkv = jnp.concatenate([wq, wk, wv], axis=2).astype(bf16)   # (L, D, 3D)
    bqkv = jnp.concatenate([bq, bk, bv], axis=2)                # (L, 1, 3D) f32
    # head-sum (with 1/sqrt(dh) folded in) and head-broadcast matrices
    # (contiguous per-head chunks, as in PyTorch nn.MultiheadAttention)
    head_of_lane = (jnp.arange(D)[:, None] // dh == jnp.arange(H)[None, :])
    hmap = (head_of_lane.astype(jnp.float32) / math.sqrt(dh)).astype(bf16)
    hexp = head_of_lane.T.astype(bf16)
    # large weights shipped as bf16; biases / LN params stay f32
    wemb_b, wo_b, w1_b, w2_b = (w.astype(bf16) for w in (wemb, wo, w1, w2))

    # lane-dense classifier output: pad C up to a multiple of 128
    Cp = max(128, ((C + 127) // 128) * 128)
    wc_p = jnp.zeros((D, Cp), bf16).at[:, :C].set(wc.astype(bf16))
    bc_p = jnp.zeros((1, Cp), jnp.float32).at[:, :C].set(bc)

    grid = (B // tb, L)

    def const2(i, l):
        return (0, 0)

    def per_layer(i, l):
        return (l, 0, 0)

    def per_batch(i, l):
        return (i, 0)

    in_specs = [
        pl.BlockSpec((tb, F), per_batch),            # x (tiled over batch)
        pl.BlockSpec((1, D), const2),                # cls token
        pl.BlockSpec((F, D), const2),                # feature_embedding W^T (bf16)
        pl.BlockSpec((1, D), const2),                # feature_embedding bias
        pl.BlockSpec((D, H), const2),                # head-sum matrix (bf16, scaled)
        pl.BlockSpec((H, D), const2),                # head-broadcast matrix (bf16)
        pl.BlockSpec((None, D, 3 * D), per_layer),   # fused Wqkv^T (bf16)
        pl.BlockSpec((None, 1, 3 * D), per_layer),   # fused bqkv
        pl.BlockSpec((None, D, D), per_layer),       # Wo^T (bf16)
        pl.BlockSpec((None, 1, D), per_layer),       # bo
        pl.BlockSpec((None, 1, D), per_layer),       # norm1 gamma
        pl.BlockSpec((None, 1, D), per_layer),       # norm1 beta
        pl.BlockSpec((None, D, FF), per_layer),      # linear1 W^T (bf16)
        pl.BlockSpec((None, 1, FF), per_layer),      # linear1 b
        pl.BlockSpec((None, FF, D), per_layer),      # linear2 W^T (bf16)
        pl.BlockSpec((None, 1, D), per_layer),       # linear2 b
        pl.BlockSpec((None, 1, D), per_layer),       # norm2 gamma
        pl.BlockSpec((None, 1, D), per_layer),       # norm2 beta
        pl.BlockSpec((D, Cp), const2),               # classifier W^T (bf16, padded)
        pl.BlockSpec((1, Cp), const2),               # classifier b (padded)
    ]
    out_specs = pl.BlockSpec((tb, Cp), per_batch)

    out = pl.pallas_call(
        transformer_kernel,
        out_shape=jax.ShapeDtypeStruct((B, Cp), jnp.float32),
        grid=grid,
        in_specs=in_specs,
        out_specs=out_specs,
        scratch_shapes=[pltpu.VMEM((2 * tb, D), jnp.float32)],   # token-slab carry
        compiler_params=pltpu.CompilerParams(
            dimension_semantics=("parallel", "arbitrary")),
    )(x, cls, wemb_b, bemb, hmap, hexp,
      wqkv, bqkv, wo_b, bo, g1, be1,
      w1_b, b1, w2_b, b2, g2, be2, wc_p, bc_p)
    return out[:, :C]


def init_params(key, F, D, C, H, L, FF):
    ks = jax.random.split(key, 16)

    def w(k, shape, scale=0.05):
        return (scale * jax.random.normal(k, shape)).astype(jnp.float32)

    cls = jnp.zeros((1, D), jnp.float32)     # nn.Parameter(torch.zeros(1, 1, d_model))
    wemb = w(ks[0], (F, D));  bemb = w(ks[1], (1, D))
    wq = w(ks[2], (L, D, D)); bq = w(ks[3], (L, 1, D))
    wk = w(ks[4], (L, D, D)); bk = w(ks[5], (L, 1, D))
    wv = w(ks[6], (L, D, D)); bv = w(ks[7], (L, 1, D))
    wo = w(ks[8], (L, D, D)); bo = w(ks[9], (L, 1, D))
    g1 = jnp.ones((L, 1, D), jnp.float32); be1 = jnp.zeros((L, 1, D), jnp.float32)
    w1 = w(ks[10], (L, D, FF)); b1 = w(ks[11], (L, 1, FF))
    w2 = w(ks[12], (L, FF, D)); b2 = w(ks[13], (L, 1, D))
    g2 = jnp.ones((L, 1, D), jnp.float32); be2 = jnp.zeros((L, 1, D), jnp.float32)
    wc = w(ks[14], (D, C)); bc = w(ks[15], (1, C))
    return (cls, wemb, bemb, wq, bq, wk, bk, wv, bv, wo, bo,
            g1, be1, w1, b1, w2, b2, g2, be2, wc, bc)


def reference_forward(x, params, *, num_heads):
    """Pure-JAX mirror of the PyTorch forward (post-norm encoder, eval mode),
    using the kernel's mixed-precision recipe (bf16 weights / f32 MXU
    accumulation, bf16 rounding of q*k products and attention weights, exact
    softmax divide) so the comparison isolates Pallas-mechanics bugs."""
    (cls, wemb, bemb, wq, bq, wk, bk, wv, bv, wo, bo,
     g1, be1, w1, b1, w2, b2, g2, be2, wc, bc) = params
    B = x.shape[0]
    D = wemb.shape[1]
    L = wq.shape[0]
    H = num_heads
    dh = D // H
    bf16 = jnp.bfloat16
    scale = jnp.float32(jnp.asarray(1.0 / math.sqrt(dh), bf16))

    def mm(a, w):
        return jnp.dot(a.astype(bf16), w.astype(bf16),
                       preferred_element_type=jnp.float32)

    def ln(y, g, b):
        mu = jnp.mean(y, axis=-1, keepdims=True)
        var = jnp.mean((y - mu) ** 2, axis=-1, keepdims=True)
        return (y - mu) * jax.lax.rsqrt(var + LN_EPS) * g + b

    emb = mm(x, wemb) + bemb
    tok = jnp.concatenate(
        [jnp.broadcast_to(cls[None], (B, 1, D)), emb[:, None, :]], axis=1)
    for l in range(L):
        q = mm(tok, wq[l]) + bq[l]
        k = mm(tok, wk[l]) + bk[l]
        v = mm(tok, wv[l]) + bv[l]
        qh = q.reshape(B, 2, H, dh)
        kh = k.reshape(B, 2, H, dh)
        vh = v.reshape(B, 2, H, dh)
        # scores: bf16-rounded q*k products, f32 per-head sum, bf16 1/sqrt(dh)
        prod = (qh[:, :, None, :, :] * kh[:, None, :, :, :])     # (B,2,2,H,dh)
        prod = prod.astype(bf16).astype(jnp.float32)
        s = prod.sum(-1) * scale                                  # (B, i, j, H)
        m = s.max(axis=2, keepdims=True)
        e = jnp.exp(s - m)
        w_att = e / e.sum(axis=2, keepdims=True)
        w_att = w_att.astype(bf16).astype(jnp.float32)            # kernel rounds attn weights
        o = (w_att[:, :, 0, :, None] * vh[:, None, 0, :, :]
             + w_att[:, :, 1, :, None] * vh[:, None, 1, :, :])    # (B,2,H,dh)
        o = mm(o.reshape(B, 2, D), wo[l]) + bo[l]
        tok = ln(tok + o, g1[l], be1[l])
        h = jax.nn.relu(mm(tok, w1[l]) + b1[l])
        f = mm(h, w2[l]) + b2[l]
        tok = ln(tok + f, g2[l], be2[l])
    return mm(tok[:, 0, :], wc) + bc


if __name__ == "__main__":
    num_features, d_model, num_classes = 16, 32, 4
    num_heads, num_layers = 4, 2
    dim_feedforward = 2048   # PyTorch TransformerEncoderLayer default
    batch = 16

    key = jax.random.PRNGKey(0)
    kx, kp = jax.random.split(key)
    x = jax.random.normal(kx, (batch, num_features), dtype=jnp.float32)
    params = init_params(kp, num_features, d_model, num_classes,
                         num_heads, num_layers, dim_feedforward)

    logits = transformer_tabular_classifier(x, params, num_heads=num_heads)
    logits = jax.block_until_ready(logits)

    ref = jax.block_until_ready(reference_forward(x, params, num_heads=num_heads))
    err = float(jnp.max(jnp.abs(logits - ref)))
    assert logits.shape == (batch, num_classes)
    assert err < 2e-3, f"max abs err vs reference: {err}"
    print("KERNEL_OK")
</pallas_src>

<mosaic_0001>
module attributes {stable_mosaic.version = 11 : i64} {
  func.func @transformer_kernel(%arg0: i32, %arg1: i32, %arg2: memref<16x16xf32, #tpu.memory_space<vmem>>, %arg3: memref<1x32xf32, #tpu.memory_space<vmem>>, %arg4: memref<16x32xbf16, #tpu.memory_space<vmem>>, %arg5: memref<1x32xf32, #tpu.memory_space<vmem>>, %arg6: memref<32x4xbf16, #tpu.memory_space<vmem>>, %arg7: memref<4x32xbf16, #tpu.memory_space<vmem>>, %arg8: memref<1x32x96xbf16, #tpu.memory_space<vmem>>, %arg9: memref<1x1x96xf32, #tpu.memory_space<vmem>>, %arg10: memref<1x32x32xbf16, #tpu.memory_space<vmem>>, %arg11: memref<1x1x32xf32, #tpu.memory_space<vmem>>, %arg12: memref<1x1x32xf32, #tpu.memory_space<vmem>>, %arg13: memref<1x1x32xf32, #tpu.memory_space<vmem>>, %arg14: memref<1x32x2048xbf16, #tpu.memory_space<vmem>>, %arg15: memref<1x1x2048xf32, #tpu.memory_space<vmem>>, %arg16: memref<1x2048x32xbf16, #tpu.memory_space<vmem>>, %arg17: memref<1x1x32xf32, #tpu.memory_space<vmem>>, %arg18: memref<1x1x32xf32, #tpu.memory_space<vmem>>, %arg19: memref<1x1x32xf32, #tpu.memory_space<vmem>>, %arg20: memref<32x128xbf16, #tpu.memory_space<vmem>>, %arg21: memref<1x128xf32, #tpu.memory_space<vmem>>, %arg22: memref<16x128xf32, #tpu.memory_space<vmem>>, %arg23: memref<32x32xf32, #tpu.memory_space<vmem>>) attributes {dimension_semantics = [#tpu.dimension_semantics<parallel>, #tpu.dimension_semantics<arbitrary>], iteration_bounds = array<i64: 1, 2>, scalar_prefetch = 0 : i64, scratch_operands = 1 : i64, tpu.core_type = #tpu.core_type<tc>, window_params = [{transform_indices = @transform_0, window_bounds = array<i64: 16, 16>}, {pipeline_mode = #tpu.pipeline_mode<synchronous>, transform_indices = @transform_1, window_bounds = array<i64: 1, 32>}, {pipeline_mode = #tpu.pipeline_mode<synchronous>, transform_indices = @transform_2, window_bounds = array<i64: 16, 32>}, {pipeline_mode = #tpu.pipeline_mode<synchronous>, transform_indices = @transform_3, window_bounds = array<i64: 1, 32>}, {pipeline_mode = #tpu.pipeline_mode<synchronous>, transform_indices = @transform_4, window_bounds = array<i64: 32, 4>}, {pipeline_mode = #tpu.pipeline_mode<synchronous>, transform_indices = @transform_5, window_bounds = array<i64: 4, 32>}, {transform_indices = @transform_6, window_bounds = array<i64: 1, 32, 96>}, {transform_indices = @transform_7, window_bounds = array<i64: 1, 1, 96>}, {transform_indices = @transform_8, window_bounds = array<i64: 1, 32, 32>}, {transform_indices = @transform_9, window_bounds = array<i64: 1, 1, 32>}, {transform_indices = @transform_10, window_bounds = array<i64: 1, 1, 32>}, {transform_indices = @transform_11, window_bounds = array<i64: 1, 1, 32>}, {transform_indices = @transform_12, window_bounds = array<i64: 1, 32, 2048>}, {transform_indices = @transform_13, window_bounds = array<i64: 1, 1, 2048>}, {transform_indices = @transform_14, window_bounds = array<i64: 1, 2048, 32>}, {transform_indices = @transform_15, window_bounds = array<i64: 1, 1, 32>}, {transform_indices = @transform_16, window_bounds = array<i64: 1, 1, 32>}, {transform_indices = @transform_17, window_bounds = array<i64: 1, 1, 32>}, {pipeline_mode = #tpu.pipeline_mode<synchronous>, transform_indices = @transform_18, window_bounds = array<i64: 32, 128>}, {pipeline_mode = #tpu.pipeline_mode<synchronous>, transform_indices = @transform_19, window_bounds = array<i64: 1, 128>}, {transform_indices = @transform_20, window_bounds = array<i64: 16, 128>}]} {
    %c0_i32 = arith.constant 0 : i32
    %0 = arith.cmpi eq, %arg1, %c0_i32 : i32
    %1 = arith.extui %0 : i1 to i32
    %c0_i32_0 = arith.constant 0 : i32
    %2 = arith.cmpi ne, %1, %c0_i32_0 : i32
    scf.if %2 {
      %c0_15 = arith.constant 0 : index
      %c0_16 = arith.constant 0 : index
      %29 = vector.load %arg3[%c0_15, %c0_16] : memref<1x32xf32, #tpu.memory_space<vmem>>, vector<1x32xf32>
      %30 = vector.shape_cast %29 : vector<1x32xf32> to vector<1x32xf32>
      %31 = vector.broadcast %30 : vector<1x32xf32> to vector<16x32xf32>
      %c0_17 = arith.constant 0 : index
      %c0_18 = arith.constant 0 : index
      %32 = vector.load %arg23[%c0_17, %c0_18] : memref<32x32xf32, #tpu.memory_space<vmem>>, vector<16x32xf32>
      tpu.vector_store %arg23[%c0_17, %c0_18], %31 {strides = array<i32>} : memref<32x32xf32, #tpu.memory_space<vmem>>, vector<16x32xf32>,
      %c0_19 = arith.constant 0 : index
      %c0_20 = arith.constant 0 : index
      %33 = vector.load %arg2[%c0_19, %c0_20] : memref<16x16xf32, #tpu.memory_space<vmem>>, vector<16x16xf32>
      %c0_21 = arith.constant 0 : index
      %c0_22 = arith.constant 0 : index
      %34 = vector.load %arg4[%c0_21, %c0_22] : memref<16x32xbf16, #tpu.memory_space<vmem>>, vector<16x32xbf16>
      %35 = arith.truncf %33 : vector<16x16xf32> to vector<16x16xbf16>
      %cst_23 = arith.constant dense<0.000000e+00> : vector<16x32xf32>
      %36 = tpu.matmul %35, %34, %cst_23 {dimension_numbers = #tpu.dot_dimension_numbers<[1], [0], [0], [1], [0, 0, 1, 1], [], []>} : vector<16x16xbf16>, vector<16x32xbf16>, vector<16x32xf32> -> vector<16x32xf32>
      %c0_24 = arith.constant 0 : index
      %c0_25 = arith.constant 0 : index
      %37 = vector.load %arg5[%c0_24, %c0_25] : memref<1x32xf32, #tpu.memory_space<vmem>>, vector<1x32xf32>
      %38 = vector.broadcast %37 : vector<1x32xf32> to vector<16x32xf32>
      %39 = arith.addf %36, %38 : vector<16x32xf32>
      %c16 = arith.constant 16 : index
      %c0_26 = arith.constant 0 : index
      %40 = vector.load %arg23[%c16, %c0_26] : memref<32x32xf32, #tpu.memory_space<vmem>>, vector<16x32xf32>
      tpu.vector_store %arg23[%c16, %c0_26], %39 {strides = array<i32>} : memref<32x32xf32, #tpu.memory_space<vmem>>, vector<16x32xf32>,
    } else {
    }
    %c0 = arith.constant 0 : index
    %c0_1 = arith.constant 0 : index
    %3 = vector.load %arg23[%c0, %c0_1] : memref<32x32xf32, #tpu.memory_space<vmem>>, vector<32x32xf32>
    %c0_2 = arith.constant 0 : index
    %c0_3 = arith.constant 0 : index
    %c0_4 = arith.constant 0 : index
    %4 = vector.load %arg8[%c0_2, %c0_3, %c0_4] : memref<1x32x96xbf16, #tpu.memory_space<vmem>>, vector<1x32x96xbf16>
    %5 = vector.shape_cast %4 : vector<1x32x96xbf16> to vector<32x96xbf16>
    %6 = arith.truncf %3 : vector<32x32xf32> to vector<32x32xbf16>
    %cst = arith.constant dense<0.000000e+00> : vector<32x96xf32>
    %7 = tpu.matmul %6, %5, %cst {dimension_numbers = #tpu.dot_dimension_numbers<[1], [0], [0], [1], [0, 0, 1, 1], [], []>} : vector<32x32xbf16>, vector<32x96xbf16>, vector<32x96xf32> -> vector<32x96xf32>
    %c0_5 = arith.constant 0 : index
    %c0_6 = arith.constant 0 : index
    %c0_7 = arith.constant 0 : index
    %8 = vector.load %arg9[%c0_5, %c0_6, %c0_7] : memref<1x1x96xf32, #tpu.memory_space<vmem>>, vector<1x1x96xf32>
    %9 = vector.shape_cast %8 : vector<1x1x96xf32> to vector<1x96xf32>
    %10 = vector.broadcast %9 : vector<1x96xf32> to vector<32x96xf32>
    %11 = arith.addf %7, %10 : vector<32x96xf32>
    %12 = vector.extract_strided_slice %11 {offsets = [0, 0], sizes = [32, 32], strides = [1, 1]} : vector<32x96xf32> to vector<32x32xf32>
    %13 = vector.extract_strided_slice %11 {offsets = [0, 32], sizes = [32, 32], strides = [1, 1]} : vector<32x96xf32> to vector<32x32xf32>
    %14 = vector.extract_strided_slice %11 {offsets = [0, 64], sizes = [32, 32], strides = [1, 1]} : vector<32x96xf32> to vector<32x32xf32>
    %15 = vector.extract_strided_slice %12 {offsets = [0, 0], sizes = [16, 32], strides = [1, 1]} : vector<32x32xf32> to vector<16x32xf32>
    %16 = vector.extract_strided_slice %12 {offsets = [16, 0], sizes = [16, 32], strides = [1, 1]} : vector<32x32xf32> to vector<16x32xf32>
    %17 = vector.extract_strided_slice %13 {offsets = [0, 0], sizes = [16, 32], strides = [1, 1]} : vector<32x32xf32> to vector<16x32xf32>
    %18 = vector.extract_strided_slice %13 {offsets = [16, 0], sizes = [16, 32], strides = [1, 1]} : vector<32x32xf32> to vector<16x32xf32>
    %19 = vector.extract_strided_slice %14 {offsets = [0, 0], sizes = [16, 32], strides = [1, 1]} : vector<32x32xf32> to vector<16x32xf32>
    %20 = vector.extract_strided_slice %14 {offsets = [16, 0], sizes = [16, 32], strides = [1, 1]} : vector<32x32xf32> to vector<16x32xf32>
    %c0_8 = arith.constant 0 : index
    %c0_9 = arith.constant 0 : index
    %21 = vector.load %arg6[%c0_8, %c0_9] : memref<32x4xbf16, #tpu.memory_space<vmem>>, vector<32x4xbf16>
    %c0_10 = arith.constant 0 : index
    %c0_11 = arith.constant 0 : index
    %22 = vector.load %arg7[%c0_10, %c0_11] : memref<4x32xbf16, #tpu.memory_space<vmem>>, vector<4x32xbf16>
    %c1_i32 = arith.constant 1 : i32
    %23 = arith.cmpi slt, %arg1, %c1_i32 : i32
    %24 = arith.extui %23 : i1 to i32
    %c0_i32_12 = arith.constant 0 : i32
    %25 = arith.cmpi ne, %24, %c0_i32_12 : i32
    scf.if %25 {
      %29 = arith.mulf %15, %17 : vector<16x32xf32>
      %30 = arith.mulf %15, %18 : vector<16x32xf32>
      %31 = arith.mulf %16, %17 : vector<16x32xf32>
      %32 = arith.mulf %16, %18 : vector<16x32xf32>
      %33 = tpu.concatenate %29, %30, %31, %32 in 0 : vector<16x32xf32>, vector<16x32xf32>, vector<16x32xf32>, vector<16x32xf32> -> vector<64x32xf32>
      %34 = arith.truncf %33 : vector<64x32xf32> to vector<64x32xbf16>
      %cst_15 = arith.constant dense<0.000000e+00> : vector<64x4xf32>
      %35 = tpu.matmul %34, %21, %cst_15 {dimension_numbers = #tpu.dot_dimension_numbers<[1], [0], [0], [1], [0, 0, 1, 1], [], []>} : vector<64x32xbf16>, vector<32x4xbf16>, vector<64x4xf32> -> vector<64x4xf32>
      %36 = vector.extract_strided_slice %35 {offsets = [0, 0], sizes = [16, 4], strides = [1, 1]} : vector<64x4xf32> to vector<16x4xf32>
      %37 = vector.extract_strided_slice %35 {offsets = [16, 0], sizes = [16, 4], strides = [1, 1]} : vector<64x4xf32> to vector<16x4xf32>
      %38 = vector.extract_strided_slice %35 {offsets = [32, 0], sizes = [16, 4], strides = [1, 1]} : vector<64x4xf32> to vector<16x4xf32>
      %39 = vector.extract_strided_slice %35 {offsets = [48, 0], sizes = [16, 4], strides = [1, 1]} : vector<64x4xf32> to vector<16x4xf32>
      %40 = arith.maximumf %36, %37 : vector<16x4xf32>
      %41 = arith.maximumf %38, %39 : vector<16x4xf32>
      %42 = arith.subf %36, %40 : vector<16x4xf32>
      %43 = math.exp %42 : vector<16x4xf32>
      %44 = arith.subf %37, %40 : vector<16x4xf32>
      %45 = math.exp %44 : vector<16x4xf32>
      %46 = arith.subf %38, %41 : vector<16x4xf32>
      %47 = math.exp %46 : vector<16x4xf32>
      %48 = arith.subf %39, %41 : vector<16x4xf32>
      %49 = math.exp %48 : vector<16x4xf32>
      %50 = arith.addf %43, %45 : vector<16x4xf32>
      %51 = arith.addf %47, %49 : vector<16x4xf32>
      %52 = arith.divf %43, %50 : vector<16x4xf32>
      %53 = arith.divf %45, %50 : vector<16x4xf32>
      %54 = arith.divf %47, %51 : vector<16x4xf32>
      %55 = arith.divf %49, %51 : vector<16x4xf32>
      %56 = tpu.concatenate %52, %53, %54, %55 in 0 : vector<16x4xf32>, vector<16x4xf32>, vector<16x4xf32>, vector<16x4xf32> -> vector<64x4xf32>
      %57 = arith.truncf %56 : vector<64x4xf32> to vector<64x4xbf16>
      %cst_16 = arith.constant dense<0.000000e+00> : vector<64x32xf32>
      %58 = tpu.matmul %57, %22, %cst_16 {dimension_numbers = #tpu.dot_dimension_numbers<[1], [0], [0], [1], [0, 0, 1, 1], [], []>} : vector<64x4xbf16>, vector<4x32xbf16>, vector<64x32xf32> -> vector<64x32xf32>
      %59 = vector.extract_strided_slice %58 {offsets = [0, 0], sizes = [16, 32], strides = [1, 1]} : vector<64x32xf32> to vector<16x32xf32>
      %60 = arith.mulf %59, %19 : vector<16x32xf32>
      %61 = vector.extract_strided_slice %58 {offsets = [16, 0], sizes = [16, 32], strides = [1, 1]} : vector<64x32xf32> to vector<16x32xf32>
      %62 = arith.mulf %61, %20 : vector<16x32xf32>
      %63 = arith.addf %60, %62 : vector<16x32xf32>
      %64 = vector.extract_strided_slice %58 {offsets = [32, 0], sizes = [16, 32], strides = [1, 1]} : vector<64x32xf32> to vector<16x32xf32>
      %65 = arith.mulf %64, %19 : vector<16x32xf32>
      %66 = vector.extract_strided_slice %58 {offsets = [48, 0], sizes = [16, 32], strides = [1, 1]} : vector<64x32xf32> to vector<16x32xf32>
      %67 = arith.mulf %66, %20 : vector<16x32xf32>
      %68 = arith.addf %65, %67 : vector<16x32xf32>
      %69 = tpu.concatenate %63, %68 in 0 : vector<16x32xf32>, vector<16x32xf32> -> vector<32x32xf32>
      %c0_17 = arith.constant 0 : index
      %c0_18 = arith.constant 0 : index
      %c0_19 = arith.constant 0 : index
      %70 = vector.load %arg10[%c0_17, %c0_18, %c0_19] : memref<1x32x32xbf16, #tpu.memory_space<vmem>>, vector<1x32x32xbf16>
      %71 = vector.shape_cast %70 : vector<1x32x32xbf16> to vector<32x32xbf16>
      %72 = arith.truncf %69 : vector<32x32xf32> to vector<32x32xbf16>
      %cst_20 = arith.constant dense<0.000000e+00> : vector<32x32xf32>
      %73 = tpu.matmul %72, %71, %cst_20 {dimension_numbers = #tpu.dot_dimension_numbers<[1], [0], [0], [1], [0, 0, 1, 1], [], []>} : vector<32x32xbf16>, vector<32x32xbf16>, vector<32x32xf32> -> vector<32x32xf32>
      %c0_21 = arith.constant 0 : index
      %c0_22 = arith.constant 0 : index
      %c0_23 = arith.constant 0 : index
      %74 = vector.load %arg11[%c0_21, %c0_22, %c0_23] : memref<1x1x32xf32, #tpu.memory_space<vmem>>, vector<1x1x32xf32>
      %75 = vector.shape_cast %74 : vector<1x1x32xf32> to vector<1x32xf32>
      %76 = vector.broadcast %75 : vector<1x32xf32> to vector<32x32xf32>
      %77 = arith.addf %73, %76 : vector<32x32xf32>
      %78 = arith.addf %3, %77 : vector<32x32xf32>
      %c0_24 = arith.constant 0 : index
      %c0_25 = arith.constant 0 : index
      %c0_26 = arith.constant 0 : index
      %79 = vector.load %arg12[%c0_24, %c0_25, %c0_26] : memref<1x1x32xf32, #tpu.memory_space<vmem>>, vector<1x1x32xf32>
      %80 = vector.shape_cast %79 : vector<1x1x32xf32> to vector<1x32xf32>
      %c0_27 = arith.constant 0 : index
      %c0_28 = arith.constant 0 : index
      %c0_29 = arith.constant 0 : index
      %81 = vector.load %arg13[%c0_27, %c0_28, %c0_29] : memref<1x1x32xf32, #tpu.memory_space<vmem>>, vector<1x1x32xf32>
      %82 = vector.shape_cast %81 : vector<1x1x32xf32> to vector<1x32xf32>
      %cst_30 = arith.constant dense<0.000000e+00> : vector<32xf32>
      %83 = vector.multi_reduction <add>, %78, %cst_30 [1] : vector<32x32xf32> to vector<32xf32>
      %84 = vector.shape_cast %83 : vector<32xf32> to vector<32x1xf32>
      %cst_31 = arith.constant 3.200000e+01 : f32
      %85 = vector.broadcast %cst_31 : f32 to vector<32x1xf32>
      %86 = arith.divf %84, %85 : vector<32x1xf32>
      %87 = vector.broadcast %86 : vector<32x1xf32> to vector<32x32xf32>
      %88 = arith.subf %78, %87 : vector<32x32xf32>
      %89 = arith.mulf %88, %88 : vector<32x32xf32>
      %cst_32 = arith.constant dense<0.000000e+00> : vector<32xf32>
      %90 = vector.multi_reduction <add>, %89, %cst_32 [1] : vector<32x32xf32> to vector<32xf32>
      %91 = vector.shape_cast %90 : vector<32xf32> to vector<32x1xf32>
      %cst_33 = arith.constant 3.200000e+01 : f32
      %92 = vector.broadcast %cst_33 : f32 to vector<32x1xf32>
      %93 = arith.divf %91, %92 : vector<32x1xf32>
      %cst_34 = arith.constant 9.99999974E-6 : f32
      %94 = vector.broadcast %cst_34 : f32 to vector<32x1xf32>
      %95 = arith.addf %93, %94 : vector<32x1xf32>
      %96 = math.rsqrt %95 : vector<32x1xf32>
      %97 = vector.broadcast %96 : vector<32x1xf32> to vector<32x32xf32>
      %98 = arith.mulf %88, %97 : vector<32x32xf32>
      %99 = vector.broadcast %80 : vector<1x32xf32> to vector<32x32xf32>
      %100 = arith.mulf %98, %99 : vector<32x32xf32>
      %101 = vector.broadcast %82 : vector<1x32xf32> to vector<32x32xf32>
      %102 = arith.addf %100, %101 : vector<32x32xf32>
      %c0_35 = arith.constant 0 : index
      %c0_36 = arith.constant 0 : index
      %c0_37 = arith.constant 0 : index
      %103 = vector.load %arg14[%c0_35, %c0_36, %c0_37] : memref<1x32x2048xbf16, #tpu.memory_space<vmem>>, vector<1x32x2048xbf16>
      %104 = vector.shape_cast %103 : vector<1x32x2048xbf16> to vector<32x2048xbf16>
      %105 = arith.truncf %102 : vector<32x32xf32> to vector<32x32xbf16>
      %cst_38 = arith.constant dense<0.000000e+00> : vector<32x2048xf32>
      %106 = tpu.matmul %105, %104, %cst_38 {dimension_numbers = #tpu.dot_dimension_numbers<[1], [0], [0], [1], [0, 0, 1, 1], [], []>} : vector<32x32xbf16>, vector<32x2048xbf16>, vector<32x2048xf32> -> vector<32x2048xf32>
      %c0_39 = arith.constant 0 : index
      %c0_40 = arith.constant 0 : index
      %c0_41 = arith.constant 0 : index
      %107 = vector.load %arg15[%c0_39, %c0_40, %c0_41] : memref<1x1x2048xf32, #tpu.memory_space<vmem>>, vector<1x1x2048xf32>
      %108 = vector.shape_cast %107 : vector<1x1x2048xf32> to vector<1x2048xf32>
      %109 = vector.broadcast %108 : vector<1x2048xf32> to vector<32x2048xf32>
      %110 = arith.addf %106, %109 : vector<32x2048xf32>
      %cst_42 = arith.constant 0.000000e+00 : f32
      %111 = vector.broadcast %cst_42 : f32 to vector<32x2048xf32>
      %112 = arith.maximumf %110, %111 : vector<32x2048xf32>
      %113 = arith.truncf %112 : vector<32x2048xf32> to vector<32x2048xbf16>
      %c0_43 = arith.constant 0 : index
      %c0_44 = arith.constant 0 : index
      %c0_45 = arith.constant 0 : index
      %114 = vector.load %arg16[%c0_43, %c0_44, %c0_45] : memref<1x2048x32xbf16, #tpu.memory_space<vmem>>, vector<1x2048x32xbf16>
      %115 = vector.shape_cast %114 : vector<1x2048x32xbf16> to vector<2048x32xbf16>
      %cst_46 = arith.constant dense<0.000000e+00> : vector<32x32xf32>
      %116 = tpu.matmul %113, %115, %cst_46 {dimension_numbers = #tpu.dot_dimension_numbers<[1], [0], [0], [1], [0, 0, 1, 1], [], []>} : vector<32x2048xbf16>, vector<2048x32xbf16>, vector<32x32xf32> -> vector<32x32xf32>
      %c0_47 = arith.constant 0 : index
      %c0_48 = arith.constant 0 : index
      %c0_49 = arith.constant 0 : index
      %117 = vector.load %arg17[%c0_47, %c0_48, %c0_49] : memref<1x1x32xf32, #tpu.memory_space<vmem>>, vector<1x1x32xf32>
      %118 = vector.shape_cast %117 : vector<1x1x32xf32> to vector<1x32xf32>
      %119 = vector.broadcast %118 : vector<1x32xf32> to vector<32x32xf32>
      %120 = arith.addf %116, %119 : vector<32x32xf32>
      %121 = arith.addf %102, %120 : vector<32x32xf32>
      %c0_50 = arith.constant 0 : index
      %c0_51 = arith.constant 0 : index
      %c0_52 = arith.constant 0 : index
      %122 = vector.load %arg18[%c0_50, %c0_51, %c0_52] : memref<1x1x32xf32, #tpu.memory_space<vmem>>, vector<1x1x32xf32>
      %123 = vector.shape_cast %122 : vector<1x1x32xf32> to vector<1x32xf32>
      %c0_53 = arith.constant 0 : index
      %c0_54 = arith.constant 0 : index
      %c0_55 = arith.constant 0 : index
      %124 = vector.load %arg19[%c0_53, %c0_54, %c0_55] : memref<1x1x32xf32, #tpu.memory_space<vmem>>, vector<1x1x32xf32>
      %125 = vector.shape_cast %124 : vector<1x1x32xf32> to vector<1x32xf32>
      %cst_56 = arith.constant dense<0.000000e+00> : vector<32xf32>
      %126 = vector.multi_reduction <add>, %121, %cst_56 [1] : vector<32x32xf32> to vector<32xf32>
      %127 = vector.shape_cast %126 : vector<32xf32> to vector<32x1xf32>
      %cst_57 = arith.constant 3.200000e+01 : f32
      %128 = vector.broadcast %cst_57 : f32 to vector<32x1xf32>
      %129 = arith.divf %127, %128 : vector<32x1xf32>
      %130 = vector.broadcast %129 : vector<32x1xf32> to vector<32x32xf32>
      %131 = arith.subf %121, %130 : vector<32x32xf32>
      %132 = arith.mulf %131, %131 : vector<32x32xf32>
      %cst_58 = arith.constant dense<0.000000e+00> : vector<32xf32>
      %133 = vector.multi_reduction <add>, %132, %cst_58 [1] : vector<32x32xf32> to vector<32xf32>
      %134 = vector.shape_cast %133 : vector<32xf32> to vector<32x1xf32>
      %cst_59 = arith.constant 3.200000e+01 : f32
      %135 = vector.broadcast %cst_59 : f32 to vector<32x1xf32>
      %136 = arith.divf %134, %135 : vector<32x1xf32>
      %cst_60 = arith.constant 9.99999974E-6 : f32
      %137 = vector.broadcast %cst_60 : f32 to vector<32x1xf32>
      %138 = arith.addf %136, %137 : vector<32x1xf32>
      %139 = math.rsqrt %138 : vector<32x1xf32>
      %140 = vector.broadcast %139 : vector<32x1xf32> to vector<32x32xf32>
      %141 = arith.mulf %131, %140 : vector<32x32xf32>
      %142 = vector.broadcast %123 : vector<1x32xf32> to vector<32x32xf32>
      %143 = arith.mulf %141, %142 : vector<32x32xf32>
      %144 = vector.broadcast %125 : vector<1x32xf32> to vector<32x32xf32>
      %145 = arith.addf %143, %144 : vector<32x32xf32>
      %c0_61 = arith.constant 0 : index
      %c0_62 = arith.constant 0 : index
      %146 = vector.load %arg23[%c0_61, %c0_62] : memref<32x32xf32, #tpu.memory_space<vmem>>, vector<32x32xf32>
      tpu.vector_store %arg23[%c0_61, %c0_62], %145 {strides = array<i32>} : memref<32x32xf32, #tpu.memory_space<vmem>>, vector<32x32xf32>,
    } else {
    }
    %c1_i32_13 = arith.constant 1 : i32
    %26 = arith.cmpi eq, %arg1, %c1_i32_13 : i32
    %27 = arith.extui %26 : i1 to i32
    %c0_i32_14 = arith.constant 0 : i32
    %28 = arith.cmpi ne, %27, %c0_i32_14 : i32
    scf.if %28 {
      %29 = arith.mulf %15, %17 : vector<16x32xf32>
      %30 = arith.mulf %15, %18 : vector<16x32xf32>
      %31 = tpu.concatenate %29, %30 in 0 : vector<16x32xf32>, vector<16x32xf32> -> vector<32x32xf32>
      %32 = arith.truncf %31 : vector<32x32xf32> to vector<32x32xbf16>
      %cst_15 = arith.constant dense<0.000000e+00> : vector<32x4xf32>
      %33 = tpu.matmul %32, %21, %cst_15 {dimension_numbers = #tpu.dot_dimension_numbers<[1], [0], [0], [1], [0, 0, 1, 1], [], []>} : vector<32x32xbf16>, vector<32x4xbf16>, vector<32x4xf32> -> vector<32x4xf32>
      %34 = vector.extract_strided_slice %33 {offsets = [0, 0], sizes = [16, 4], strides = [1, 1]} : vector<32x4xf32> to vector<16x4xf32>
      %35 = vector.extract_strided_slice %33 {offsets = [16, 0], sizes = [16, 4], strides = [1, 1]} : vector<32x4xf32> to vector<16x4xf32>
      %36 = arith.maximumf %34, %35 : vector<16x4xf32>
      %37 = arith.subf %34, %36 : vector<16x4xf32>
      %38 = math.exp %37 : vector<16x4xf32>
      %39 = arith.subf %35, %36 : vector<16x4xf32>
      %40 = math.exp %39 : vector<16x4xf32>
      %41 = arith.addf %38, %40 : vector<16x4xf32>
      %42 = arith.divf %38, %41 : vector<16x4xf32>
      %43 = arith.divf %40, %41 : vector<16x4xf32>
      %44 = tpu.concatenate %42, %43 in 0 : vector<16x4xf32>, vector<16x4xf32> -> vector<32x4xf32>
      %45 = arith.truncf %44 : vector<32x4xf32> to vector<32x4xbf16>
      %cst_16 = arith.constant dense<0.000000e+00> : vector<32x32xf32>
      %46 = tpu.matmul %45, %22, %cst_16 {dimension_numbers = #tpu.dot_dimension_numbers<[1], [0], [0], [1], [0, 0, 1, 1], [], []>} : vector<32x4xbf16>, vector<4x32xbf16>, vector<32x32xf32> -> vector<32x32xf32>
      %47 = vector.extract_strided_slice %46 {offsets = [0, 0], sizes = [16, 32], strides = [1, 1]} : vector<32x32xf32> to vector<16x32xf32>
      %48 = arith.mulf %47, %19 : vector<16x32xf32>
      %49 = vector.extract_strided_slice %46 {offsets = [16, 0], sizes = [16, 32], strides = [1, 1]} : vector<32x32xf32> to vector<16x32xf32>
      %50 = arith.mulf %49, %20 : vector<16x32xf32>
      %51 = arith.addf %48, %50 : vector<16x32xf32>
      %c0_17 = arith.constant 0 : index
      %c0_18 = arith.constant 0 : index
      %c0_19 = arith.constant 0 : index
      %52 = vector.load %arg10[%c0_17, %c0_18, %c0_19] : memref<1x32x32xbf16, #tpu.memory_space<vmem>>, vector<1x32x32xbf16>
      %53 = vector.shape_cast %52 : vector<1x32x32xbf16> to vector<32x32xbf16>
      %54 = arith.truncf %51 : vector<16x32xf32> to vector<16x32xbf16>
      %cst_20 = arith.constant dense<0.000000e+00> : vector<16x32xf32>
      %55 = tpu.matmul %54, %53, %cst_20 {dimension_numbers = #tpu.dot_dimension_numbers<[1], [0], [0], [1], [0, 0, 1, 1], [], []>} : vector<16x32xbf16>, vector<32x32xbf16>, vector<16x32xf32> -> vector<16x32xf32>
      %c0_21 = arith.constant 0 : index
      %c0_22 = arith.constant 0 : index
      %c0_23 = arith.constant 0 : index
      %56 = vector.load %arg11[%c0_21, %c0_22, %c0_23] : memref<1x1x32xf32, #tpu.memory_space<vmem>>, vector<1x1x32xf32>
      %57 = vector.shape_cast %56 : vector<1x1x32xf32> to vector<1x32xf32>
      %58 = vector.broadcast %57 : vector<1x32xf32> to vector<16x32xf32>
      %59 = arith.addf %55, %58 : vector<16x32xf32>
      %60 = vector.extract_strided_slice %3 {offsets = [0, 0], sizes = [16, 32], strides = [1, 1]} : vector<32x32xf32> to vector<16x32xf32>
      %61 = arith.addf %60, %59 : vector<16x32xf32>
      %c0_24 = arith.constant 0 : index
      %c0_25 = arith.constant 0 : index
      %c0_26 = arith.constant 0 : index
      %62 = vector.load %arg12[%c0_24, %c0_25, %c0_26] : memref<1x1x32xf32, #tpu.memory_space<vmem>>, vector<1x1x32xf32>
      %63 = vector.shape_cast %62 : vector<1x1x32xf32> to vector<1x32xf32>
      %c0_27 = arith.constant 0 : index
      %c0_28 = arith.constant 0 : index
      %c0_29 = arith.constant 0 : index
      %64 = vector.load %arg13[%c0_27, %c0_28, %c0_29] : memref<1x1x32xf32, #tpu.memory_space<vmem>>, vector<1x1x32xf32>
      %65 = vector.shape_cast %64 : vector<1x1x32xf32> to vector<1x32xf32>
      %cst_30 = arith.constant dense<0.000000e+00> : vector<16xf32>
      %66 = vector.multi_reduction <add>, %61, %cst_30 [1] : vector<16x32xf32> to vector<16xf32>
      %67 = vector.shape_cast %66 : vector<16xf32> to vector<16x1xf32>
      %cst_31 = arith.constant 3.200000e+01 : f32
      %68 = vector.broadcast %cst_31 : f32 to vector<16x1xf32>
      %69 = arith.divf %67, %68 : vector<16x1xf32>
      %70 = vector.broadcast %69 : vector<16x1xf32> to vector<16x32xf32>
      %71 = arith.subf %61, %70 : vector<16x32xf32>
      %72 = arith.mulf %71, %71 : vector<16x32xf32>
      %cst_32 = arith.constant dense<0.000000e+00> : vector<16xf32>
      %73 = vector.multi_reduction <add>, %72, %cst_32 [1] : vector<16x32xf32> to vector<16xf32>
      %74 = vector.shape_cast %73 : vector<16xf32> to vector<16x1xf32>
      %cst_33 = arith.constant 3.200000e+01 : f32
      %75 = vector.broadcast %cst_33 : f32 to vector<16x1xf32>
      %76 = arith.divf %74, %75 : vector<16x1xf32>
      %cst_34 = arith.constant 9.99999974E-6 : f32
      %77 = vector.broadcast %cst_34 : f32 to vector<16x1xf32>
      %78 = arith.addf %76, %77 : vector<16x1xf32>
      %79 = math.rsqrt %78 : vector<16x1xf32>
      %80 = vector.broadcast %79 : vector<16x1xf32> to vector<16x32xf32>
      %81 = arith.mulf %71, %80 : vector<16x32xf32>
      %82 = vector.broadcast %63 : vector<1x32xf32> to vector<16x32xf32>
      %83 = arith.mulf %81, %82 : vector<16x32xf32>
      %84 = vector.broadcast %65 : vector<1x32xf32> to vector<16x32xf32>
      %85 = arith.addf %83, %84 : vector<16x32xf32>
      %c0_35 = arith.constant 0 : index
      %c0_36 = arith.constant 0 : index
      %c0_37 = arith.constant 0 : index
      %86 = vector.load %arg14[%c0_35, %c0_36, %c0_37] : memref<1x32x2048xbf16, #tpu.memory_space<vmem>>, vector<1x32x2048xbf16>
      %87 = vector.shape_cast %86 : vector<1x32x2048xbf16> to vector<32x2048xbf16>
      %88 = arith.truncf %85 : vector<16x32xf32> to vector<16x32xbf16>
      %cst_38 = arith.constant dense<0.000000e+00> : vector<16x2048xf32>
      %89 = tpu.matmul %88, %87, %cst_38 {dimension_numbers = #tpu.dot_dimension_numbers<[1], [0], [0], [1], [0, 0, 1, 1], [], []>} : vector<16x32xbf16>, vector<32x2048xbf16>, vector<16x2048xf32> -> vector<16x2048xf32>
      %c0_39 = arith.constant 0 : index
      %c0_40 = arith.constant 0 : index
      %c0_41 = arith.constant 0 : index
      %90 = vector.load %arg15[%c0_39, %c0_40, %c0_41] : memref<1x1x2048xf32, #tpu.memory_space<vmem>>, vector<1x1x2048xf32>
      %91 = vector.shape_cast %90 : vector<1x1x2048xf32> to vector<1x2048xf32>
      %92 = vector.broadcast %91 : vector<1x2048xf32> to vector<16x2048xf32>
      %93 = arith.addf %89, %92 : vector<16x2048xf32>
      %cst_42 = arith.constant 0.000000e+00 : f32
      %94 = vector.broadcast %cst_42 : f32 to vector<16x2048xf32>
      %95 = arith.maximumf %93, %94 : vector<16x2048xf32>
      %96 = arith.truncf %95 : vector<16x2048xf32> to vector<16x2048xbf16>
      %c0_43 = arith.constant 0 : index
      %c0_44 = arith.constant 0 : index
      %c0_45 = arith.constant 0 : index
      %97 = vector.load %arg16[%c0_43, %c0_44, %c0_45] : memref<1x2048x32xbf16, #tpu.memory_space<vmem>>, vector<1x2048x32xbf16>
      %98 = vector.shape_cast %97 : vector<1x2048x32xbf16> to vector<2048x32xbf16>
      %cst_46 = arith.constant dense<0.000000e+00> : vector<16x32xf32>
      %99 = tpu.matmul %96, %98, %cst_46 {dimension_numbers = #tpu.dot_dimension_numbers<[1], [0], [0], [1], [0, 0, 1, 1], [], []>} : vector<16x2048xbf16>, vector<2048x32xbf16>, vector<16x32xf32> -> vector<16x32xf32>
      %c0_47 = arith.constant 0 : index
      %c0_48 = arith.constant 0 : index
      %c0_49 = arith.constant 0 : index
      %100 = vector.load %arg17[%c0_47, %c0_48, %c0_49] : memref<1x1x32xf32, #tpu.memory_space<vmem>>, vector<1x1x32xf32>
      %101 = vector.shape_cast %100 : vector<1x1x32xf32> to vector<1x32xf32>
      %102 = vector.broadcast %101 : vector<1x32xf32> to vector<16x32xf32>
      %103 = arith.addf %99, %102 : vector<16x32xf32>
      %104 = arith.addf %85, %103 : vector<16x32xf32>
      %c0_50 = arith.constant 0 : index
      %c0_51 = arith.constant 0 : index
      %c0_52 = arith.constant 0 : index
      %105 = vector.load %arg18[%c0_50, %c0_51, %c0_52] : memref<1x1x32xf32, #tpu.memory_space<vmem>>, vector<1x1x32xf32>
      %106 = vector.shape_cast %105 : vector<1x1x32xf32> to vector<1x32xf32>
      %c0_53 = arith.constant 0 : index
      %c0_54 = arith.constant 0 : index
      %c0_55 = arith.constant 0 : index
      %107 = vector.load %arg19[%c0_53, %c0_54, %c0_55] : memref<1x1x32xf32, #tpu.memory_space<vmem>>, vector<1x1x32xf32>
      %108 = vector.shape_cast %107 : vector<1x1x32xf32> to vector<1x32xf32>
      %cst_56 = arith.constant dense<0.000000e+00> : vector<16xf32>
      %109 = vector.multi_reduction <add>, %104, %cst_56 [1] : vector<16x32xf32> to vector<16xf32>
      %110 = vector.shape_cast %109 : vector<16xf32> to vector<16x1xf32>
      %cst_57 = arith.constant 3.200000e+01 : f32
      %111 = vector.broadcast %cst_57 : f32 to vector<16x1xf32>
      %112 = arith.divf %110, %111 : vector<16x1xf32>
      %113 = vector.broadcast %112 : vector<16x1xf32> to vector<16x32xf32>
      %114 = arith.subf %104, %113 : vector<16x32xf32>
      %115 = arith.mulf %114, %114 : vector<16x32xf32>
      %cst_58 = arith.constant dense<0.000000e+00> : vector<16xf32>
      %116 = vector.multi_reduction <add>, %115, %cst_58 [1] : vector<16x32xf32> to vector<16xf32>
      %117 = vector.shape_cast %116 : vector<16xf32> to vector<16x1xf32>
      %cst_59 = arith.constant 3.200000e+01 : f32
      %118 = vector.broadcast %cst_59 : f32 to vector<16x1xf32>
      %119 = arith.divf %117, %118 : vector<16x1xf32>
      %cst_60 = arith.constant 9.99999974E-6 : f32
      %120 = vector.broadcast %cst_60 : f32 to vector<16x1xf32>
      %121 = arith.addf %119, %120 : vector<16x1xf32>
      %122 = math.rsqrt %121 : vector<16x1xf32>
      %123 = vector.broadcast %122 : vector<16x1xf32> to vector<16x32xf32>
      %124 = arith.mulf %114, %123 : vector<16x32xf32>
      %125 = vector.broadcast %106 : vector<1x32xf32> to vector<16x32xf32>
      %126 = arith.mulf %124, %125 : vector<16x32xf32>
      %127 = vector.broadcast %108 : vector<1x32xf32> to vector<16x32xf32>
      %128 = arith.addf %126, %127 : vector<16x32xf32>
      %c0_61 = arith.constant 0 : index
      %c0_62 = arith.constant 0 : index
      %129 = vector.load %arg20[%c0_61, %c0_62] : memref<32x128xbf16, #tpu.memory_space<vmem>>, vector<32x128xbf16>
      %130 = arith.truncf %128 : vector<16x32xf32> to vector<16x32xbf16>
      %cst_63 = arith.constant dense<0.000000e+00> : vector<16x128xf32>
      %131 = tpu.matmul %130, %129, %cst_63 {dimension_numbers = #tpu.dot_dimension_numbers<[1], [0], [0], [1], [0, 0, 1, 1], [], []>} : vector<16x32xbf16>, vector<32x128xbf16>, vector<16x128xf32> -> vector<16x128xf32>
      %c0_64 = arith.constant 0 : index
      %c0_65 = arith.constant 0 : index
      %132 = vector.load %arg21[%c0_64, %c0_65] : memref<1x128xf32, #tpu.memory_space<vmem>>, vector<1x128xf32>
      %133 = vector.broadcast %132 : vector<1x128xf32> to vector<16x128xf32>
      %134 = arith.addf %131, %133 : vector<16x128xf32>
      %c0_66 = arith.constant 0 : index
      %c0_67 = arith.constant 0 : index
      %135 = vector.load %arg22[%c0_66, %c0_67] : memref<16x128xf32, #tpu.memory_space<vmem>>, vector<16x128xf32>
      tpu.vector_store %arg22[%c0_66, %c0_67], %134 {strides = array<i32>} : memref<16x128xf32, #tpu.memory_space<vmem>>, vector<16x128xf32>,
    } else {
    }
    return
  }
  func.func @transform_0(%arg0: i32, %arg1: i32) -> (i32, i32) {
    %c0_i32 = arith.constant 0 : i32
    %c0_i32_0 = arith.constant 0 : i32
    return %arg0, %c0_i32 : i32, i32
  }
  func.func @transform_1(%arg0: i32, %arg1: i32) -> (i32, i32) {
    %c0_i32 = arith.constant 0 : i32
    %c0_i32_0 = arith.constant 0 : i32
    %c0_i32_1 = arith.constant 0 : i32
    return %c0_i32, %c0_i32_0 : i32, i32
  }
  func.func @transform_2(%arg0: i32, %arg1: i32) -> (i32, i32) {
    %c0_i32 = arith.constant 0 : i32
    %c0_i32_0 = arith.constant 0 : i32
    %c0_i32_1 = arith.constant 0 : i32
    return %c0_i32, %c0_i32_0 : i32, i32
  }
  func.func @transform_3(%arg0: i32, %arg1: i32) -> (i32, i32) {
    %c0_i32 = arith.constant 0 : i32
    %c0_i32_0 = arith.constant 0 : i32
    %c0_i32_1 = arith.constant 0 : i32
    return %c0_i32, %c0_i32_0 : i32, i32
  }
  func.func @transform_4(%arg0: i32, %arg1: i32) -> (i32, i32) {
    %c0_i32 = arith.constant 0 : i32
    %c0_i32_0 = arith.constant 0 : i32
    %c0_i32_1 = arith.constant 0 : i32
    return %c0_i32, %c0_i32_0 : i32, i32
  }
  func.func @transform_5(%arg0: i32, %arg1: i32) -> (i32, i32) {
    %c0_i32 = arith.constant 0 : i32
    %c0_i32_0 = arith.constant 0 : i32
    %c0_i32_1 = arith.constant 0 : i32
    return %c0_i32, %c0_i32_0 : i32, i32
  }
  func.func @transform_6(%arg0: i32, %arg1: i32) -> (i32, i32, i32) {
    %c0_i32 = arith.constant 0 : i32
    %c0_i32_0 = arith.constant 0 : i32
    %c0_i32_1 = arith.constant 0 : i32
    return %arg1, %c0_i32, %c0_i32_0 : i32, i32, i32
  }
  func.func @transform_7(%arg0: i32, %arg1: i32) -> (i32, i32, i32) {
    %c0_i32 = arith.constant 0 : i32
    %c0_i32_0 = arith.constant 0 : i32
    %c0_i32_1 = arith.constant 0 : i32
    return %arg1, %c0_i32, %c0_i32_0 : i32, i32, i32
  }
  func.func @transform_8(%arg0: i32, %arg1: i32) -> (i32, i32, i32) {
    %c0_i32 = arith.constant 0 : i32
    %c0_i32_0 = arith.constant 0 : i32
    %c0_i32_1 = arith.constant 0 : i32
    return %arg1, %c0_i32, %c0_i32_0 : i32, i32, i32
  }
  func.func @transform_9(%arg0: i32, %arg1: i32) -> (i32, i32, i32) {
    %c0_i32 = arith.constant 0 : i32
    %c0_i32_0 = arith.constant 0 : i32
    %c0_i32_1 = arith.constant 0 : i32
    return %arg1, %c0_i32, %c0_i32_0 : i32, i32, i32
  }
  func.func @transform_10(%arg0: i32, %arg1: i32) -> (i32, i32, i32) {
    %c0_i32 = arith.constant 0 : i32
    %c0_i32_0 = arith.constant 0 : i32
    %c0_i32_1 = arith.constant 0 : i32
    return %arg1, %c0_i32, %c0_i32_0 : i32, i32, i32
  }
  func.func @transform_11(%arg0: i32, %arg1: i32) -> (i32, i32, i32) {
    %c0_i32 = arith.constant 0 : i32
    %c0_i32_0 = arith.constant 0 : i32
    %c0_i32_1 = arith.constant 0 : i32
    return %arg1, %c0_i32, %c0_i32_0 : i32, i32, i32
  }
  func.func @transform_12(%arg0: i32, %arg1: i32) -> (i32, i32, i32) {
    %c0_i32 = arith.constant 0 : i32
    %c0_i32_0 = arith.constant 0 : i32
    %c0_i32_1 = arith.constant 0 : i32
    return %arg1, %c0_i32, %c0_i32_0 : i32, i32, i32
  }
  func.func @transform_13(%arg0: i32, %arg1: i32) -> (i32, i32, i32) {
    %c0_i32 = arith.constant 0 : i32
    %c0_i32_0 = arith.constant 0 : i32
    %c0_i32_1 = arith.constant 0 : i32
    return %arg1, %c0_i32, %c0_i32_0 : i32, i32, i32
  }
  func.func @transform_14(%arg0: i32, %arg1: i32) -> (i32, i32, i32) {
    %c0_i32 = arith.constant 0 : i32
    %c0_i32_0 = arith.constant 0 : i32
    %c0_i32_1 = arith.constant 0 : i32
    return %arg1, %c0_i32, %c0_i32_0 : i32, i32, i32
  }
  func.func @transform_15(%arg0: i32, %arg1: i32) -> (i32, i32, i32) {
    %c0_i32 = arith.constant 0 : i32
    %c0_i32_0 = arith.constant 0 : i32
    %c0_i32_1 = arith.constant 0 : i32
    return %arg1, %c0_i32, %c0_i32_0 : i32, i32, i32
  }
  func.func @transform_16(%arg0: i32, %arg1: i32) -> (i32, i32, i32) {
    %c0_i32 = arith.constant 0 : i32
    %c0_i32_0 = arith.constant 0 : i32
    %c0_i32_1 = arith.constant 0 : i32
    return %arg1, %c0_i32, %c0_i32_0 : i32, i32, i32
  }
  func.func @transform_17(%arg0: i32, %arg1: i32) -> (i32, i32, i32) {
    %c0_i32 = arith.constant 0 : i32
    %c0_i32_0 = arith.constant 0 : i32
    %c0_i32_1 = arith.constant 0 : i32
    return %arg1, %c0_i32, %c0_i32_0 : i32, i32, i32
  }
  func.func @transform_18(%arg0: i32, %arg1: i32) -> (i32, i32) {
    %c0_i32 = arith.constant 0 : i32
    %c0_i32_0 = arith.constant 0 : i32
    %c0_i32_1 = arith.constant 0 : i32
    return %c0_i32, %c0_i32_0 : i32, i32
  }
  func.func @transform_19(%arg0: i32, %arg1: i32) -> (i32, i32) {
    %c0_i32 = arith.constant 0 : i32
    %c0_i32_0 = arith.constant 0 : i32
    %c0_i32_1 = arith.constant 0 : i32
    return %c0_i32, %c0_i32_0 : i32, i32
  }
  func.func @transform_20(%arg0: i32, %arg1: i32) -> (i32, i32) {
    %c0_i32 = arith.constant 0 : i32
    %c0_i32_0 = arith.constant 0 : i32
    return %arg0, %c0_i32 : i32, i32
  }
}

</mosaic_0001>

<llo_original>
// kernel: tpu_custom_call.1
$region0: #{tpu_custom_call.1}
  #allocation0 [shape = 'u32[]', space=smem, size = 0x4, offset = 0x4, fixed_abs, tag = 'smem constant byte address 0x4 - core index']
  #allocation1 [shape = 'u32[144,128]{1,0:T(1,128)}', space=vmem, size = 0x12000, scoped, tag = 'internal scratch']
  #allocation2 [shape = 'f32[32,32]{1,0:T(8,128)}', space=vmem, size = 0x4000, scoped, tag = 'scratch operand']
  %s0 = inlined_call_operand.vmem [shape: f32[16,16], index: 0, kind: input, shape index: {}]
  %s1 = inlined_call_operand.vmem [shape: f32[1,32], index: 1, kind: input, shape index: {}]
  %s2 = inlined_call_operand.vmem [shape: bf16[16,32], index: 2, kind: input, shape index: {}]
  %s3 = inlined_call_operand.vmem [shape: f32[1,32], index: 3, kind: input, shape index: {}]
  %s4 = inlined_call_operand.vmem [shape: bf16[32,4], index: 4, kind: input, shape index: {}]
  %s5 = inlined_call_operand.vmem [shape: bf16[4,32], index: 5, kind: input, shape index: {}]
  %s6 = inlined_call_operand.vmem [shape: bf16[2,32,96], index: 6, kind: input, shape index: {}]
  %s7 = inlined_call_operand.vmem [shape: f32[2,1,96], index: 7, kind: input, shape index: {}]
  %s8 = inlined_call_operand.vmem [shape: bf16[2,32,32], index: 8, kind: input, shape index: {}]
  %s9 = inlined_call_operand.vmem [shape: f32[2,1,32], index: 9, kind: input, shape index: {}]
  %s10 = inlined_call_operand.vmem [shape: f32[2,1,32], index: 10, kind: input, shape index: {}]
  %s11 = inlined_call_operand.vmem [shape: f32[2,1,32], index: 11, kind: input, shape index: {}]
  %s12 = inlined_call_operand.vmem [shape: bf16[2,32,2048], index: 12, kind: input, shape index: {}]
  %s13 = inlined_call_operand.vmem [shape: f32[2,1,2048], index: 13, kind: input, shape index: {}]
  %s14 = inlined_call_operand.vmem [shape: bf16[2,2048,32], index: 14, kind: input, shape index: {}]
  %s15 = inlined_call_operand.vmem [shape: f32[2,1,32], index: 15, kind: input, shape index: {}]
  %s16 = inlined_call_operand.vmem [shape: f32[2,1,32], index: 16, kind: input, shape index: {}]
  %s17 = inlined_call_operand.vmem [shape: f32[2,1,32], index: 17, kind: input, shape index: {}]
  %s18 = inlined_call_operand.vmem [shape: bf16[32,128], index: 18, kind: input, shape index: {}]
  %s19 = inlined_call_operand.vmem [shape: f32[1,128], index: 19, kind: input, shape index: {}]
  %s20 = inlined_call_operand.hbm [shape: f32[16,128], index: 20, kind: output, shape index: {}]
  %s21 = sld [smem:[#allocation0]]
  $region125: #{tpu_custom_call.1} parent=0
    _
  %s23 = ssub.s32 1, %s21
  %s24 = scalar_select 0, %s23, %s21
  $region1: #{tpu_custom_call.1} parent=0
    #allocation3 [shape = 'u8[8192]{0}', space=vmem, size = 0x2000, scoped, tag = 'output window, operand 0, single buffered']
    #allocation4 [shape = 's32[2]{0}', space=sflag, size = 0x8, scoped, tag = 'scoped memory for tpu_custom_call.1']
    %25 = vsyncpa [#allocation4], 0
    loop: start=0, step=1, limit=4
    $region2: #{tpu_custom_call.1} parent=1 // loop_pre_header
      _
    $region3: #{tpu_custom_call.1} parent=1 // loop_header
      %s27 = sphi 0, %s31
      %p28 = scmp.ge.s32.totalorder %s27, 4
      %s34 = sphi 0, %s46
      %s35 = sphi 0, %s42
      %s36 = sphi 0, %s34
      %s37 = sphi 0, %s35
      %s38 = sphi 0, %s36
      %s39 = sphi 0, %s37
      %s49 = sphi 0, %s51
      %s52 = sphi 0, %s49
      %s53 = sphi 0, %s52
      %s69 = sphi 0, %s53
      %s73 = sphi 0, %s73
      %s75 = sphi 0, %s73
      %s76 = sphi 0, %s75
      %s90 = sphi 0, %s76
      %s94 = sphi 0, %s94
      %s96 = sphi 0, %s94
      %s97 = sphi 0, %s96
      %s111 = sphi 0, %s97
      %s115 = sphi 0, %s115
      %s117 = sphi 0, %s115
      %s118 = sphi 0, %s117
      %s132 = sphi 0, %s118
      %s136 = sphi 0, %s136
      %s138 = sphi 0, %s136
      %s139 = sphi 0, %s138
      %s153 = sphi 0, %s139
      %s157 = sphi 0, %s157
      %s159 = sphi 0, %s157
      %s160 = sphi 0, %s159
      %s174 = sphi 0, %s160
      %s180 = sphi 0, %s182
      %s183 = sphi 0, %s180
      %s184 = sphi 0, %s183
      %s200 = sphi 0, %s184
      %s206 = sphi 0, %s208
      %s209 = sphi 0, %s206
      %s210 = sphi 0, %s209
      %s226 = sphi 0, %s210
      %s232 = sphi 0, %s234
      %s235 = sphi 0, %s232
      %s236 = sphi 0, %s235
      %s252 = sphi 0, %s236
      %s258 = sphi 0, %s260
      %s261 = sphi 0, %s258
      %s262 = sphi 0, %s261
      %s278 = sphi 0, %s262
      %s284 = sphi 0, %s286
      %s287 = sphi 0, %s284
      %s288 = sphi 0, %s287
      %s304 = sphi 0, %s288
      %s310 = sphi 0, %s312
      %s313 = sphi 0, %s310
      %s314 = sphi 0, %s313
      %s330 = sphi 0, %s314
      %s336 = sphi 0, %s338
      %s339 = sphi 0, %s336
      %s340 = sphi 0, %s339
      %s356 = sphi 0, %s340
      %s362 = sphi 0, %s364
      %s365 = sphi 0, %s362
      %s366 = sphi 0, %s365
      %s382 = sphi 0, %s366
      %s388 = sphi 0, %s390
      %s391 = sphi 0, %s388
      %s392 = sphi 0, %s391
      %s408 = sphi 0, %s392
      %s414 = sphi 0, %s416
      %s417 = sphi 0, %s414
      %s418 = sphi 0, %s417
      %s434 = sphi 0, %s418
      %s440 = sphi 0, %s442
      %s443 = sphi 0, %s440
      %s444 = sphi 0, %s443
      %s460 = sphi 0, %s444
      %s466 = sphi 0, %s468
      %s469 = sphi 0, %s466
      %s470 = sphi 0, %s469
      %s486 = sphi 0, %s470
      %s490 = sphi 0, %s490
      %s492 = sphi 0, %s490
      %s493 = sphi 0, %s492
      %s507 = sphi 0, %s493
      %s511 = sphi 0, %s511
      %s513 = sphi 0, %s511
      %s514 = sphi 0, %s513
      %s528 = sphi 0, %s514
      %s534 = sphi 0, %s536
      %s537 = sphi 0, %s534
      %s538 = sphi 0, %s537
      %s554 = sphi 0, %s538
    $region4: #{tpu_custom_call.1} parent=1 // loop_header_branch
      %30 = sbr.rel (%p28) target = $region8
    $region5: #{tpu_custom_call.1} parent=1 // loop_body
      %s32 = ssub.s32 %s27, 1
      %s33 = ssub.s32 %s27, 2
      %s40 = sadd.s32 1, %s35
      %p41 = scmp.ge.s32.totalorder %s40, 2
      %s42 = scalar_select %p41, 0, %s40
      %s43 = sadd.s32 1, %s34
      %s44 = scalar_select %p41, %s43, %s34
      %p45 = scmp.ge.s32.totalorder %s44, 1
      %s46 = scalar_select %p45, 0, %s44
      %s47 = ssub.s32 %s34, %s46
      %p48 = scmp.eq.s32.totalorder %s47, 0
      %s50 = sadd.s32 %s49, 1
      %s51 = scalar_select %p48, %s49, %s50
      %p54 = pneg %p48
      %p55 = scmp.eq.s32.totalorder %s27, 1
      %p56 = por %p54, %p55
      %p57 = scmp.ne.s32.totalorder %s49, %s52
      %p58 = scmp.eq.s32.totalorder %s27, 0
      %p59 = por %p57, %p58
      %p60 = scmp.ne.s32.totalorder %s49, %s52
      %p61 = scmp.eq.s32.totalorder %s32, 1
      %p62 = por %p60, %p61
      %p63 = scmp.ne.s32.totalorder %s52, %s53
      %p64 = scmp.eq.s32.totalorder %s32, 0
      %p65 = por %p63, %p64
      %p66 = scmp.ne.s32.totalorder %s52, %s53
      %p67 = scmp.eq.s32.totalorder %s33, 1
      %p68 = por %p66, %p67
      %p70 = scmp.ne.s32.totalorder %s53, %s69
      %p71 = scmp.eq.s32.totalorder %s33, 0
      %p72 = por %p70, %p71
      %s74 = sadd.s32 %s73, 1
      %p77 = scmp.eq.s32.totalorder %s27, 1
      %p78 = scmp.ne.s32.totalorder %s73, %s75
      %p79 = scmp.eq.s32.totalorder %s27, 0
      %p80 = por %p78, %p79
      %p81 = scmp.ne.s32.totalorder %s73, %s75
      %p82 = scmp.eq.s32.totalorder %s32, 1
      %p83 = por %p81, %p82
      %p84 = scmp.ne.s32.totalorder %s75, %s76
      %p85 = scmp.eq.s32.totalorder %s32, 0
      %p86 = por %p84, %p85
      %p87 = scmp.ne.s32.totalorder %s75, %s76
      %p88 = scmp.eq.s32.totalorder %s33, 1
      %p89 = por %p87, %p88
      %p91 = scmp.ne.s32.totalorder %s76, %s90
      %p92 = scmp.eq.s32.totalorder %s33, 0
      %p93 = por %p91, %p92
      %s95 = sadd.s32 %s94, 1
      %p98 = scmp.eq.s32.totalorder %s27, 1
      %p99 = scmp.ne.s32.totalorder %s94, %s96
      %p100 = scmp.eq.s32.totalorder %s27, 0
      %p101 = por %p99, %p100
      %p102 = scmp.ne.s32.totalorder %s94, %s96
      %p103 = scmp.eq.s32.totalorder %s32, 1
      %p104 = por %p102, %p103
      %p105 = scmp.ne.s32.totalorder %s96, %s97
      %p106 = scmp.eq.s32.totalorder %s32, 0
      %p107 = por %p105, %p106
      %p108 = scmp.ne.s32.totalorder %s96, %s97
      %p109 = scmp.eq.s32.totalorder %s33, 1
      %p110 = por %p108, %p109
      %p112 = scmp.ne.s32.totalorder %s97, %s111
      %p113 = scmp.eq.s32.totalorder %s33, 0
      %p114 = por %p112, %p113
      %s116 = sadd.s32 %s115, 1
      %p119 = scmp.eq.s32.totalorder %s27, 1
      %p120 = scmp.ne.s32.totalorder %s115, %s117
      %p121 = scmp.eq.s32.totalorder %s27, 0
      %p122 = por %p120, %p121
      %p123 = scmp.ne.s32.totalorder %s115, %s117
      %p124 = scmp.eq.s32.totalorder %s32, 1
      %p125 = por %p123, %p124
      %p126 = scmp.ne.s32.totalorder %s117, %s118
      %p127 = scmp.eq.s32.totalorder %s32, 0
      %p128 = por %p126, %p127
      %p129 = scmp.ne.s32.totalorder %s117, %s118
      %p130 = scmp.eq.s32.totalorder %s33, 1
      %p131 = por %p129, %p130
      %p133 = scmp.ne.s32.totalorder %s118, %s132
      %p134 = scmp.eq.s32.totalorder %s33, 0
      %p135 = por %p133, %p134
      %s137 = sadd.s32 %s136, 1
      %p140 = scmp.eq.s32.totalorder %s27, 1
      %p141 = scmp.ne.s32.totalorder %s136, %s138
      %p142 = scmp.eq.s32.totalorder %s27, 0
      %p143 = por %p141, %p142
      %p144 = scmp.ne.s32.totalorder %s136, %s138
      %p145 = scmp.eq.s32.totalorder %s32, 1
      %p146 = por %p144, %p145
      %p147 = scmp.ne.s32.totalorder %s138, %s139
      %p148 = scmp.eq.s32.totalorder %s32, 0
      %p149 = por %p147, %p148
      %p150 = scmp.ne.s32.totalorder %s138, %s139
      %p151 = scmp.eq.s32.totalorder %s33, 1
      %p152 = por %p150, %p151
      %p154 = scmp.ne.s32.totalorder %s139, %s153
      %p155 = scmp.eq.s32.totalorder %s33, 0
      %p156 = por %p154, %p155
      %s158 = sadd.s32 %s157, 1
      %p161 = scmp.eq.s32.totalorder %s27, 1
      %p162 = scmp.ne.s32.totalorder %s157, %s159
      %p163 = scmp.eq.s32.totalorder %s27, 0
      %p164 = por %p162, %p163
      %p165 = scmp.ne.s32.totalorder %s157, %s159
      %p166 = scmp.eq.s32.totalorder %s32, 1
      %p167 = por %p165, %p166
      %p168 = scmp.ne.s32.totalorder %s159, %s160
      %p169 = scmp.eq.s32.totalorder %s32, 0
      %p170 = por %p168, %p169
      %p171 = scmp.ne.s32.totalorder %s159, %s160
      %p172 = scmp.eq.s32.totalorder %s33, 1
      %p173 = por %p171, %p172
      %p175 = scmp.ne.s32.totalorder %s160, %s174
      %p176 = scmp.eq.s32.totalorder %s33, 0
      %p177 = por %p175, %p176
      %s178 = ssub.s32 %s35, %s42
      %p179 = scmp.eq.s32.totalorder %s178, 0
      %s181 = sadd.s32 %s180, 1
      %s182 = scalar_select %p179, %s180, %s181
      %p185 = pneg %p179
      %p186 = scmp.eq.s32.totalorder %s27, 1
      %p187 = por %p185, %p186
      %p188 = scmp.ne.s32.totalorder %s180, %s183
      %p189 = scmp.eq.s32.totalorder %s27, 0
      %p190 = por %p188, %p189
      %p191 = scmp.ne.s32.totalorder %s180, %s183
      %p192 = scmp.eq.s32.totalorder %s32, 1
      %p193 = por %p191, %p192
      %p194 = scmp.ne.s32.totalorder %s183, %s184
      %p195 = scmp.eq.s32.totalorder %s32, 0
      %p196 = por %p194, %p195
      %p197 = scmp.ne.s32.totalorder %s183, %s184
      %p198 = scmp.eq.s32.totalorder %s33, 1
      %p199 = por %p197, %p198
      %p201 = scmp.ne.s32.totalorder %s184, %s200
      %p202 = scmp.eq.s32.totalorder %s33, 0
      %p203 = por %p201, %p202
      %s204 = ssub.s32 %s35, %s42
      %p205 = scmp.eq.s32.totalorder %s204, 0
      %s207 = sadd.s32 %s206, 1
      %s208 = scalar_select %p205, %s206, %s207
      %p211 = pneg %p205
      %p212 = scmp.eq.s32.totalorder %s27, 1
      %p213 = por %p211, %p212
      %p214 = scmp.ne.s32.totalorder %s206, %s209
      %p215 = scmp.eq.s32.totalorder %s27, 0
      %p216 = por %p214, %p215
      %p217 = scmp.ne.s32.totalorder %s206, %s209
      %p218 = scmp.eq.s32.totalorder %s32, 1
      %p219 = por %p217, %p218
      %p220 = scmp.ne.s32.totalorder %s209, %s210
      %p221 = scmp.eq.s32.totalorder %s32, 0
      %p222 = por %p220, %p221
      %p223 = scmp.ne.s32.totalorder %s209, %s210
      %p224 = scmp.eq.s32.totalorder %s33, 1
      %p225 = por %p223, %p224
      %p227 = scmp.ne.s32.totalorder %s210, %s226
      %p228 = scmp.eq.s32.totalorder %s33, 0
      %p229 = por %p227, %p228
      %s230 = ssub.s32 %s35, %s42
      %p231 = scmp.eq.s32.totalorder %s230, 0
      %s233 = sadd.s32 %s232, 1
      %s234 = scalar_select %p231, %s232, %s233
      %p237 = pneg %p231
      %p238 = scmp.eq.s32.totalorder %s27, 1
      %p239 = por %p237, %p238
      %p240 = scmp.ne.s32.totalorder %s232, %s235
      %p241 = scmp.eq.s32.totalorder %s27, 0
      %p242 = por %p240, %p241
      %p243 = scmp.ne.s32.totalorder %s232, %s235
      %p244 = scmp.eq.s32.totalorder %s32, 1
      %p245 = por %p243, %p244
      %p246 = scmp.ne.s32.totalorder %s235, %s236
      %p247 = scmp.eq.s32.totalorder %s32, 0
      %p248 = por %p246, %p247
      %p249 = scmp.ne.s32.totalorder %s235, %s236
      %p250 = scmp.eq.s32.totalorder %s33, 1
      %p251 = por %p249, %p250
      %p253 = scmp.ne.s32.totalorder %s236, %s252
      %p254 = scmp.eq.s32.totalorder %s33, 0
      %p255 = por %p253, %p254
      %s256 = ssub.s32 %s35, %s42
      %p257 = scmp.eq.s32.totalorder %s256, 0
      %s259 = sadd.s32 %s258, 1
      %s260 = scalar_select %p257, %s258, %s259
      %p263 = pneg %p257
      %p264 = scmp.eq.s32.totalorder %s27, 1
      %p265 = por %p263, %p264
      %p266 = scmp.ne.s32.totalorder %s258, %s261
      %p267 = scmp.eq.s32.totalorder %s27, 0
      %p268 = por %p266, %p267
      %p269 = scmp.ne.s32.totalorder %s258, %s261
      %p270 = scmp.eq.s32.totalorder %s32, 1
      %p271 = por %p269, %p270
      %p272 = scmp.ne.s32.totalorder %s261, %s262
      %p273 = scmp.eq.s32.totalorder %s32, 0
      %p274 = por %p272, %p273
      %p275 = scmp.ne.s32.totalorder %s261, %s262
      %p276 = scmp.eq.s32.totalorder %s33, 1
      %p277 = por %p275, %p276
      %p279 = scmp.ne.s32.totalorder %s262, %s278
      %p280 = scmp.eq.s32.totalorder %s33, 0
      %p281 = por %p279, %p280
      %s282 = ssub.s32 %s35, %s42
      %p283 = scmp.eq.s32.totalorder %s282, 0
      %s285 = sadd.s32 %s284, 1
      %s286 = scalar_select %p283, %s284, %s285
      %p289 = pneg %p283
      %p290 = scmp.eq.s32.totalorder %s27, 1
      %p291 = por %p289, %p290
      %p292 = scmp.ne.s32.totalorder %s284, %s287
      %p293 = scmp.eq.s32.totalorder %s27, 0
      %p294 = por %p292, %p293
      %p295 = scmp.ne.s32.totalorder %s284, %s287
      %p296 = scmp.eq.s32.totalorder %s32, 1
      %p297 = por %p295, %p296
      %p298 = scmp.ne.s32.totalorder %s287, %s288
      %p299 = scmp.eq.s32.totalorder %s32, 0
      %p300 = por %p298, %p299
      %p301 = scmp.ne.s32.totalorder %s287, %s288
      %p302 = scmp.eq.s32.totalorder %s33, 1
      %p303 = por %p301, %p302
      %p305 = scmp.ne.s32.totalorder %s288, %s304
      %p306 = scmp.eq.s32.totalorder %s33, 0
      %p307 = por %p305, %p306
      %s308 = ssub.s32 %s35, %s42
      %p309 = scmp.eq.s32.totalorder %s308, 0
      %s311 = sadd.s32 %s310, 1
      %s312 = scalar_select %p309, %s310, %s311
      %p315 = pneg %p309
      %p316 = scmp.eq.s32.totalorder %s27, 1
      %p317 = por %p315, %p316
      %p318 = scmp.ne.s32.totalorder %s310, %s313
      %p319 = scmp.eq.s32.totalorder %s27, 0
      %p320 = por %p318, %p319
      %p321 = scmp.ne.s32.totalorder %s310, %s313
      %p322 = scmp.eq.s32.totalorder %s32, 1
      %p323 = por %p321, %p322
      %p324 = scmp.ne.s32.totalorder %s313, %s314
      %p325 = scmp.eq.s32.totalorder %s32, 0
      %p326 = por %p324, %p325
      %p327 = scmp.ne.s32.totalorder %s313, %s314
      %p328 = scmp.eq.s32.totalorder %s33, 1
      %p329 = por %p327, %p328
      %p331 = scmp.ne.s32.totalorder %s314, %s330
      %p332 = scmp.eq.s32.totalorder %s33, 0
      %p333 = por %p331, %p332
      %s334 = ssub.s32 %s35, %s42
      %p335 = scmp.eq.s32.totalorder %s334, 0
      %s337 = sadd.s32 %s336, 1
      %s338 = scalar_select %p335, %s336, %s337
      %p341 = pneg %p335
      %p342 = scmp.eq.s32.totalorder %s27, 1
      %p343 = por %p341, %p342
      %p344 = scmp.ne.s32.totalorder %s336, %s339
      %p345 = scmp.eq.s32.totalorder %s27, 0
      %p346 = por %p344, %p345
      %p347 = scmp.ne.s32.totalorder %s336, %s339
      %p348 = scmp.eq.s32.totalorder %s32, 1
      %p349 = por %p347, %p348
      %p350 = scmp.ne.s32.totalorder %s339, %s340
      %p351 = scmp.eq.s32.totalorder %s32, 0
      %p352 = por %p350, %p351
      %p353 = scmp.ne.s32.totalorder %s339, %s340
      %p354 = scmp.eq.s32.totalorder %s33, 1
      %p355 = por %p353, %p354
      %p357 = scmp.ne.s32.totalorder %s340, %s356
      %p358 = scmp.eq.s32.totalorder %s33, 0
      %p359 = por %p357, %p358
      %s360 = ssub.s32 %s35, %s42
      %p361 = scmp.eq.s32.totalorder %s360, 0
      %s363 = sadd.s32 %s362, 1
      %s364 = scalar_select %p361, %s362, %s363
      %p367 = pneg %p361
      %p368 = scmp.eq.s32.totalorder %s27, 1
      %p369 = por %p367, %p368
      %p370 = scmp.ne.s32.totalorder %s362, %s365
      %p371 = scmp.eq.s32.totalorder %s27, 0
      %p372 = por %p370, %p371
      %p373 = scmp.ne.s32.totalorder %s362, %s365
      %p374 = scmp.eq.s32.totalorder %s32, 1
      %p375 = por %p373, %p374
      %p376 = scmp.ne.s32.totalorder %s365, %s366
      %p377 = scmp.eq.s32.totalorder %s32, 0
      %p378 = por %p376, %p377
      %p379 = scmp.ne.s32.totalorder %s365, %s366
      %p380 = scmp.eq.s32.totalorder %s33, 1
      %p381 = por %p379, %p380
      %p383 = scmp.ne.s32.totalorder %s366, %s382
      %p384 = scmp.eq.s32.totalorder %s33, 0
      %p385 = por %p383, %p384
      %s386 = ssub.s32 %s35, %s42
      %p387 = scmp.eq.s32.totalorder %s386, 0
      %s389 = sadd.s32 %s388, 1
      %s390 = scalar_select %p387, %s388, %s389
      %p393 = pneg %p387
      %p394 = scmp.eq.s32.totalorder %s27, 1
      %p395 = por %p393, %p394
      %p396 = scmp.ne.s32.totalorder %s388, %s391
      %p397 = scmp.eq.s32.totalorder %s27, 0
      %p398 = por %p396, %p397
      %p399 = scmp.ne.s32.totalorder %s388, %s391
      %p400 = scmp.eq.s32.totalorder %s32, 1
      %p401 = por %p399, %p400
      %p402 = scmp.ne.s32.totalorder %s391, %s392
      %p403 = scmp.eq.s32.totalorder %s32, 0
      %p404 = por %p402, %p403
      %p405 = scmp.ne.s32.totalorder %s391, %s392
      %p406 = scmp.eq.s32.totalorder %s33, 1
      %p407 = por %p405, %p406
      %p409 = scmp.ne.s32.totalorder %s392, %s408
      %p410 = scmp.eq.s32.totalorder %s33, 0
      %p411 = por %p409, %p410
      %s412 = ssub.s32 %s35, %s42
      %p413 = scmp.eq.s32.totalorder %s412, 0
      %s415 = sadd.s32 %s414, 1
      %s416 = scalar_select %p413, %s414, %s415
      %p419 = pneg %p413
      %p420 = scmp.eq.s32.totalorder %s27, 1
      %p421 = por %p419, %p420
      %p422 = scmp.ne.s32.totalorder %s414, %s417
      %p423 = scmp.eq.s32.totalorder %s27, 0
      %p424 = por %p422, %p423
      %p425 = scmp.ne.s32.totalorder %s414, %s417
      %p426 = scmp.eq.s32.totalorder %s32, 1
      %p427 = por %p425, %p426
      %p428 = scmp.ne.s32.totalorder %s417, %s418
      %p429 = scmp.eq.s32.totalorder %s32, 0
      %p430 = por %p428, %p429
      %p431 = scmp.ne.s32.totalorder %s417, %s418
      %p432 = scmp.eq.s32.totalorder %s33, 1
      %p433 = por %p431, %p432
      %p435 = scmp.ne.s32.totalorder %s418, %s434
      %p436 = scmp.eq.s32.totalorder %s33, 0
      %p437 = por %p435, %p436
      %s438 = ssub.s32 %s35, %s42
      %p439 = scmp.eq.s32.totalorder %s438, 0
      %s441 = sadd.s32 %s440, 1
      %s442 = scalar_select %p439, %s440, %s441
      %p445 = pneg %p439
      %p446 = scmp.eq.s32.totalorder %s27, 1
      %p447 = por %p445, %p446
      %p448 = scmp.ne.s32.totalorder %s440, %s443
      %p449 = scmp.eq.s32.totalorder %s27, 0
      %p450 = por %p448, %p449
      %p451 = scmp.ne.s32.totalorder %s440, %s443
      %p452 = scmp.eq.s32.totalorder %s32, 1
      %p453 = por %p451, %p452
      %p454 = scmp.ne.s32.totalorder %s443, %s444
      %p455 = scmp.eq.s32.totalorder %s32, 0
      %p456 = por %p454, %p455
      %p457 = scmp.ne.s32.totalorder %s443, %s444
      %p458 = scmp.eq.s32.totalorder %s33, 1
      %p459 = por %p457, %p458
      %p461 = scmp.ne.s32.totalorder %s444, %s460
      %p462 = scmp.eq.s32.totalorder %s33, 0
      %p463 = por %p461, %p462
      %s464 = ssub.s32 %s35, %s42
      %p465 = scmp.eq.s32.totalorder %s464, 0
      %s467 = sadd.s32 %s466, 1
      %s468 = scalar_select %p465, %s466, %s467
      %p471 = pneg %p465
      %p472 = scmp.eq.s32.totalorder %s27, 1
      %p473 = por %p471, %p472
      %p474 = scmp.ne.s32.totalorder %s466, %s469
      %p475 = scmp.eq.s32.totalorder %s27, 0
      %p476 = por %p474, %p475
      %p477 = scmp.ne.s32.totalorder %s466, %s469
      %p478 = scmp.eq.s32.totalorder %s32, 1
      %p479 = por %p477, %p478
      %p480 = scmp.ne.s32.totalorder %s469, %s470
      %p481 = scmp.eq.s32.totalorder %s32, 0
      %p482 = por %p480, %p481
      %p483 = scmp.ne.s32.totalorder %s469, %s470
      %p484 = scmp.eq.s32.totalorder %s33, 1
      %p485 = por %p483, %p484
      %p487 = scmp.ne.s32.totalorder %s470, %s486
      %p488 = scmp.eq.s32.totalorder %s33, 0
      %p489 = por %p487, %p488
      %s491 = sadd.s32 %s490, 1
      %p494 = scmp.eq.s32.totalorder %s27, 1
      %p495 = scmp.ne.s32.totalorder %s490, %s492
      %p496 = scmp.eq.s32.totalorder %s27, 0
      %p497 = por %p495, %p496
      %p498 = scmp.ne.s32.totalorder %s490, %s492
      %p499 = scmp.eq.s32.totalorder %s32, 1
      %p500 = por %p498, %p499
      %p501 = scmp.ne.s32.totalorder %s492, %s493
      %p502 = scmp.eq.s32.totalorder %s32, 0
      %p503 = por %p501, %p502
      %p504 = scmp.ne.s32.totalorder %s492, %s493
      %p505 = scmp.eq.s32.totalorder %s33, 1
      %p506 = por %p504, %p505
      %p508 = scmp.ne.s32.totalorder %s493, %s507
      %p509 = scmp.eq.s32.totalorder %s33, 0
      %p510 = por %p508, %p509
      %s512 = sadd.s32 %s511, 1
      %p515 = scmp.eq.s32.totalorder %s27, 1
      %p516 = scmp.ne.s32.totalorder %s511, %s513
      %p517 = scmp.eq.s32.totalorder %s27, 0
      %p518 = por %p516, %p517
      %p519 = scmp.ne.s32.totalorder %s511, %s513
      %p520 = scmp.eq.s32.totalorder %s32, 1
      %p521 = por %p519, %p520
      %p522 = scmp.ne.s32.totalorder %s513, %s514
      %p523 = scmp.eq.s32.totalorder %s32, 0
      %p524 = por %p522, %p523
      %p525 = scmp.ne.s32.totalorder %s513, %s514
      %p526 = scmp.eq.s32.totalorder %s33, 1
      %p527 = por %p525, %p526
      %p529 = scmp.ne.s32.totalorder %s514, %s528
      %p530 = scmp.eq.s32.totalorder %s33, 0
      %p531 = por %p529, %p530
      %s532 = ssub.s32 %s34, %s46
      %p533 = scmp.eq.s32.totalorder %s532, 0
      %s535 = sadd.s32 %s534, 1
      %s536 = scalar_select %p533, %s534, %s535
      %p539 = pneg %p533
      %p540 = scmp.eq.s32.totalorder %s27, 1
      %p541 = por %p539, %p540
      %p542 = scmp.ne.s32.totalorder %s534, %s537
      %p543 = scmp.eq.s32.totalorder %s27, 0
      %p544 = por %p542, %p543
      %p545 = scmp.ne.s32.totalorder %s534, %s537
      %p546 = scmp.eq.s32.totalorder %s32, 1
      %p547 = por %p545, %p546
      %p548 = scmp.ne.s32.totalorder %s537, %s538
      %p549 = scmp.eq.s32.totalorder %s32, 0
      %p550 = por %p548, %p549
      %p551 = scmp.ne.s32.totalorder %s537, %s538
      %p552 = scmp.eq.s32.totalorder %s33, 1
      %p553 = por %p551, %p552
      %p555 = scmp.ne.s32.totalorder %s538, %s554
      %p556 = scmp.eq.s32.totalorder %s33, 0
      %p557 = por %p555, %p556
      %p558 = scmp.le.s32.totalorder 1, %s27
      %p559 = scmp.lt.s32.totalorder %s27, 3
      %p560 = pnand %p558, %p559
      %p561 = pneg %p560
      // Predicated region
      $region9: #{tpu_custom_call.1} parent=5 // pred_check
        _
      $region10: #{tpu_custom_call.1} parent=5 // pred_check_branch
        %563 = sbr.rel (%p560) target = $region12
      $region11: #{tpu_custom_call.1} parent=5 // pred_region
        %s564 = ssub.s32 %s27, 1
        // Predicated region
        $region13: #{tpu_custom_call.1} parent=11 // pred_check
          %p565 = pneg %p65
        $region14: #{tpu_custom_call.1} parent=11 // pred_check_branch
          %567 = sbr.rel (%p565) target = $region16
        $region15: #{tpu_custom_call.1} parent=11 // pred_region
          %s568 = smul.u32 2, %s36
          %p569 = scmp.lt.s32.totalorder %s568, 1
          %s570 = scalar_select %p569, %s568, 1
          %s571 = smul.addr %s570, 8
          %s572 = scalar_lea.vmem %s0, %s571
          %s573 = smul.u32 2, %s36
        $region16: #{tpu_custom_call.1} parent=11 // pred_fallthru
          _
        // Predicated region
        $region17: #{tpu_custom_call.1} parent=11 // pred_check
          %p574 = pneg %p86
        $region18: #{tpu_custom_call.1} parent=11 // pred_check_branch
          %576 = sbr.rel (%p574) target = $region20
        $region19: #{tpu_custom_call.1} parent=11 // pred_region
          _
        $region20: #{tpu_custom_call.1} parent=11 // pred_fallthru
          _
        // Predicated region
        $region21: #{tpu_custom_call.1} parent=11 // pred_check
          %p577 = pneg %p107
        $region22: #{tpu_custom_call.1} parent=11 // pred_check_branch
          %579 = sbr.rel (%p577) target = $region24
        $region23: #{tpu_custom_call.1} parent=11 // pred_region
          _
        $region24: #{tpu_custom_call.1} parent=11 // pred_fallthru
          _
        // Predicated region
        $region25: #{tpu_custom_call.1} parent=11 // pred_check
          %p580 = pneg %p128
        $region26: #{tpu_custom_call.1} parent=11 // pred_check_branch
          %582 = sbr.rel (%p580) target = $region28
        $region27: #{tpu_custom_call.1} parent=11 // pred_region
          _
        $region28: #{tpu_custom_call.1} parent=11 // pred_fallthru
          _
        // Predicated region
        $region29: #{tpu_custom_call.1} parent=11 // pred_check
          %p583 = pneg %p149
        $region30: #{tpu_custom_call.1} parent=11 // pred_check_branch
          %585 = sbr.rel (%p583) target = $region32
        $region31: #{tpu_custom_call.1} parent=11 // pred_region
          _
        $region32: #{tpu_custom_call.1} parent=11 // pred_fallthru
          _
        // Predicated region
        $region33: #{tpu_custom_call.1} parent=11 // pred_check
          %p586 = pneg %p170
        $region34: #{tpu_custom_call.1} parent=11 // pred_check_branch
          %588 = sbr.rel (%p586) target = $region36
        $region35: #{tpu_custom_call.1} parent=11 // pred_region
          _
        $region36: #{tpu_custom_call.1} parent=11 // pred_fallthru
          _
        // Predicated region
        $region37: #{tpu_custom_call.1} parent=11 // pred_check
          %p589 = pneg %p503
        $region38: #{tpu_custom_call.1} parent=11 // pred_check_branch
          %591 = sbr.rel (%p589) target = $region40
        $region39: #{tpu_custom_call.1} parent=11 // pred_region
          _
        $region40: #{tpu_custom_call.1} parent=11 // pred_fallthru
          _
        // Predicated region
        $region41: #{tpu_custom_call.1} parent=11 // pred_check
          %p592 = pneg %p524
        $region42: #{tpu_custom_call.1} parent=11 // pred_check_branch
          %594 = sbr.rel (%p592) target = $region44
        $region43: #{tpu_custom_call.1} parent=11 // pred_region
          _
        $region44: #{tpu_custom_call.1} parent=11 // pred_fallthru
          _
      $region12: #{tpu_custom_call.1} parent=5 // pred_fallthru
        _
      %p595 = scmp.lt.s32.totalorder %s27, 2
      // Predicated region
      $region45: #{tpu_custom_call.1} parent=5 // pred_check
        %p596 = pneg %p595
      $region46: #{tpu_custom_call.1} parent=5 // pred_check_branch
        %598 = sbr.rel (%p596) target = $region48
      $region47: #{tpu_custom_call.1} parent=5 // pred_region
        // Predicated region
        $region49: #{tpu_custom_call.1} parent=47 // pred_check
          %p599 = pneg %p190
        $region50: #{tpu_custom_call.1} parent=47 // pred_check_branch
          %601 = sbr.rel (%p599) target = $region52
        $region51: #{tpu_custom_call.1} parent=47 // pred_region
          %p602 = scmp.lt.s32.totalorder %s35, 1
          %s603 = scalar_select %p602, %s35, 1
          %s604 = smul.addr %s603, 4
          %s605 = smul.addr %s604, 4
          %s606 = scalar_lea.vmem %s6, %s605
        $region52: #{tpu_custom_call.1} parent=47 // pred_fallthru
          _
        // Predicated region
        $region53: #{tpu_custom_call.1} parent=47 // pred_check
          %p607 = pneg %p216
        $region54: #{tpu_custom_call.1} parent=47 // pred_check_branch
          %609 = sbr.rel (%p607) target = $region56
        $region55: #{tpu_custom_call.1} parent=47 // pred_region
          %p610 = scmp.lt.s32.totalorder %s35, 1
          %s611 = scalar_select %p610, %s35, 1
          %s612 = scalar_lea.vmem %s7, %s611
        $region56: #{tpu_custom_call.1} parent=47 // pred_fallthru
          _
        // Predicated region
        $region57: #{tpu_custom_call.1} parent=47 // pred_check
          %p613 = pneg %p242
        $region58: #{tpu_custom_call.1} parent=47 // pred_check_branch
          %615 = sbr.rel (%p613) target = $region60
        $region59: #{tpu_custom_call.1} parent=47 // pred_region
          %p616 = scmp.lt.s32.totalorder %s35, 1
          %s617 = scalar_select %p616, %s35, 1
          %s618 = smul.addr %s617, 4
          %s619 = smul.addr %s618, 4
          %s620 = scalar_lea.vmem %s8, %s619
        $region60: #{tpu_custom_call.1} parent=47 // pred_fallthru
          _
        // Predicated region
        $region61: #{tpu_custom_call.1} parent=47 // pred_check
          %p621 = pneg %p268
        $region62: #{tpu_custom_call.1} parent=47 // pred_check_branch
          %623 = sbr.rel (%p621) target = $region64
        $region63: #{tpu_custom_call.1} parent=47 // pred_region
          %p624 = scmp.lt.s32.totalorder %s35, 1
          %s625 = scalar_select %p624, %s35, 1
          %s626 = scalar_lea.vmem %s9, %s625
        $region64: #{tpu_custom_call.1} parent=47 // pred_fallthru
          _
        // Predicated region
        $region65: #{tpu_custom_call.1} parent=47 // pred_check
          %p627 = pneg %p294
        $region66: #{tpu_custom_call.1} parent=47 // pred_check_branch
          %629 = sbr.rel (%p627) target = $region68
        $region67: #{tpu_custom_call.1} parent=47 // pred_region
          %p630 = scmp.lt.s32.totalorder %s35, 1
          %s631 = scalar_select %p630, %s35, 1
          %s632 = scalar_lea.vmem %s10, %s631
        $region68: #{tpu_custom_call.1} parent=47 // pred_fallthru
          _
        // Predicated region
        $region69: #{tpu_custom_call.1} parent=47 // pred_check
          %p633 = pneg %p320
        $region70: #{tpu_custom_call.1} parent=47 // pred_check_branch
          %635 = sbr.rel (%p633) target = $region72
        $region71: #{tpu_custom_call.1} parent=47 // pred_region
          %p636 = scmp.lt.s32.totalorder %s35, 1
          %s637 = scalar_select %p636, %s35, 1
          %s638 = scalar_lea.vmem %s11, %s637
        $region72: #{tpu_custom_call.1} parent=47 // pred_fallthru
          _
        // Predicated region
        $region73: #{tpu_custom_call.1} parent=47 // pred_check
          %p639 = pneg %p346
        $region74: #{tpu_custom_call.1} parent=47 // pred_check_branch
          %641 = sbr.rel (%p639) target = $region76
        $region75: #{tpu_custom_call.1} parent=47 // pred_region
          %p642 = scmp.lt.s32.totalorder %s35, 1
          %s643 = scalar_select %p642, %s35, 1
          %s644 = smul.addr %s643, 64
          %s645 = smul.addr %s644, 4
          %s646 = scalar_lea.vmem %s12, %s645
        $region76: #{tpu_custom_call.1} parent=47 // pred_fallthru
          _
        // Predicated region
        $region77: #{tpu_custom_call.1} parent=47 // pred_check
          %p647 = pneg %p372
        $region78: #{tpu_custom_call.1} parent=47 // pred_check_branch
          %649 = sbr.rel (%p647) target = $region80
        $region79: #{tpu_custom_call.1} parent=47 // pred_region
          %p650 = scmp.lt.s32.totalorder %s35, 1
          %s651 = scalar_select %p650, %s35, 1
          %s652 = smul.addr %s651, 16
          %s653 = scalar_lea.vmem %s13, %s652
        $region80: #{tpu_custom_call.1} parent=47 // pred_fallthru
          _
        // Predicated region
        $region81: #{tpu_custom_call.1} parent=47 // pred_check
          %p654 = pneg %p398
        $region82: #{tpu_custom_call.1} parent=47 // pred_check_branch
          %656 = sbr.rel (%p654) target = $region84
        $region83: #{tpu_custom_call.1} parent=47 // pred_region
          %p657 = scmp.lt.s32.totalorder %s35, 1
          %s658 = scalar_select %p657, %s35, 1
          %s659 = smul.addr %s658, 256
          %s660 = smul.addr %s659, 4
          %s661 = scalar_lea.vmem %s14, %s660
        $region84: #{tpu_custom_call.1} parent=47 // pred_fallthru
          _
        // Predicated region
        $region85: #{tpu_custom_call.1} parent=47 // pred_check
          %p662 = pneg %p424
        $region86: #{tpu_custom_call.1} parent=47 // pred_check_branch
          %664 = sbr.rel (%p662) target = $region88
        $region87: #{tpu_custom_call.1} parent=47 // pred_region
          %p665 = scmp.lt.s32.totalorder %s35, 1
          %s666 = scalar_select %p665, %s35, 1
          %s667 = scalar_lea.vmem %s15, %s666
        $region88: #{tpu_custom_call.1} parent=47 // pred_fallthru
          _
        // Predicated region
        $region89: #{tpu_custom_call.1} parent=47 // pred_check
          %p668 = pneg %p450
        $region90: #{tpu_custom_call.1} parent=47 // pred_check_branch
          %670 = sbr.rel (%p668) target = $region92
        $region91: #{tpu_custom_call.1} parent=47 // pred_region
          %p671 = scmp.lt.s32.totalorder %s35, 1
          %s672 = scalar_select %p671, %s35, 1
          %s673 = scalar_lea.vmem %s16, %s672
        $region92: #{tpu_custom_call.1} parent=47 // pred_fallthru
          _
        // Predicated region
        $region93: #{tpu_custom_call.1} parent=47 // pred_check
          %p674 = pneg %p476
        $region94: #{tpu_custom_call.1} parent=47 // pred_check_branch
          %676 = sbr.rel (%p674) target = $region96
        $region95: #{tpu_custom_call.1} parent=47 // pred_region
          %p677 = scmp.lt.s32.totalorder %s35, 1
          %s678 = scalar_select %p677, %s35, 1
          %s679 = scalar_lea.vmem %s17, %s678
        $region96: #{tpu_custom_call.1} parent=47 // pred_fallthru
          _
      $region48: #{tpu_custom_call.1} parent=5 // pred_fallthru
        _
      %p680 = scmp.le.s32.totalorder 1, %s27
      %p681 = scmp.lt.s32.totalorder %s27, 3
      %p682 = pnand %p680, %p681
      %p683 = pneg %p682
      // Predicated region
      $region97: #{tpu_custom_call.1} parent=5 // pred_check
        _
      $region98: #{tpu_custom_call.1} parent=5 // pred_check_branch
        %685 = sbr.rel (%p682) target = $region100
      $region99: #{tpu_custom_call.1} parent=5 // pred_region
        %s686 = ssub.s32 %s27, 1
        %s687 = smul.u32 2, %s36
        %p688 = scmp.lt.s32.totalorder %s687, 1
        %s689 = scalar_select %p688, %s687, 1
        %s690 = smul.addr %s689, 8
        %s691 = scalar_lea.vmem %s0, %s690
        %p692 = pneg %p65
        %p693 = pneg %p62
        %p694 = pneg %p86
        %p695 = pneg %p83
        %p696 = pneg %p107
        %p697 = pneg %p104
        %p698 = pneg %p128
        %p699 = pneg %p125
        %p700 = pneg %p149
        %p701 = pneg %p146
        %p702 = pneg %p170
        %p703 = pneg %p167
        %p704 = scmp.lt.s32.totalorder %s37, 1
        %s705 = scalar_select %p704, %s37, 1
        %s706 = smul.addr %s705, 4
        %s707 = smul.addr %s706, 4
        %s708 = scalar_lea.vmem %s6, %s707
        %p709 = pneg %p196
        %p710 = pneg %p193
        %p711 = scmp.lt.s32.totalorder %s37, 1
        %s712 = scalar_select %p711, %s37, 1
        %s713 = scalar_lea.vmem %s7, %s712
        %p714 = pneg %p222
        %p715 = pneg %p219
        %p716 = scmp.lt.s32.totalorder %s37, 1
        %s717 = scalar_select %p716, %s37, 1
        %s718 = smul.addr %s717, 4
        %s719 = smul.addr %s718, 4
        %s720 = scalar_lea.vmem %s8, %s719
        %p721 = pneg %p248
        %p722 = pneg %p245
        %p723 = scmp.lt.s32.totalorder %s37, 1
        %s724 = scalar_select %p723, %s37, 1
        %s725 = scalar_lea.vmem %s9, %s724
        %p726 = pneg %p274
        %p727 = pneg %p271
        %p728 = scmp.lt.s32.totalorder %s37, 1
        %s729 = scalar_select %p728, %s37, 1
        %s730 = scalar_lea.vmem %s10, %s729
        %p731 = pneg %p300
        %p732 = pneg %p297
        %p733 = scmp.lt.s32.totalorder %s37, 1
        %s734 = scalar_select %p733, %s37, 1
        %s735 = scalar_lea.vmem %s11, %s734
        %p736 = pneg %p326
        %p737 = pneg %p323
        %p738 = scmp.lt.s32.totalorder %s37, 1
        %s739 = scalar_select %p738, %s37, 1
        %s740 = smul.addr %s739, 64
        %s741 = smul.addr %s740, 4
        %s742 = scalar_lea.vmem %s12, %s741
        %p743 = pneg %p352
        %p744 = pneg %p349
        %p745 = scmp.lt.s32.totalorder %s37, 1
        %s746 = scalar_select %p745, %s37, 1
        %s747 = smul.addr %s746, 16
        %s748 = scalar_lea.vmem %s13, %s747
        %p749 = pneg %p378
        %p750 = pneg %p375
        %p751 = scmp.lt.s32.totalorder %s37, 1
        %s752 = scalar_select %p751, %s37, 1
        %s753 = smul.addr %s752, 256
        %s754 = smul.addr %s753, 4
        %s755 = scalar_lea.vmem %s14, %s754
        %p756 = pneg %p404
        %p757 = pneg %p401
        %p758 = scmp.lt.s32.totalorder %s37, 1
        %s759 = scalar_select %p758, %s37, 1
        %s760 = scalar_lea.vmem %s15, %s759
        %p761 = pneg %p430
        %p762 = pneg %p427
        %p763 = scmp.lt.s32.totalorder %s37, 1
        %s764 = scalar_select %p763, %s37, 1
        %s765 = scalar_lea.vmem %s16, %s764
        %p766 = pneg %p456
        %p767 = pneg %p453
        %p768 = scmp.lt.s32.totalorder %s37, 1
        %s769 = scalar_select %p768, %s37, 1
        %s770 = scalar_lea.vmem %s17, %s769
        %p771 = pneg %p482
        %p772 = pneg %p479
        %p773 = pneg %p503
        %p774 = pneg %p500
        %p775 = pneg %p524
        %p776 = pneg %p521
        %p777 = pneg %p550
        %p778 = pneg %p547
        %s779 = smul.u32 2, %s36
        %p780 = scmp.lt.s32.totalorder %s779, 1
        %s781 = scalar_select %p780, %s779, 1
        %s782 = smul.addr %s781, 8
        %s783 = scalar_lea.vmem %s0, %s782
        %s784 = smul.u32 2, %s36
        %p785 = scmp.lt.s32.totalorder %s37, 1
        %s786 = scalar_select %p785, %s37, 1
        %s787 = smul.addr %s786, 4
        %s788 = smul.addr %s787, 4
        %s789 = scalar_lea.vmem %s6, %s788
        %p790 = scmp.lt.s32.totalorder %s37, 1
        %s791 = scalar_select %p790, %s37, 1
        %s792 = scalar_lea.vmem %s7, %s791
        %p793 = scmp.lt.s32.totalorder %s37, 1
        %s794 = scalar_select %p793, %s37, 1
        %s795 = smul.addr %s794, 4
        %s796 = smul.addr %s795, 4
        %s797 = scalar_lea.vmem %s8, %s796
        %p798 = scmp.lt.s32.totalorder %s37, 1
        %s799 = scalar_select %p798, %s37, 1
        %s800 = scalar_lea.vmem %s9, %s799
        %p801 = scmp.lt.s32.totalorder %s37, 1
        %s802 = scalar_select %p801, %s37, 1
        %s803 = scalar_lea.vmem %s10, %s802
        %p804 = scmp.lt.s32.totalorder %s37, 1
        %s805 = scalar_select %p804, %s37, 1
        %s806 = scalar_lea.vmem %s11, %s805
        %p807 = scmp.lt.s32.totalorder %s37, 1
        %s808 = scalar_select %p807, %s37, 1
        %s809 = smul.addr %s808, 64
        %s810 = smul.addr %s809, 4
        %s811 = scalar_lea.vmem %s12, %s810
        %p812 = scmp.lt.s32.totalorder %s37, 1
        %s813 = scalar_select %p812, %s37, 1
        %s814 = smul.addr %s813, 16
        %s815 = scalar_lea.vmem %s13, %s814
        %p816 = scmp.lt.s32.totalorder %s37, 1
        %s817 = scalar_select %p816, %s37, 1
        %s818 = smul.addr %s817, 256
        %s819 = smul.addr %s818, 4
        %s820 = scalar_lea.vmem %s14, %s819
        %p821 = scmp.lt.s32.totalorder %s37, 1
        %s822 = scalar_select %p821, %s37, 1
        %s823 = scalar_lea.vmem %s15, %s822
        %p824 = scmp.lt.s32.totalorder %s37, 1
        %s825 = scalar_select %p824, %s37, 1
        %s826 = scalar_lea.vmem %s16, %s825
        %p827 = scmp.lt.s32.totalorder %s37, 1
        %s828 = scalar_select %p827, %s37, 1
        %s829 = scalar_lea.vmem %s17, %s828
        %s830 = smul.u32 2, %s36
        %p832 = scmp.eq.s32.totalorder %s37, 0
        // Predicated region
        $region101: #{tpu_custom_call.1} parent=99 // pred_check
          %p833 = pneg %p832
        $region102: #{tpu_custom_call.1} parent=99 // pred_check_branch
          %835 = sbr.rel (%p833) target = $region104
        $region103: #{tpu_custom_call.1} parent=99 // pred_region
          %v836 = vld [vmem:[%s1] sm:$0x1]
          %v838 = vlaneseq
          %v839 = vshrl.u32 %v838, 7
          %v840 = vsub.s32 0, %v839
          %v841 = vrot.slane %v836, %v840
          %vm843 = vcmask 261120
          %844 = vst.msk [vmem:[#allocation2] sm:$0xff] %vm843, %v841
          %845 = vst.msk [vmem:[#allocation2 + $0x8] sm:$0xff] %vm843, %v841
          %v846 = vld [vmem:[%s783] sm:$0xff]
          %v847 = vld [vmem:[%s783 + $0x8] sm:$0xff]
          %v848 = vld [vmem:[%s2] sm:$0xf]
          %v849 = vld [vmem:[%s2 + $0x4] sm:$0xf]
          %v850 = vpack.c.bf16 %v847, %v846
          %v851 = vld [vmem:[%s3] sm:$0x1]
          %v853 = vlaneseq
          %v854 = vshrl.u32 %v853, 7
          %v855 = vsub.s32 0, %v854
          %v856 = vrot.slane %v851, %v855
          %v860 = vunpack.c.l.b16 %v848
          %v861 = vunpack.c.l.b16 %v849
          %v862 = vpack.c.b16 %v861, %v860
          %vm864 = vcmask 130048
          %v866 = vsel %vm864, %v850, 0
          %868 = vmatprep.subr.bf16.mxu0 0
          %869 = vmatpush1.bf16.msra.mxu0 %v862
          %870 = vmatprep.subr.bf16.mxu0 0
          %871 = vmatpush1.bf16.msra.mxu0 0
          %872 = vmatprep.subr.bf16.mxu0 0
          %873 = vmatpush1.bf16.msra.mxu0 0
          %874 = vmatprep.subr.bf16.mxu0 0
          %875 = vmatpush1.bf16.msra.mxu0 0
          %876 = vmatprep.subr.bf16.mxu0 0
          %877 = vmatpush1.bf16.msra.mxu0 0
          %878 = vmatprep.subr.bf16.mxu0 0
          %879 = vmatpush1.bf16.msra.mxu0 0
          %880 = vmatprep.subr.bf16.mxu0 0
          %881 = vmatpush1.bf16.msra.mxu0 0
          %882 = vmatprep.subr.bf16.mxu0 0
          %883 = vmatpush1.bf16.msra.mxu0 0
          %884 = vmatprep.subr.bf16.mxu0 0
          %885 = vmatpush1.bf16.msra.mxu0 0
          %886 = vmatprep.subr.bf16.mxu0 0
          %887 = vmatpush1.bf16.msra.mxu0 0
          %888 = vmatprep.subr.bf16.mxu0 0
          %889 = vmatpush1.bf16.msra.mxu0 0
          %890 = vmatprep.subr.bf16.mxu0 0
          %891 = vmatpush1.bf16.msra.mxu0 0
          %892 = vmatprep.subr.bf16.mxu0 0
          %893 = vmatpush1.bf16.msra.mxu0 0
          %894 = vmatprep.subr.bf16.mxu0 0
          %895 = vmatpush1.bf16.msra.mxu0 0
          %896 = vmatprep.subr.bf16.mxu0 0
          %897 = vmatpush1.bf16.msra.mxu0 0
          %898 = vmatprep.subr.bf16.mxu0 0
          %899 = vmatpush1.bf16.msra.mxu0 0
          %900 = vmatprep.mubr.bf16.mxu0 0
          %901 = vmatmul.mubr.bf16.gmra.mrb[0].mxu0 %v866
          %v902 = vpop.f32.mrb[0].mxu0
          %v903 = vadd.f32 %v856, %v902
          %v904 = vpop.f32.mrb[0].mxu0
          %v905 = vpop.f32.mrb[0].mxu0
          %v906 = vadd.f32 %v856, %v905
          %v907 = vpop.f32.mrb[0].mxu0
          %908 = vdwg.mxu0
          %909 = vst.msk [vmem:[#allocation2 + $0x10] sm:$0xff] %vm843, %v903
          %910 = vst.msk [vmem:[#allocation2 + $0x18] sm:$0xff] %vm843, %v906
        $region104: #{tpu_custom_call.1} parent=99 // pred_fallthru
          _
        %v911 = vld [vmem:[#allocation2] sm:$0xff]
        %v912 = vld [vmem:[#allocation2 + $0x8] sm:$0xff]
        %v913 = vld [vmem:[#allocation2 + $0x10] sm:$0xff]
        %v914 = vld [vmem:[#allocation2 + $0x18] sm:$0xff]
        %v915 = vld [vmem:[%s789] sm:$0xf]
        %v916 = vld [vmem:[%s789 + $0x4] sm:$0xf]
        %v917 = vld [vmem:[%s789 + $0x8] sm:$0xf]
        %v918 = vld [vmem:[%s789 + $0xc] sm:$0xf]
        %v919 = vpack.c.bf16 %v912, %v911
        %v920 = vpack.c.bf16 %v914, %v913
        %v921 = vld [vmem:[%s792] sm:$0x1]
        %v923 = vlaneseq
        %v924 = vshrl.u32 %v923, 7
        %v925 = vsub.s32 0, %v924
        %v926 = vrot.slane %v921, %v925
        %v932 = vunpack.c.l.b16 %v915
        %v933 = vunpack.c.l.b16 %v916
        %v934 = vunpack.c.l.b16 %v917
        %v935 = vunpack.c.l.b16 %v918
        %v936 = vpack.c.b16 %v933, %v932
        %v937 = vpack.c.b16 %v935, %v934
        %vm940 = vcmask 261120
        %v942 = vsel %vm940, %v919, 0
        %v945 = vsel %vm940, %v920, 0
        %947 = vmatprep.subr.bf16.mxu0 0
        %948 = vmatpush1.bf16.msra.mxu0 %v936
        %949 = vmatprep.subr.bf16.mxu0 0
        %950 = vmatpush1.bf16.msra.mxu0 %v937
        %951 = vmatprep.subr.bf16.mxu0 0
        %952 = vmatpush1.bf16.msra.mxu0 0
        %953 = vmatprep.subr.bf16.mxu0 0
        %954 = vmatpush1.bf16.msra.mxu0 0
        %955 = vmatprep.subr.bf16.mxu0 0
        %956 = vmatpush1.bf16.msra.mxu0 0
        %957 = vmatprep.subr.bf16.mxu0 0
        %958 = vmatpush1.bf16.msra.mxu0 0
        %959 = vmatprep.subr.bf16.mxu0 0
        %960 = vmatpush1.bf16.msra.mxu0 0
        %961 = vmatprep.subr.bf16.mxu0 0
        %962 = vmatpush1.bf16.msra.mxu0 0
        %963 = vmatprep.subr.bf16.mxu0 0
        %964 = vmatpush1.bf16.msra.mxu0 0
        %965 = vmatprep.subr.bf16.mxu0 0
        %966 = vmatpush1.bf16.msra.mxu0 0
        %967 = vmatprep.subr.bf16.mxu0 0
        %968 = vmatpush1.bf16.msra.mxu0 0
        %969 = vmatprep.subr.bf16.mxu0 0
        %970 = vmatpush1.bf16.msra.mxu0 0
        %971 = vmatprep.subr.bf16.mxu0 0
        %972 = vmatpush1.bf16.msra.mxu0 0
        %973 = vmatprep.subr.bf16.mxu0 0
        %974 = vmatpush1.bf16.msra.mxu0 0
        %975 = vmatprep.subr.bf16.mxu0 0
        %976 = vmatpush1.bf16.msra.mxu0 0
        %977 = vmatprep.subr.bf16.mxu0 0
        %978 = vmatpush1.bf16.msra.mxu0 0
        %979 = vmatprep.mubr.bf16.mxu0 0
        %980 = vmatmul.mubr.bf16.gmra.mrb[0].mxu0 %v942
        %v981 = vpop.f32.mrb[0].mxu0
        %v982 = vadd.f32 %v926, %v981
        %v983 = vpop.f32.mrb[0].mxu0
        %v984 = vpop.f32.mrb[0].mxu0
        %v985 = vadd.f32 %v926, %v984
        %v986 = vpop.f32.mrb[0].mxu0
        %987 = vmatprep.mubr.bf16.mxu0 0
        %988 = vmatmul.mubr.bf16.gmra.mrb[0].mxu0 %v945
        %v989 = vpop.f32.mrb[0].mxu0
        %v990 = vadd.f32 %v926, %v989
        %v991 = vpop.f32.mrb[0].mxu0
        %v992 = vpop.f32.mrb[0].mxu0
        %v993 = vadd.f32 %v926, %v992
        %v994 = vpop.f32.mrb[0].mxu0
        %995 = vdwg.mxu0
        %v996 = vld [vmem:[%s4] sm:$0xf]
        %v997 = vld [vmem:[%s4 + $0x4] sm:$0xf]
        %v998 = vld [vmem:[%s4 + $0x8] sm:$0xf]
        %v999 = vld [vmem:[%s4 + $0xc] sm:$0xf]
        %v1000 = vld [vmem:[%s5] sm:$0x3]
        %p1001 = scmp.lt.s32.totalorder %s37, 1
        // Predicated region
        $region105: #{tpu_custom_call.1} parent=99 // pred_check
          %p1002 = pneg %p1001
        $region106: #{tpu_custom_call.1} parent=99 // pred_check_branch
          %1004 = sbr.rel (%p1002) target = $region108
        $region107: #{tpu_custom_call.1} parent=99 // pred_region
          %1007 = vrot.lane.b32.xlu0 %v982, 96
          %v1008 = vpop.permute.xlu0 %1007
          %1009 = vrot.lane.b32.xlu0 %v985, 96
          %v1010 = vpop.permute.xlu0 %1009
          %v1013 = vmul.f32 %v982, %v1008
          %v1014 = vmul.f32 %v985, %v1010
          %1017 = vrot.lane.b32.xlu0 %v990, 96
          %v1018 = vpop.permute.xlu0 %1017
          %1019 = vrot.lane.b32.xlu0 %v993, 96
          %v1020 = vpop.permute.xlu0 %1019
          %v1023 = vmul.f32 %v982, %v1018
          %v1024 = vmul.f32 %v985, %v1020
          %v1025 = vmul.f32 %v990, %v1008
          %v1026 = vmul.f32 %v993, %v1010
          %v1027 = vmul.f32 %v990, %v1018
          %v1028 = vmul.f32 %v993, %v1020
          %v1029 = vpack.c.bf16 %v1014, %v1013
          %v1030 = vpack.c.bf16 %v1024, %v1023
          %v1031 = vpack.c.bf16 %v1026, %v1025
          %v1032 = vpack.c.bf16 %v1028, %v1027
          %v1037 = vunpack.c.l.b16 %v996
          %v1038 = vunpack.c.l.b16 %v997
          %v1039 = vunpack.c.l.b16 %v998
          %v1040 = vunpack.c.l.b16 %v999
          %v1041 = vpack.c.b16 %v1038, %v1037
          %v1042 = vpack.c.b16 %v1040, %v1039
          %v1046 = vsel %vm940, %v1029, 0
          %v1049 = vsel %vm940, %v1030, 0
          %v1052 = vsel %vm940, %v1031, 0
          %v1055 = vsel %vm940, %v1032, 0
          %1057 = vmatprep.subr.bf16.mxu0 0
          %1058 = vmatpush1.bf16.msra.mxu0 %v1041
          %1059 = vmatprep.subr.bf16.mxu0 0
          %1060 = vmatpush1.bf16.msra.mxu0 %v1042
          %1061 = vmatprep.subr.bf16.mxu0 0
          %1062 = vmatpush1.bf16.msra.mxu0 0
          %1063 = vmatprep.subr.bf16.mxu0 0
          %1064 = vmatpush1.bf16.msra.mxu0 0
          %1065 = vmatprep.subr.bf16.mxu0 0
          %1066 = vmatpush1.bf16.msra.mxu0 0
          %1067 = vmatprep.subr.bf16.mxu0 0
          %1068 = vmatpush1.bf16.msra.mxu0 0
          %1069 = vmatprep.subr.bf16.mxu0 0
          %1070 = vmatpush1.bf16.msra.mxu0 0
          %1071 = vmatprep.subr.bf16.mxu0 0
          %1072 = vmatpush1.bf16.msra.mxu0 0
          %1073 = vmatprep.subr.bf16.mxu0 0
          %1074 = vmatpush1.bf16.msra.mxu0 0
          %1075 = vmatprep.subr.bf16.mxu0 0
          %1076 = vmatpush1.bf16.msra.mxu0 0
          %1077 = vmatprep.subr.bf16.mxu0 0
          %1078 = vmatpush1.bf16.msra.mxu0 0
          %1079 = vmatprep.subr.bf16.mxu0 0
          %1080 = vmatpush1.bf16.msra.mxu0 0
          %1081 = vmatprep.subr.bf16.mxu0 0
          %1082 = vmatpush1.bf16.msra.mxu0 0
          %1083 = vmatprep.subr.bf16.mxu0 0
          %1084 = vmatpush1.bf16.msra.mxu0 0
          %1085 = vmatprep.subr.bf16.mxu0 0
          %1086 = vmatpush1.bf16.msra.mxu0 0
          %1087 = vmatprep.subr.bf16.mxu0 0
          %1088 = vmatpush1.bf16.msra.mxu0 0
          %1089 = vmatprep.mubr.bf16.mxu0 0
          %1090 = vmatmul.mubr.bf16.gmra.mrb[0].mxu0 %v1046
          %v1091 = vpop.f32.mrb[0].mxu0
          %v1092 = vadd.f32 0.0, %v1091
          %v1093 = vpop.f32.mrb[0].mxu0
          %v1094 = vpop.f32.mrb[0].mxu0
          %v1095 = vadd.f32 0.0, %v1094
          %v1096 = vpop.f32.mrb[0].mxu0
          %1097 = vmatprep.mubr.bf16.mxu0 0
          %1098 = vmatmul.mubr.bf16.gmra.mrb[0].mxu0 %v1049
          %v1099 = vpop.f32.mrb[0].mxu0
          %v1100 = vadd.f32 0.0, %v1099
          %v1101 = vpop.f32.mrb[0].mxu0
          %v1102 = vpop.f32.mrb[0].mxu0
          %v1103 = vadd.f32 0.0, %v1102
          %v1104 = vpop.f32.mrb[0].mxu0
          %1105 = vmatprep.mubr.bf16.mxu0 0
          %1106 = vmatmul.mubr.bf16.gmra.mrb[0].mxu0 %v1052
          %v1107 = vpop.f32.mrb[0].mxu0
          %v1108 = vadd.f32 0.0, %v1107
          %v1109 = vpop.f32.mrb[0].mxu0
          %v1110 = vpop.f32.mrb[0].mxu0
          %v1111 = vadd.f32 0.0, %v1110
          %v1112 = vpop.f32.mrb[0].mxu0
          %1113 = vmatprep.mubr.bf16.mxu0 0
          %1114 = vmatmul.mubr.bf16.gmra.mrb[0].mxu0 %v1055
          %v1115 = vpop.f32.mrb[0].mxu0
          %v1116 = vadd.f32 0.0, %v1115
          %v1117 = vpop.f32.mrb[0].mxu0
          %v1118 = vpop.f32.mrb[0].mxu0
          %v1119 = vadd.f32 0.0, %v1118
          %v1120 = vpop.f32.mrb[0].mxu0
          %1121 = vdwg.mxu0
          %v1122 = vmax.f32 %v1092, %v1100
          %v1123 = vmax.f32 %v1095, %v1103
          %v1124 = vmax.f32 %v1108, %v1116
          %v1125 = vmax.f32 %v1111, %v1119
          %v1126 = vsub.f32 %v1092, %v1122
          %v1127 = vsub.f32 %v1095, %v1123
          %v1128 = vmul.f32 %v1126, 1.442695
          %v1129 = vpow.pop %v1128
          %v1130 = vmul.f32 %v1127, 1.442695
          %v1131 = vpow.pop %v1130
          %v1132 = vsub.f32 %v1100, %v1122
          %v1133 = vsub.f32 %v1103, %v1123
          %v1134 = vmul.f32 %v1132, 1.442695
          %v1135 = vpow.pop %v1134
          %v1136 = vmul.f32 %v1133, 1.442695
          %v1137 = vpow.pop %v1136
          %v1138 = vsub.f32 %v1108, %v1124
          %v1139 = vsub.f32 %v1111, %v1125
          %v1140 = vmul.f32 %v1138, 1.442695
          %v1141 = vpow.pop %v1140
          %v1142 = vmul.f32 %v1139, 1.442695
          %v1143 = vpow.pop %v1142
          %v1144 = vsub.f32 %v1116, %v1124
          %v1145 = vsub.f32 %v1119, %v1125
          %v1146 = vmul.f32 %v1144, 1.442695
          %v1147 = vpow.pop %v1146
          %v1148 = vmul.f32 %v1145, 1.442695
          %v1149 = vpow.pop %v1148
          %v1150 = vadd.f32 %v1129, %v1135
          %v1151 = vadd.f32 %v1131, %v1137
          %v1152 = vadd.f32 %v1141, %v1147
          %v1153 = vadd.f32 %v1143, %v1149
          %v1154 = vrcp.pop %v1150
          %v1155 = vmul.f32 %v1129, %v1154
          %v1156 = vrcp.pop %v1151
          %v1157 = vmul.f32 %v1131, %v1156
          %v1158 = vmul.f32 %v1135, %v1154
          %v1159 = vmul.f32 %v1137, %v1156
          %v1160 = vrcp.pop %v1152
          %v1161 = vmul.f32 %v1141, %v1160
          %v1162 = vrcp.pop %v1153
          %v1163 = vmul.f32 %v1143, %v1162
          %v1164 = vmul.f32 %v1147, %v1160
          %v1165 = vmul.f32 %v1149, %v1162
          %v1166 = vpack.c.bf16 %v1157, %v1155
          %v1167 = vpack.c.bf16 %v1159, %v1158
          %v1168 = vpack.c.bf16 %v1163, %v1161
          %v1169 = vpack.c.bf16 %v1165, %v1164
          %vm1170 = vcmask 31744
          %v1172 = vsel %vm1170, %v1166, 0
          %v1175 = vsel %vm1170, %v1167, 0
          %v1178 = vsel %vm1170, %v1168, 0
          %v1181 = vsel %vm1170, %v1169, 0
          %vm1183 = vcmask 1041408
          %v1185 = vsel %vm1183, %v1000, 0
          %1187 = vmatprep.subr.bf16.mxu0 0
          %1188 = vmatpush1.bf16.msra.mxu0 %v1185
          %1189 = vmatprep.subr.bf16.mxu0 0
          %1190 = vmatpush1.bf16.msra.mxu0 0
          %1191 = vmatprep.subr.bf16.mxu0 0
          %1192 = vmatpush1.bf16.msra.mxu0 0
          %1193 = vmatprep.subr.bf16.mxu0 0
          %1194 = vmatpush1.bf16.msra.mxu0 0
          %1195 = vmatprep.subr.bf16.mxu0 0
          %1196 = vmatpush1.bf16.msra.mxu0 0
          %1197 = vmatprep.subr.bf16.mxu0 0
          %1198 = vmatpush1.bf16.msra.mxu0 0
          %1199 = vmatprep.subr.bf16.mxu0 0
          %1200 = vmatpush1.bf16.msra.mxu0 0
          %1201 = vmatprep.subr.bf16.mxu0 0
          %1202 = vmatpush1.bf16.msra.mxu0 0
          %1203 = vmatprep.subr.bf16.mxu0 0
          %1204 = vmatpush1.bf16.msra.mxu0 0
          %1205 = vmatprep.subr.bf16.mxu0 0
          %1206 = vmatpush1.bf16.msra.mxu0 0
          %1207 = vmatprep.subr.bf16.mxu0 0
          %1208 = vmatpush1.bf16.msra.mxu0 0
          %1209 = vmatprep.subr.bf16.mxu0 0
          %1210 = vmatpush1.bf16.msra.mxu0 0
          %1211 = vmatprep.subr.bf16.mxu0 0
          %1212 = vmatpush1.bf16.msra.mxu0 0
          %1213 = vmatprep.subr.bf16.mxu0 0
          %1214 = vmatpush1.bf16.msra.mxu0 0
          %1215 = vmatprep.subr.bf16.mxu0 0
          %1216 = vmatpush1.bf16.msra.mxu0 0
          %1217 = vmatprep.subr.bf16.mxu0 0
          %1218 = vmatpush1.bf16.msra.mxu0 0
          %1219 = vmatprep.mubr.bf16.mxu0 0
          %1220 = vmatmul.mubr.bf16.gmra.mrb[0].mxu0 %v1172
          %v1221 = vpop.f32.mrb[0].mxu0
          %v1222 = vadd.f32 0.0, %v1221
          %v1223 = vpop.f32.mrb[0].mxu0
          %v1224 = vpop.f32.mrb[0].mxu0
          %v1225 = vadd.f32 0.0, %v1224
          %v1226 = vpop.f32.mrb[0].mxu0
          %1227 = vmatprep.mubr.bf16.mxu0 0
          %1228 = vmatmul.mubr.bf16.gmra.mrb[0].mxu0 %v1175
          %v1229 = vpop.f32.mrb[0].mxu0
          %v1230 = vadd.f32 0.0, %v1229
          %v1231 = vpop.f32.mrb[0].mxu0
          %v1232 = vpop.f32.mrb[0].mxu0
          %v1233 = vadd.f32 0.0, %v1232
          %v1234 = vpop.f32.mrb[0].mxu0
          %1235 = vmatprep.mubr.bf16.mxu0 0
          %1236 = vmatmul.mubr.bf16.gmra.mrb[0].mxu0 %v1178
          %v1237 = vpop.f32.mrb[0].mxu0
          %v1238 = vadd.f32 0.0, %v1237
          %v1239 = vpop.f32.mrb[0].mxu0
          %v1240 = vpop.f32.mrb[0].mxu0
          %v1241 = vadd.f32 0.0, %v1240
          %v1242 = vpop.f32.mrb[0].mxu0
          %1243 = vmatprep.mubr.bf16.mxu0 0
          %1244 = vmatmul.mubr.bf16.gmra.mrb[0].mxu0 %v1181
          %v1245 = vpop.f32.mrb[0].mxu0
          %v1246 = vadd.f32 0.0, %v1245
          %v1247 = vpop.f32.mrb[0].mxu0
          %v1248 = vpop.f32.mrb[0].mxu0
          %v1249 = vadd.f32 0.0, %v1248
          %v1250 = vpop.f32.mrb[0].mxu0
          %1251 = vdwg.mxu0
          %1252 = vrot.lane.b32.xlu0 %v982, 64
          %v1253 = vpop.permute.xlu0 %1252
          %1254 = vrot.lane.b32.xlu0 %v985, 64
          %v1255 = vpop.permute.xlu0 %1254
          %v1258 = vmul.f32 %v1222, %v1253
          %v1259 = vmul.f32 %v1225, %v1255
          %1260 = vrot.lane.b32.xlu0 %v990, 64
          %v1261 = vpop.permute.xlu0 %1260
          %1262 = vrot.lane.b32.xlu0 %v993, 64
          %v1263 = vpop.permute.xlu0 %1262
          %v1266 = vmul.f32 %v1230, %v1261
          %v1267 = vmul.f32 %v1233, %v1263
          %v1268 = vadd.f32 %v1258, %v1266
          %v1269 = vadd.f32 %v1259, %v1267
          %v1270 = vmul.f32 %v1238, %v1253
          %v1271 = vmul.f32 %v1241, %v1255
          %v1272 = vmul.f32 %v1246, %v1261
          %v1273 = vmul.f32 %v1249, %v1263
          %v1274 = vadd.f32 %v1270, %v1272
          %v1275 = vadd.f32 %v1271, %v1273
          %v1276 = vld [vmem:[%s797] sm:$0xf]
          %v1277 = vld [vmem:[%s797 + $0x4] sm:$0xf]
          %v1278 = vld [vmem:[%s797 + $0x8] sm:$0xf]
          %v1279 = vld [vmem:[%s797 + $0xc] sm:$0xf]
          %v1280 = vpack.c.bf16 %v1269, %v1268
          %v1281 = vpack.c.bf16 %v1275, %v1274
          %v1282 = vld [vmem:[%s800] sm:$0x1]
          %v1284 = vlaneseq
          %v1285 = vshrl.u32 %v1284, 7
          %v1286 = vsub.s32 0, %v1285
          %v1287 = vrot.slane %v1282, %v1286
          %v1293 = vunpack.c.l.b16 %v1276
          %v1294 = vunpack.c.l.b16 %v1277
          %v1295 = vunpack.c.l.b16 %v1278
          %v1296 = vunpack.c.l.b16 %v1279
          %v1297 = vpack.c.b16 %v1294, %v1293
          %v1298 = vpack.c.b16 %v1296, %v1295
          %v1302 = vsel %vm940, %v1280, 0
          %v1305 = vsel %vm940, %v1281, 0
          %1307 = vmatprep.subr.bf16.mxu0 0
          %1308 = vmatpush1.bf16.msra.mxu0 %v1297
          %1309 = vmatprep.subr.bf16.mxu0 0
          %1310 = vmatpush1.bf16.msra.mxu0 %v1298
          %1311 = vmatprep.subr.bf16.mxu0 0
          %1312 = vmatpush1.bf16.msra.mxu0 0
          %1313 = vmatprep.subr.bf16.mxu0 0
          %1314 = vmatpush1.bf16.msra.mxu0 0
          %1315 = vmatprep.subr.bf16.mxu0 0
          %1316 = vmatpush1.bf16.msra.mxu0 0
          %1317 = vmatprep.subr.bf16.mxu0 0
          %1318 = vmatpush1.bf16.msra.mxu0 0
          %1319 = vmatprep.subr.bf16.mxu0 0
          %1320 = vmatpush1.bf16.msra.mxu0 0
          %1321 = vmatprep.subr.bf16.mxu0 0
          %1322 = vmatpush1.bf16.msra.mxu0 0
          %1323 = vmatprep.subr.bf16.mxu0 0
          %1324 = vmatpush1.bf16.msra.mxu0 0
          %1325 = vmatprep.subr.bf16.mxu0 0
          %1326 = vmatpush1.bf16.msra.mxu0 0
          %1327 = vmatprep.subr.bf16.mxu0 0
          %1328 = vmatpush1.bf16.msra.mxu0 0
          %1329 = vmatprep.subr.bf16.mxu0 0
          %1330 = vmatpush1.bf16.msra.mxu0 0
          %1331 = vmatprep.subr.bf16.mxu0 0
          %1332 = vmatpush1.bf16.msra.mxu0 0
          %1333 = vmatprep.subr.bf16.mxu0 0
          %1334 = vmatpush1.bf16.msra.mxu0 0
          %1335 = vmatprep.subr.bf16.mxu0 0
          %1336 = vmatpush1.bf16.msra.mxu0 0
          %1337 = vmatprep.subr.bf16.mxu0 0
          %1338 = vmatpush1.bf16.msra.mxu0 0
          %1339 = vmatprep.mubr.bf16.mxu0 0
          %1340 = vmatmul.mubr.bf16.gmra.mrb[0].mxu0 %v1302
          %v1341 = vpop.f32.mrb[0].mxu0
          %v1342 = vadd.f32 %v1287, %v1341
          %v1343 = vpop.f32.mrb[0].mxu0
          %v1344 = vpop.f32.mrb[0].mxu0
          %v1345 = vadd.f32 %v1287, %v1344
          %v1346 = vpop.f32.mrb[0].mxu0
          %1347 = vmatprep.mubr.bf16.mxu0 0
          %1348 = vmatmul.mubr.bf16.gmra.mrb[0].mxu0 %v1305
          %v1349 = vpop.f32.mrb[0].mxu0
          %v1350 = vadd.f32 %v1287, %v1349
          %v1351 = vpop.f32.mrb[0].mxu0
          %v1352 = vpop.f32.mrb[0].mxu0
          %v1353 = vadd.f32 %v1287, %v1352
          %v1354 = vpop.f32.mrb[0].mxu0
          %1355 = vdwg.mxu0
          %v1356 = vadd.f32 %v911, %v1342
          %v1357 = vadd.f32 %v912, %v1345
          %v1358 = vadd.f32 %v913, %v1350
          %v1359 = vadd.f32 %v914, %v1353
          %v1360 = vld [vmem:[%s803] sm:$0x1]
          %v1361 = vld [vmem:[%s806] sm:$0x1]
          %v1362 = vsel %vm940, %v1356, 0.0
          %1363 = vadd.xlane.f32.xlu0 %v1362
          %v1364 = vpop.xlane.xlu0 %1363
          %v1365 = vsel %vm940, %v1357, 0.0
          %1366 = vadd.xlane.f32.xlu0 %v1365
          %v1367 = vpop.xlane.xlu0 %1366
          %v1368 = vsel %vm940, %v1358, 0.0
          %1369 = vadd.xlane.f32.xlu0 %v1368
          %v1370 = vpop.xlane.xlu0 %1369
          %v1371 = vsel %vm940, %v1359, 0.0
          %1372 = vadd.xlane.f32.xlu0 %v1371
          %v1373 = vpop.xlane.xlu0 %1372
          %v1374 = vrcp.pop 32.0
          %v1375 = vmul.f32 %v1364, %v1374
          %v1376 = vmul.f32 %v1367, %v1374
          %v1377 = vmul.f32 %v1370, %v1374
          %v1378 = vmul.f32 %v1373, %v1374
          %v1379 = vsub.f32 %v1356, %v1375
          %v1380 = vsub.f32 %v1357, %v1376
          %v1381 = vsub.f32 %v1358, %v1377
          %v1382 = vsub.f32 %v1359, %v1378
          %v1383 = vmul.f32 %v1379, %v1379
          %v1384 = vmul.f32 %v1380, %v1380
          %v1385 = vmul.f32 %v1381, %v1381
          %v1386 = vmul.f32 %v1382, %v1382
          %v1387 = vsel %vm940, %v1383, 0.0
          %1388 = vadd.xlane.f32.xlu0 %v1387
          %v1389 = vpop.xlane.xlu0 %1388
          %v1390 = vsel %vm940, %v1384, 0.0
          %1391 = vadd.xlane.f32.xlu0 %v1390
          %v1392 = vpop.xlane.xlu0 %1391
          %v1393 = vsel %vm940, %v1385, 0.0
          %1394 = vadd.xlane.f32.xlu0 %v1393
          %v1395 = vpop.xlane.xlu0 %1394
          %v1396 = vsel %vm940, %v1386, 0.0
          %1397 = vadd.xlane.f32.xlu0 %v1396
          %v1398 = vpop.xlane.xlu0 %1397
          %v1399 = vmul.f32 %v1389, %v1374
          %v1400 = vmul.f32 %v1392, %v1374
          %v1401 = vmul.f32 %v1395, %v1374
          %v1402 = vmul.f32 %v1398, %v1374
          %v1403 = vadd.f32 %v1399, 1e-05
          %v1404 = vadd.f32 %v1400, 1e-05
          %v1405 = vadd.f32 %v1401, 1e-05
          %v1406 = vadd.f32 %v1402, 1e-05
          %v1407 = vrsqrt.pop %v1403
          %v1408 = vrsqrt.pop %v1404
          %v1409 = vrsqrt.pop %v1405
          %v1410 = vrsqrt.pop %v1406
          %v1411 = vmul.f32 %v1379, %v1407
          %v1412 = vmul.f32 %v1380, %v1408
          %v1413 = vmul.f32 %v1381, %v1409
          %v1414 = vmul.f32 %v1382, %v1410
          %v1416 = vlaneseq
          %v1417 = vshrl.u32 %v1416, 7
          %v1418 = vsub.s32 0, %v1417
          %v1419 = vrot.slane %v1360, %v1418
          %v1421 = vmul.f32 %v1411, %v1419
          %v1422 = vmul.f32 %v1412, %v1419
          %v1423 = vmul.f32 %v1413, %v1419
          %v1424 = vmul.f32 %v1414, %v1419
          %v1426 = vlaneseq
          %v1427 = vshrl.u32 %v1426, 7
          %v1428 = vsub.s32 0, %v1427
          %v1429 = vrot.slane %v1361, %v1428
          %v1431 = vadd.f32 %v1421, %v1429
          %v1432 = vadd.f32 %v1422, %v1429
          %v1433 = vadd.f32 %v1423, %v1429
          %v1434 = vadd.f32 %v1424, %v1429
          %v1435 = vld [vmem:[%s811] sm:$0xff]
          %v1436 = vld [vmem:[%s811 + $0x8] sm:$0xff]
          %v1437 = vld [vmem:[%s811 + $0x10] sm:$0xff]
          %v1438 = vld [vmem:[%s811 + $0x18] sm:$0xff]
          %v1439 = vld [vmem:[%s811 + $0x20] sm:$0xff]
          %v1440 = vld [vmem:[%s811 + $0x28] sm:$0xff]
          %v1441 = vld [vmem:[%s811 + $0x30] sm:$0xff]
          %v1442 = vld [vmem:[%s811 + $0x38] sm:$0xff]
          %v1443 = vld [vmem:[%s811 + $0x40] sm:$0xff]
          %v1444 = vld [vmem:[%s811 + $0x48] sm:$0xff]
          %v1445 = vld [vmem:[%s811 + $0x50] sm:$0xff]
          %v1446 = vld [vmem:[%s811 + $0x58] sm:$0xff]
          %v1447 = vld [vmem:[%s811 + $0x60] sm:$0xff]
          %v1448 = vld [vmem:[%s811 + $0x68] sm:$0xff]
          %v1449 = vld [vmem:[%s811 + $0x70] sm:$0xff]
          %v1450 = vld [vmem:[%s811 + $0x78] sm:$0xff]
          %v1451 = vld [vmem:[%s811 + $0x80] sm:$0xff]
          %v1452 = vld [vmem:[%s811 + $0x88] sm:$0xff]
          %v1453 = vld [vmem:[%s811 + $0x90] sm:$0xff]
          %v1454 = vld [vmem:[%s811 + $0x98] sm:$0xff]
          %v1455 = vld [vmem:[%s811 + $0xa0] sm:$0xff]
          %v1456 = vld [vmem:[%s811 + $0xa8] sm:$0xff]
          %v1457 = vld [vmem:[%s811 + $0xb0] sm:$0xff]
          %v1458 = vld [vmem:[%s811 + $0xb8] sm:$0xff]
          %v1459 = vld [vmem:[%s811 + $0xc0] sm:$0xff]
          %v1460 = vld [vmem:[%s811 + $0xc8] sm:$0xff]
          %v1461 = vld [vmem:[%s811 + $0xd0] sm:$0xff]
          %v1462 = vld [vmem:[%s811 + $0xd8] sm:$0xff]
          %v1463 = vld [vmem:[%s811 + $0xe0] sm:$0xff]
          %v1464 = vld [vmem:[%s811 + $0xe8] sm:$0xff]
          %v1465 = vld [vmem:[%s811 + $0xf0] sm:$0xff]
          %v1466 = vld [vmem:[%s811 + $0xf8] sm:$0xff]
          %v1467 = vpack.c.bf16 %v1432, %v1431
          %v1468 = vpack.c.bf16 %v1434, %v1433
          %v1469 = vld [vmem:[%s815] sm:$0xff]
          %v1470 = vld [vmem:[%s815 + $0x8] sm:$0xff]
          %v1473 = vlaneseq
          %v1474 = vshrl.u32 %v1473, 7
          %v1475 = vsub.s32 0, %v1474
          %v1476 = vrot.slane %v1469, %v1475
          %v1477 = vlaneseq
          %v1478 = vshrl.u32 %v1477, 7
          %v1479 = vsub.s32 1, %v1478
          %v1480 = vrot.slane %v1469, %v1479
          %v1481 = vlaneseq
          %v1482 = vshrl.u32 %v1481, 7
          %v1483 = vsub.s32 2, %v1482
          %v1484 = vrot.slane %v1469, %v1483
          %v1485 = vlaneseq
          %v1486 = vshrl.u32 %v1485, 7
          %v1487 = vsub.s32 3, %v1486
          %v1488 = vrot.slane %v1469, %v1487
          %v1489 = vlaneseq
          %v1490 = vshrl.u32 %v1489, 7
          %v1491 = vsub.s32 4, %v1490
          %v1492 = vrot.slane %v1469, %v1491
          %v1493 = vlaneseq
          %v1494 = vshrl.u32 %v1493, 7
          %v1495 = vsub.s32 5, %v1494
          %v1496 = vrot.slane %v1469, %v1495
          %v1497 = vlaneseq
          %v1498 = vshrl.u32 %v1497, 7
          %v1499 = vsub.s32 6, %v1498
          %v1500 = vrot.slane %v1469, %v1499
          %v1501 = vlaneseq
          %v1502 = vshrl.u32 %v1501, 7
          %v1503 = vsub.s32 7, %v1502
          %v1504 = vrot.slane %v1469, %v1503
          %v1505 = vlaneseq
          %v1506 = vshrl.u32 %v1505, 7
          %v1507 = vsub.s32 0, %v1506
          %v1508 = vrot.slane %v1470, %v1507
          %v1509 = vlaneseq
          %v1510 = vshrl.u32 %v1509, 7
          %v1511 = vsub.s32 1, %v1510
          %v1512 = vrot.slane %v1470, %v1511
          %v1513 = vlaneseq
          %v1514 = vshrl.u32 %v1513, 7
          %v1515 = vsub.s32 2, %v1514
          %v1516 = vrot.slane %v1470, %v1515
          %v1517 = vlaneseq
          %v1518 = vshrl.u32 %v1517, 7
          %v1519 = vsub.s32 3, %v1518
          %v1520 = vrot.slane %v1470, %v1519
          %v1521 = vlaneseq
          %v1522 = vshrl.u32 %v1521, 7
          %v1523 = vsub.s32 4, %v1522
          %v1524 = vrot.slane %v1470, %v1523
          %v1525 = vlaneseq
          %v1526 = vshrl.u32 %v1525, 7
          %v1527 = vsub.s32 5, %v1526
          %v1528 = vrot.slane %v1470, %v1527
          %v1529 = vlaneseq
          %v1530 = vshrl.u32 %v1529, 7
          %v1531 = vsub.s32 6, %v1530
          %v1532 = vrot.slane %v1470, %v1531
          %v1533 = vlaneseq
          %v1534 = vshrl.u32 %v1533, 7
          %v1535 = vsub.s32 7, %v1534
          %v1536 = vrot.slane %v1470, %v1535
          %v1585 = vunpack.c.l.b16 %v1435
          %v1586 = vunpack.c.h.b16 %v1435
          %v1587 = vunpack.c.l.b16 %v1436
          %v1588 = vunpack.c.h.b16 %v1436
          %v1589 = vunpack.c.l.b16 %v1437
          %v1590 = vunpack.c.h.b16 %v1437
          %v1591 = vunpack.c.l.b16 %v1438
          %v1592 = vunpack.c.h.b16 %v1438
          %v1593 = vunpack.c.l.b16 %v1439
          %v1594 = vunpack.c.h.b16 %v1439
          %v1595 = vunpack.c.l.b16 %v1440
          %v1596 = vunpack.c.h.b16 %v1440
          %v1597 = vunpack.c.l.b16 %v1441
          %v1598 = vunpack.c.h.b16 %v1441
          %v1599 = vunpack.c.l.b16 %v1442
          %v1600 = vunpack.c.h.b16 %v1442
          %v1601 = vunpack.c.l.b16 %v1443
          %v1602 = vunpack.c.h.b16 %v1443
          %v1603 = vunpack.c.l.b16 %v1444
          %v1604 = vunpack.c.h.b16 %v1444
          %v1605 = vunpack.c.l.b16 %v1445
          %v1606 = vunpack.c.h.b16 %v1445
          %v1607 = vunpack.c.l.b16 %v1446
          %v1608 = vunpack.c.h.b16 %v1446
          %v1609 = vunpack.c.l.b16 %v1447
          %v1610 = vunpack.c.h.b16 %v1447
          %v1611 = vunpack.c.l.b16 %v1448
          %v1612 = vunpack.c.h.b16 %v1448
          %v1613 = vunpack.c.l.b16 %v1449
          %v1614 = vunpack.c.h.b16 %v1449
          %v1615 = vunpack.c.l.b16 %v1450
          %v1616 = vunpack.c.h.b16 %v1450
          %v1617 = vunpack.c.l.b16 %v1451
          %v1618 = vunpack.c.h.b16 %v1451
          %v1619 = vunpack.c.l.b16 %v1452
          %v1620 = vunpack.c.h.b16 %v1452
          %v1621 = vunpack.c.l.b16 %v1453
          %v1622 = vunpack.c.h.b16 %v1453
          %v1623 = vunpack.c.l.b16 %v1454
          %v1624 = vunpack.c.h.b16 %v1454
          %v1625 = vunpack.c.l.b16 %v1455
          %v1626 = vunpack.c.h.b16 %v1455
          %v1627 = vunpack.c.l.b16 %v1456
          %v1628 = vunpack.c.h.b16 %v1456
          %v1629 = vunpack.c.l.b16 %v1457
          %v1630 = vunpack.c.h.b16 %v1457
          %v1631 = vunpack.c.l.b16 %v1458
          %v1632 = vunpack.c.h.b16 %v1458
          %v1633 = vunpack.c.l.b16 %v1459
          %v1634 = vunpack.c.h.b16 %v1459
          %v1635 = vunpack.c.l.b16 %v1460
          %v1636 = vunpack.c.h.b16 %v1460
          %v1637 = vunpack.c.l.b16 %v1461
          %v1638 = vunpack.c.h.b16 %v1461
          %v1639 = vunpack.c.l.b16 %v1462
          %v1640 = vunpack.c.h.b16 %v1462
          %v1641 = vunpack.c.l.b16 %v1463
          %v1642 = vunpack.c.h.b16 %v1463
          %v1643 = vunpack.c.l.b16 %v1464
          %v1644 = vunpack.c.h.b16 %v1464
          %v1645 = vunpack.c.l.b16 %v1465
          %v1646 = vunpack.c.h.b16 %v1465
          %v1647 = vunpack.c.l.b16 %v1466
          %v1648 = vunpack.c.h.b16 %v1466
          %v1649 = vpack.c.b16 %v1601, %v1585
          %v1650 = vpack.c.b16 %v1602, %v1586
          %v1651 = vpack.c.b16 %v1603, %v1587
          %v1652 = vpack.c.b16 %v1604, %v1588
          %v1653 = vpack.c.b16 %v1605, %v1589
          %v1654 = vpack.c.b16 %v1606, %v1590
          %v1655 = vpack.c.b16 %v1607, %v1591
          %v1656 = vpack.c.b16 %v1608, %v1592
          %v1657 = vpack.c.b16 %v1609, %v1593
          %v1658 = vpack.c.b16 %v1610, %v1594
          %v1659 = vpack.c.b16 %v1611, %v1595
          %v1660 = vpack.c.b16 %v1612, %v1596
          %v1661 = vpack.c.b16 %v1613, %v1597
          %v1662 = vpack.c.b16 %v1614, %v1598
          %v1663 = vpack.c.b16 %v1615, %v1599
          %v1664 = vpack.c.b16 %v1616, %v1600
          %v1665 = vpack.c.b16 %v1633, %v1617
          %v1666 = vpack.c.b16 %v1634, %v1618
          %v1667 = vpack.c.b16 %v1635, %v1619
          %v1668 = vpack.c.b16 %v1636, %v1620
          %v1669 = vpack.c.b16 %v1637, %v1621
          %v1670 = vpack.c.b16 %v1638, %v1622
          %v1671 = vpack.c.b16 %v1639, %v1623
          %v1672 = vpack.c.b16 %v1640, %v1624
          %v1673 = vpack.c.b16 %v1641, %v1625
          %v1674 = vpack.c.b16 %v1642, %v1626
          %v1675 = vpack.c.b16 %v1643, %v1627
          %v1676 = vpack.c.b16 %v1644, %v1628
          %v1677 = vpack.c.b16 %v1645, %v1629
          %v1678 = vpack.c.b16 %v1646, %v1630
          %v1679 = vpack.c.b16 %v1647, %v1631
          %v1680 = vpack.c.b16 %v1648, %v1632
          %v1714 = vsel %vm940, %v1467, 0
          %v1717 = vsel %vm940, %v1468, 0
          %1719 = vmatprep.subr.bf16.mxu0 %v1650
          %1720 = vmatpush1.bf16.msra.mxu0 %v1649
          %1721 = vmatprep.subr.bf16.mxu0 %v1666
          %1722 = vmatpush1.bf16.msra.mxu0 %v1665
          %1723 = vmatprep.subr.bf16.mxu0 0
          %1724 = vmatpush1.bf16.msra.mxu0 0
          %1725 = vmatprep.subr.bf16.mxu0 0
          %1726 = vmatpush1.bf16.msra.mxu0 0
          %1727 = vmatprep.subr.bf16.mxu0 0
          %1728 = vmatpush1.bf16.msra.mxu0 0
          %1729 = vmatprep.subr.bf16.mxu0 0
          %1730 = vmatpush1.bf16.msra.mxu0 0
          %1731 = vmatprep.subr.bf16.mxu0 0
          %1732 = vmatpush1.bf16.msra.mxu0 0
          %1733 = vmatprep.subr.bf16.mxu0 0
          %1734 = vmatpush1.bf16.msra.mxu0 0
          %1735 = vmatprep.subr.bf16.mxu0 0
          %1736 = vmatpush1.bf16.msra.mxu0 0
          %1737 = vmatprep.subr.bf16.mxu0 0
          %1738 = vmatpush1.bf16.msra.mxu0 0
          %1739 = vmatprep.subr.bf16.mxu0 0
          %1740 = vmatpush1.bf16.msra.mxu0 0
          %1741 = vmatprep.subr.bf16.mxu0 0
          %1742 = vmatpush1.bf16.msra.mxu0 0
          %1743 = vmatprep.subr.bf16.mxu0 0
          %1744 = vmatpush1.bf16.msra.mxu0 0
          %1745 = vmatprep.subr.bf16.mxu0 0
          %1746 = vmatpush1.bf16.msra.mxu0 0
          %1747 = vmatprep.subr.bf16.mxu0 0
          %1748 = vmatpush1.bf16.msra.mxu0 0
          %1749 = vmatprep.subr.bf16.mxu0 0
          %1750 = vmatpush1.bf16.msra.mxu0 0
          %1751 = vmatprep.mubr.bf16.mxu0 0
          %1752 = vmatmul.mubr.bf16.gmra.mrb[0].mxu0 %v1714
          %v1753 = vpop.f32.mrb[0].mxu0
          %v1754 = vadd.f32 %v1476, %v1753
          %v1755 = vpop.f32.mrb[0].mxu0
          %v1756 = vadd.f32 %v1480, %v1755
          %v1757 = vpop.f32.mrb[0].mxu0
          %v1758 = vadd.f32 %v1476, %v1757
          %v1759 = vpop.f32.mrb[0].mxu0
          %v1760 = vadd.f32 %v1480, %v1759
          %1761 = vmatprep.mubr.bf16.mxu0 0
          %1762 = vmatmul.mubr.bf16.gmra.mrb[0].mxu0 %v1717
          %v1763 = vpop.f32.mrb[0].mxu0
          %v1764 = vadd.f32 %v1476, %v1763
          %v1765 = vpop.f32.mrb[0].mxu0
          %v1766 = vadd.f32 %v1480, %v1765
          %v1767 = vpop.f32.mrb[0].mxu0
          %v1768 = vadd.f32 %v1476, %v1767
          %v1769 = vpop.f32.mrb[0].mxu0
          %v1770 = vadd.f32 %v1480, %v1769
          %1771 = vdwg.mxu0
          %1772 = vmatprep.subr.bf16.mxu0 %v1652
          %1773 = vmatpush1.bf16.msra.mxu0 %v1651
          %1774 = vmatprep.subr.bf16.mxu0 %v1668
          %1775 = vmatpush1.bf16.msra.mxu0 %v1667
          %1776 = vmatprep.subr.bf16.mxu0 0
          %1777 = vmatpush1.bf16.msra.mxu0 0
          %1778 = vmatprep.subr.bf16.mxu0 0
          %1779 = vmatpush1.bf16.msra.mxu0 0
          %1780 = vmatprep.subr.bf16.mxu0 0
          %1781 = vmatpush1.bf16.msra.mxu0 0
          %1782 = vmatprep.subr.bf16.mxu0 0
          %1783 = vmatpush1.bf16.msra.mxu0 0
          %1784 = vmatprep.subr.bf16.mxu0 0
          %1785 = vmatpush1.bf16.msra.mxu0 0
          %1786 = vmatprep.subr.bf16.mxu0 0
          %1787 = vmatpush1.bf16.msra.mxu0 0
          %1788 = vmatprep.subr.bf16.mxu0 0
          %1789 = vmatpush1.bf16.msra.mxu0 0
          %1790 = vmatprep.subr.bf16.mxu0 0
          %1791 = vmatpush1.bf16.msra.mxu0 0
          %1792 = vmatprep.subr.bf16.mxu0 0
          %1793 = vmatpush1.bf16.msra.mxu0 0
          %1794 = vmatprep.subr.bf16.mxu0 0
          %1795 = vmatpush1.bf16.msra.mxu0 0
          %1796 = vmatprep.subr.bf16.mxu0 0
          %1797 = vmatpush1.bf16.msra.mxu0 0
          %1798 = vmatprep.subr.bf16.mxu0 0
          %1799 = vmatpush1.bf16.msra.mxu0 0
          %1800 = vmatprep.subr.bf16.mxu0 0
          %1801 = vmatpush1.bf16.msra.mxu0 0
          %1802 = vmatprep.subr.bf16.mxu0 0
          %1803 = vmatpush1.bf16.msra.mxu0 0
          %1804 = vmatprep.mubr.bf16.mxu0 0
          %1805 = vmatmul.mubr.bf16.gmra.mrb[0].mxu0 %v1714
          %v1806 = vpop.f32.mrb[0].mxu0
          %v1807 = vadd.f32 %v1484, %v1806
          %v1808 = vpop.f32.mrb[0].mxu0
          %v1809 = vadd.f32 %v1488, %v1808
          %v1810 = vpop.f32.mrb[0].mxu0
          %v1811 = vadd.f32 %v1484, %v1810
          %v1812 = vpop.f32.mrb[0].mxu0
          %v1813 = vadd.f32 %v1488, %v1812
          %1814 = vmatprep.mubr.bf16.mxu0 0
          %1815 = vmatmul.mubr.bf16.gmra.mrb[0].mxu0 %v1717
          %v1816 = vpop.f32.mrb[0].mxu0
          %v1817 = vadd.f32 %v1484, %v1816
          %v1818 = vpop.f32.mrb[0].mxu0
          %v1819 = vadd.f32 %v1488, %v1818
          %v1820 = vpop.f32.mrb[0].mxu0
          %v1821 = vadd.f32 %v1484, %v1820
          %v1822 = vpop.f32.mrb[0].mxu0
          %v1823 = vadd.f32 %v1488, %v1822
          %1824 = vdwg.mxu0
          %1825 = vmatprep.subr.bf16.mxu0 %v1654
          %1826 = vmatpush1.bf16.msra.mxu0 %v1653
          %1827 = vmatprep.subr.bf16.mxu0 %v1670
          %1828 = vmatpush1.bf16.msra.mxu0 %v1669
          %1829 = vmatprep.subr.bf16.mxu0 0
          %1830 = vmatpush1.bf16.msra.mxu0 0
          %1831 = vmatprep.subr.bf16.mxu0 0
          %1832 = vmatpush1.bf16.msra.mxu0 0
          %1833 = vmatprep.subr.bf16.mxu0 0
          %1834 = vmatpush1.bf16.msra.mxu0 0
          %1835 = vmatprep.subr.bf16.mxu0 0
          %1836 = vmatpush1.bf16.msra.mxu0 0
          %1837 = vmatprep.subr.bf16.mxu0 0
          %1838 = vmatpush1.bf16.msra.mxu0 0
          %1839 = vmatprep.subr.bf16.mxu0 0
          %1840 = vmatpush1.bf16.msra.mxu0 0
          %1841 = vmatprep.subr.bf16.mxu0 0
          %1842 = vmatpush1.bf16.msra.mxu0 0
          %1843 = vmatprep.subr.bf16.mxu0 0
          %1844 = vmatpush1.bf16.msra.mxu0 0
          %1845 = vmatprep.subr.bf16.mxu0 0
          %1846 = vmatpush1.bf16.msra.mxu0 0
          %1847 = vmatprep.subr.bf16.mxu0 0
          %1848 = vmatpush1.bf16.msra.mxu0 0
          %1849 = vmatprep.subr.bf16.mxu0 0
          %1850 = vmatpush1.bf16.msra.mxu0 0
          %1851 = vmatprep.subr.bf16.mxu0 0
          %1852 = vmatpush1.bf16.msra.mxu0 0
          %1853 = vmatprep.subr.bf16.mxu0 0
          %1854 = vmatpush1.bf16.msra.mxu0 0
          %1855 = vmatprep.subr.bf16.mxu0 0
          %1856 = vmatpush1.bf16.msra.mxu0 0
          %1857 = vmatprep.mubr.bf16.mxu0 0
          %1858 = vmatmul.mubr.bf16.gmra.mrb[0].mxu0 %v1714
          %v1859 = vpop.f32.mrb[0].mxu0
          %v1860 = vadd.f32 %v1492, %v1859
          %v1861 = vpop.f32.mrb[0].mxu0
          %v1862 = vadd.f32 %v1496, %v1861
          %v1863 = vpop.f32.mrb[0].mxu0
          %v1864 = vadd.f32 %v1492, %v1863
          %v1865 = vpop.f32.mrb[0].mxu0
          %v1866 = vadd.f32 %v1496, %v1865
          %1867 = vmatprep.mubr.bf16.mxu0 0
          %1868 = vmatmul.mubr.bf16.gmra.mrb[0].mxu0 %v1717
          %v1869 = vpop.f32.mrb[0].mxu0
          %v1870 = vadd.f32 %v1492, %v1869
          %v1871 = vpop.f32.mrb[0].mxu0
          %v1872 = vadd.f32 %v1496, %v1871
          %v1873 = vpop.f32.mrb[0].mxu0
          %v1874 = vadd.f32 %v1492, %v1873
          %v1875 = vpop.f32.mrb[0].mxu0
          %v1876 = vadd.f32 %v1496, %v1875
          %1877 = vdwg.mxu0
          %1878 = vmatprep.subr.bf16.mxu0 %v1656
          %1879 = vmatpush1.bf16.msra.mxu0 %v1655
          %1880 = vmatprep.subr.bf16.mxu0 %v1672
          %1881 = vmatpush1.bf16.msra.mxu0 %v1671
          %1882 = vmatprep.subr.bf16.mxu0 0
          %1883 = vmatpush1.bf16.msra.mxu0 0
          %1884 = vmatprep.subr.bf16.mxu0 0
          %1885 = vmatpush1.bf16.msra.mxu0 0
          %1886 = vmatprep.subr.bf16.mxu0 0
          %1887 = vmatpush1.bf16.msra.mxu0 0
          %1888 = vmatprep.subr.bf16.mxu0 0
          %1889 = vmatpush1.bf16.msra.mxu0 0
          %1890 = vmatprep.subr.bf16.mxu0 0
          %1891 = vmatpush1.bf16.msra.mxu0 0
          %1892 = vmatprep.subr.bf16.mxu0 0
          %1893 = vmatpush1.bf16.msra.mxu0 0
          %1894 = vmatprep.subr.bf16.mxu0 0
          %1895 = vmatpush1.bf16.msra.mxu0 0
          %1896 = vmatprep.subr.bf16.mxu0 0
          %1897 = vmatpush1.bf16.msra.mxu0 0
          %1898 = vmatprep.subr.bf16.mxu0 0
          %1899 = vmatpush1.bf16.msra.mxu0 0
          %1900 = vmatprep.subr.bf16.mxu0 0
          %1901 = vmatpush1.bf16.msra.mxu0 0
          %1902 = vmatprep.subr.bf16.mxu0 0
          %1903 = vmatpush1.bf16.msra.mxu0 0
          %1904 = vmatprep.subr.bf16.mxu0 0
          %1905 = vmatpush1.bf16.msra.mxu0 0
          %1906 = vmatprep.subr.bf16.mxu0 0
          %1907 = vmatpush1.bf16.msra.mxu0 0
          %1908 = vmatprep.subr.bf16.mxu0 0
          %1909 = vmatpush1.bf16.msra.mxu0 0
          %1910 = vmatprep.mubr.bf16.mxu0 0
          %1911 = vmatmul.mubr.bf16.gmra.mrb[0].mxu0 %v1714
          %v1912 = vpop.f32.mrb[0].mxu0
          %v1913 = vadd.f32 %v1500, %v1912
          %v1914 = vpop.f32.mrb[0].mxu0
          %v1915 = vadd.f32 %v1504, %v1914
          %v1916 = vpop.f32.mrb[0].mxu0
          %v1917 = vadd.f32 %v1500, %v1916
          %v1918 = vpop.f32.mrb[0].mxu0
          %v1919 = vadd.f32 %v1504, %v1918
          %1920 = vmatprep.mubr.bf16.mxu0 0
          %1921 = vmatmul.mubr.bf16.gmra.mrb[0].mxu0 %v1717
          %v1922 = vpop.f32.mrb[0].mxu0
          %v1923 = vadd.f32 %v1500, %v1922
          %v1924 = vpop.f32.mrb[0].mxu0
          %v1925 = vadd.f32 %v1504, %v1924
          %v1926 = vpop.f32.mrb[0].mxu0
          %v1927 = vadd.f32 %v1500, %v1926
          %v1928 = vpop.f32.mrb[0].mxu0
          %v1929 = vadd.f32 %v1504, %v1928
          %1930 = vdwg.mxu0
          %1931 = vmatprep.subr.bf16.mxu0 %v1658
          %1932 = vmatpush1.bf16.msra.mxu0 %v1657
          %1933 = vmatprep.subr.bf16.mxu0 %v1674
          %1934 = vmatpush1.bf16.msra.mxu0 %v1673
          %1935 = vmatprep.subr.bf16.mxu0 0
          %1936 = vmatpush1.bf16.msra.mxu0 0
          %1937 = vmatprep.subr.bf16.mxu0 0
          %1938 = vmatpush1.bf16.msra.mxu0 0
          %1939 = vmatprep.subr.bf16.mxu0 0
          %1940 = vmatpush1.bf16.msra.mxu0 0
          %1941 = vmatprep.subr.bf16.mxu0 0
          %1942 = vmatpush1.bf16.msra.mxu0 0
          %1943 = vmatprep.subr.bf16.mxu0 0
          %1944 = vmatpush1.bf16.msra.mxu0 0
          %1945 = vmatprep.subr.bf16.mxu0 0
          %1946 = vmatpush1.bf16.msra.mxu0 0
          %1947 = vmatprep.subr.bf16.mxu0 0
          %1948 = vmatpush1.bf16.msra.mxu0 0
          %1949 = vmatprep.subr.bf16.mxu0 0
          %1950 = vmatpush1.bf16.msra.mxu0 0
          %1951 = vmatprep.subr.bf16.mxu0 0
          %1952 = vmatpush1.bf16.msra.mxu0 0
          %1953 = vmatprep.subr.bf16.mxu0 0
          %1954 = vmatpush1.bf16.msra.mxu0 0
          %1955 = vmatprep.subr.bf16.mxu0 0
          %1956 = vmatpush1.bf16.msra.mxu0 0
          %1957 = vmatprep.subr.bf16.mxu0 0
          %1958 = vmatpush1.bf16.msra.mxu0 0
          %1959 = vmatprep.subr.bf16.mxu0 0
          %1960 = vmatpush1.bf16.msra.mxu0 0
          %1961 = vmatprep.subr.bf16.mxu0 0
          %1962 = vmatpush1.bf16.msra.mxu0 0
          %1963 = vmatprep.mubr.bf16.mxu0 0
          %1964 = vmatmul.mubr.bf16.gmra.mrb[0].mxu0 %v1714
          %v1965 = vpop.f32.mrb[0].mxu0
          %v1966 = vadd.f32 %v1508, %v1965
          %v1967 = vpop.f32.mrb[0].mxu0
          %v1968 = vadd.f32 %v1512, %v1967
          %v1969 = vpop.f32.mrb[0].mxu0
          %v1970 = vadd.f32 %v1508, %v1969
          %v1971 = vpop.f32.mrb[0].mxu0
          %v1972 = vadd.f32 %v1512, %v1971
          %1973 = vmatprep.mubr.bf16.mxu0 0
          %1974 = vmatmul.mubr.bf16.gmra.mrb[0].mxu0 %v1717
          %v1975 = vpop.f32.mrb[0].mxu0
          %v1976 = vadd.f32 %v1508, %v1975
          %v1977 = vpop.f32.mrb[0].mxu0
          %v1978 = vadd.f32 %v1512, %v1977
          %v1979 = vpop.f32.mrb[0].mxu0
          %v1980 = vadd.f32 %v1508, %v1979
          %v1981 = vpop.f32.mrb[0].mxu0
          %v1982 = vadd.f32 %v1512, %v1981
          %1983 = vdwg.mxu0
          %1984 = vmatprep.subr.bf16.mxu0 %v1660
          %1985 = vmatpush1.bf16.msra.mxu0 %v1659
          %1986 = vmatprep.subr.bf16.mxu0 %v1676
          %1987 = vmatpush1.bf16.msra.mxu0 %v1675
          %1988 = vmatprep.subr.bf16.mxu0 0
          %1989 = vmatpush1.bf16.msra.mxu0 0
          %1990 = vmatprep.subr.bf16.mxu0 0
          %1991 = vmatpush1.bf16.msra.mxu0 0
          %1992 = vmatprep.subr.bf16.mxu0 0
          %1993 = vmatpush1.bf16.msra.mxu0 0
          %1994 = vmatprep.subr.bf16.mxu0 0
          %1995 = vmatpush1.bf16.msra.mxu0 0
          %1996 = vmatprep.subr.bf16.mxu0 0
          %1997 = vmatpush1.bf16.msra.mxu0 0
          %1998 = vmatprep.subr.bf16.mxu0 0
          %1999 = vmatpush1.bf16.msra.mxu0 0
          %2000 = vmatprep.subr.bf16.mxu0 0
          %2001 = vmatpush1.bf16.msra.mxu0 0
          %2002 = vmatprep.subr.bf16.mxu0 0
          %2003 = vmatpush1.bf16.msra.mxu0 0
          %2004 = vmatprep.subr.bf16.mxu0 0
          %2005 = vmatpush1.bf16.msra.mxu0 0
          %2006 = vmatprep.subr.bf16.mxu0 0
          %2007 = vmatpush1.bf16.msra.mxu0 0
          %2008 = vmatprep.subr.bf16.mxu0 0
          %2009 = vmatpush1.bf16.msra.mxu0 0
          %2010 = vmatprep.subr.bf16.mxu0 0
          %2011 = vmatpush1.bf16.msra.mxu0 0
          %2012 = vmatprep.subr.bf16.mxu0 0
          %2013 = vmatpush1.bf16.msra.mxu0 0
          %2014 = vmatprep.subr.bf16.mxu0 0
          %2015 = vmatpush1.bf16.msra.mxu0 0
          %2016 = vmatprep.mubr.bf16.mxu0 0
          %2017 = vmatmul.mubr.bf16.gmra.mrb[0].mxu0 %v1714
          %v2018 = vpop.f32.mrb[0].mxu0
          %v2019 = vadd.f32 %v1516, %v2018
          %v2020 = vpop.f32.mrb[0].mxu0
          %v2021 = vadd.f32 %v1520, %v2020
          %v2022 = vpop.f32.mrb[0].mxu0
          %v2023 = vadd.f32 %v1516, %v2022
          %v2024 = vpop.f32.mrb[0].mxu0
          %v2025 = vadd.f32 %v1520, %v2024
          %2026 = vmatprep.mubr.bf16.mxu0 0
          %2027 = vmatmul.mubr.bf16.gmra.mrb[0].mxu0 %v1717
          %v2028 = vpop.f32.mrb[0].mxu0
          %v2029 = vadd.f32 %v1516, %v2028
          %v2030 = vpop.f32.mrb[0].mxu0
          %v2031 = vadd.f32 %v1520, %v2030
          %v2032 = vpop.f32.mrb[0].mxu0
          %v2033 = vadd.f32 %v1516, %v2032
          %v2034 = vpop.f32.mrb[0].mxu0
          %v2035 = vadd.f32 %v1520, %v2034
          %2036 = vdwg.mxu0
          %2037 = vmatprep.subr.bf16.mxu0 %v1662
          %2038 = vmatpush1.bf16.msra.mxu0 %v1661
          %2039 = vmatprep.subr.bf16.mxu0 %v1678
          %2040 = vmatpush1.bf16.msra.mxu0 %v1677
          %2041 = vmatprep.subr.bf16.mxu0 0
          %2042 = vmatpush1.bf16.msra.mxu0 0
          %2043 = vmatprep.subr.bf16.mxu0 0
          %2044 = vmatpush1.bf16.msra.mxu0 0
          %2045 = vmatprep.subr.bf16.mxu0 0
          %2046 = vmatpush1.bf16.msra.mxu0 0
          %2047 = vmatprep.subr.bf16.mxu0 0
          %2048 = vmatpush1.bf16.msra.mxu0 0
          %2049 = vmatprep.subr.bf16.mxu0 0
          %2050 = vmatpush1.bf16.msra.mxu0 0
          %2051 = vmatprep.subr.bf16.mxu0 0
          %2052 = vmatpush1.bf16.msra.mxu0 0
          %2053 = vmatprep.subr.bf16.mxu0 0
          %2054 = vmatpush1.bf16.msra.mxu0 0
          %2055 = vmatprep.subr.bf16.mxu0 0
          %2056 = vmatpush1.bf16.msra.mxu0 0
          %2057 = vmatprep.subr.bf16.mxu0 0
          %2058 = vmatpush1.bf16.msra.mxu0 0
          %2059 = vmatprep.subr.bf16.mxu0 0
          %2060 = vmatpush1.bf16.msra.mxu0 0
          %2061 = vmatprep.subr.bf16.mxu0 0
          %2062 = vmatpush1.bf16.msra.mxu0 0
          %2063 = vmatprep.subr.bf16.mxu0 0
          %2064 = vmatpush1.bf16.msra.mxu0 0
          %2065 = vmatprep.subr.bf16.mxu0 0
          %2066 = vmatpush1.bf16.msra.mxu0 0
          %2067 = vmatprep.subr.bf16.mxu0 0
          %2068 = vmatpush1.bf16.msra.mxu0 0
          %2069 = vmatprep.mubr.bf16.mxu0 0
          %2070 = vmatmul.mubr.bf16.gmra.mrb[0].mxu0 %v1714
          %v2071 = vpop.f32.mrb[0].mxu0
          %v2072 = vadd.f32 %v1524, %v2071
          %v2073 = vpop.f32.mrb[0].mxu0
          %v2074 = vadd.f32 %v1528, %v2073
          %v2075 = vpop.f32.mrb[0].mxu0
          %v2076 = vadd.f32 %v1524, %v2075
          %v2077 = vpop.f32.mrb[0].mxu0
          %v2078 = vadd.f32 %v1528, %v2077
          %2079 = vmatprep.mubr.bf16.mxu0 0
          %2080 = vmatmul.mubr.bf16.gmra.mrb[0].mxu0 %v1717
          %v2081 = vpop.f32.mrb[0].mxu0
          %v2082 = vadd.f32 %v1524, %v2081
          %v2083 = vpop.f32.mrb[0].mxu0
          %v2084 = vadd.f32 %v1528, %v2083
          %v2085 = vpop.f32.mrb[0].mxu0
          %v2086 = vadd.f32 %v1524, %v2085
          %v2087 = vpop.f32.mrb[0].mxu0
          %v2088 = vadd.f32 %v1528, %v2087
          %2089 = vdwg.mxu0
          %2090 = vmatprep.subr.bf16.mxu0 %v1664
          %2091 = vmatpush1.bf16.msra.mxu0 %v1663
          %2092 = vmatprep.subr.bf16.mxu0 %v1680
          %2093 = vmatpush1.bf16.msra.mxu0 %v1679
          %2094 = vmatprep.subr.bf16.mxu0 0
          %2095 = vmatpush1.bf16.msra.mxu0 0
          %2096 = vmatprep.subr.bf16.mxu0 0
          %2097 = vmatpush1.bf16.msra.mxu0 0
          %2098 = vmatprep.subr.bf16.mxu0 0
          %2099 = vmatpush1.bf16.msra.mxu0 0
          %2100 = vmatprep.subr.bf16.mxu0 0
          %2101 = vmatpush1.bf16.msra.mxu0 0
          %2102 = vmatprep.subr.bf16.mxu0 0
          %2103 = vmatpush1.bf16.msra.mxu0 0
          %2104 = vmatprep.subr.bf16.mxu0 0
          %2105 = vmatpush1.bf16.msra.mxu0 0
          %2106 = vmatprep.subr.bf16.mxu0 0
          %2107 = vmatpush1.bf16.msra.mxu0 0
          %2108 = vmatprep.subr.bf16.mxu0 0
          %2109 = vmatpush1.bf16.msra.mxu0 0
          %2110 = vmatprep.subr.bf16.mxu0 0
          %2111 = vmatpush1.bf16.msra.mxu0 0
          %2112 = vmatprep.subr.bf16.mxu0 0
          %2113 = vmatpush1.bf16.msra.mxu0 0
          %2114 = vmatprep.subr.bf16.mxu0 0
          %2115 = vmatpush1.bf16.msra.mxu0 0
          %2116 = vmatprep.subr.bf16.mxu0 0
          %2117 = vmatpush1.bf16.msra.mxu0 0
          %2118 = vmatprep.subr.bf16.mxu0 0
          %2119 = vmatpush1.bf16.msra.mxu0 0
          %2120 = vmatprep.subr.bf16.mxu0 0
          %2121 = vmatpush1.bf16.msra.mxu0 0
          %2122 = vmatprep.mubr.bf16.mxu0 0
          %2123 = vmatmul.mubr.bf16.gmra.mrb[0].mxu0 %v1714
          %v2124 = vpop.f32.mrb[0].mxu0
          %v2125 = vadd.f32 %v1532, %v2124
          %v2126 = vpop.f32.mrb[0].mxu0
          %v2127 = vadd.f32 %v1536, %v2126
          %v2128 = vpop.f32.mrb[0].mxu0
          %v2129 = vadd.f32 %v1532, %v2128
          %v2130 = vpop.f32.mrb[0].mxu0
          %v2131 = vadd.f32 %v1536, %v2130
          %2132 = vmatprep.mubr.bf16.mxu0 0
          %2133 = vmatmul.mubr.bf16.gmra.mrb[0].mxu0 %v1717
          %v2134 = vpop.f32.mrb[0].mxu0
          %v2135 = vadd.f32 %v1532, %v2134
          %v2136 = vpop.f32.mrb[0].mxu0
          %v2137 = vadd.f32 %v1536, %v2136
          %v2138 = vpop.f32.mrb[0].mxu0
          %v2139 = vadd.f32 %v1532, %v2138
          %v2140 = vpop.f32.mrb[0].mxu0
          %v2141 = vadd.f32 %v1536, %v2140
          %2142 = vdwg.mxu0
          %v2143 = vmax.f32 %v1754, 0.0
          %v2144 = vmax.f32 %v1756, 0.0
          %v2145 = vmax.f32 %v1807, 0.0
          %v2146 = vmax.f32 %v1809, 0.0
          %v2147 = vmax.f32 %v1860, 0.0
          %v2148 = vmax.f32 %v1862, 0.0
          %v2149 = vmax.f32 %v1913, 0.0
          %v2150 = vmax.f32 %v1915, 0.0
          %v2151 = vmax.f32 %v1966, 0.0
          %v2152 = vmax.f32 %v1968, 0.0
          %v2153 = vmax.f32 %v2019, 0.0
          %v2154 = vmax.f32 %v2021, 0.0
          %v2155 = vmax.f32 %v2072, 0.0
          %v2156 = vmax.f32 %v2074, 0.0
          %v2157 = vmax.f32 %v2125, 0.0
          %v2158 = vmax.f32 %v2127, 0.0
          %v2159 = vmax.f32 %v1758, 0.0
          %v2160 = vmax.f32 %v1760, 0.0
          %v2161 = vmax.f32 %v1811, 0.0
          %v2162 = vmax.f32 %v1813, 0.0
          %v2163 = vmax.f32 %v1864, 0.0
          %v2164 = vmax.f32 %v1866, 0.0
          %v2165 = vmax.f32 %v1917, 0.0
          %v2166 = vmax.f32 %v1919, 0.0
          %v2167 = vmax.f32 %v1970, 0.0
          %v2168 = vmax.f32 %v1972, 0.0
          %v2169 = vmax.f32 %v2023, 0.0
          %v2170 = vmax.f32 %v2025, 0.0
          %v2171 = vmax.f32 %v2076, 0.0
          %v2172 = vmax.f32 %v2078, 0.0
          %v2173 = vmax.f32 %v2129, 0.0
          %v2174 = vmax.f32 %v2131, 0.0
          %v2175 = vmax.f32 %v1764, 0.0
          %v2176 = vmax.f32 %v1766, 0.0
          %v2177 = vmax.f32 %v1817, 0.0
          %v2178 = vmax.f32 %v1819, 0.0
          %v2179 = vmax.f32 %v1870, 0.0
          %v2180 = vmax.f32 %v1872, 0.0
          %v2181 = vmax.f32 %v1923, 0.0
          %v2182 = vmax.f32 %v1925, 0.0
          %v2183 = vmax.f32 %v1976, 0.0
          %v2184 = vmax.f32 %v1978, 0.0
          %v2185 = vmax.f32 %v2029, 0.0
          %v2186 = vmax.f32 %v2031, 0.0
          %v2187 = vmax.f32 %v2082, 0.0
          %v2188 = vmax.f32 %v2084, 0.0
          %v2189 = vmax.f32 %v2135, 0.0
          %v2190 = vmax.f32 %v2137, 0.0
          %v2191 = vmax.f32 %v1768, 0.0
          %v2192 = vmax.f32 %v1770, 0.0
          %v2193 = vmax.f32 %v1821, 0.0
          %v2194 = vmax.f32 %v1823, 0.0
          %v2195 = vmax.f32 %v1874, 0.0
          %v2196 = vmax.f32 %v1876, 0.0
          %v2197 = vmax.f32 %v1927, 0.0
          %v2198 = vmax.f32 %v1929, 0.0
          %v2199 = vmax.f32 %v1980, 0.0
          %v2200 = vmax.f32 %v1982, 0.0
          %v2201 = vmax.f32 %v2033, 0.0
          %v2202 = vmax.f32 %v2035, 0.0
          %v2203 = vmax.f32 %v2086, 0.0
          %v2204 = vmax.f32 %v2088, 0.0
          %v2205 = vmax.f32 %v2139, 0.0
          %v2206 = vmax.f32 %v2141, 0.0
          %v2207 = vpack.c.bf16 %v2159, %v2143
          %v2208 = vpack.c.bf16 %v2160, %v2144
          %v2209 = vpack.c.bf16 %v2161, %v2145
          %v2210 = vpack.c.bf16 %v2162, %v2146
          %v2211 = vpack.c.bf16 %v2163, %v2147
          %v2212 = vpack.c.bf16 %v2164, %v2148
          %v2213 = vpack.c.bf16 %v2165, %v2149
          %v2214 = vpack.c.bf16 %v2166, %v2150
          %v2215 = vpack.c.bf16 %v2167, %v2151
          %v2216 = vpack.c.bf16 %v2168, %v2152
          %v2217 = vpack.c.bf16 %v2169, %v2153
          %v2218 = vpack.c.bf16 %v2170, %v2154
          %v2219 = vpack.c.bf16 %v2171, %v2155
          %v2220 = vpack.c.bf16 %v2172, %v2156
          %v2221 = vpack.c.bf16 %v2173, %v2157
          %v2222 = vpack.c.bf16 %v2174, %v2158
          %v2223 = vpack.c.bf16 %v2191, %v2175
          %v2224 = vpack.c.bf16 %v2192, %v2176
          %v2225 = vpack.c.bf16 %v2193, %v2177
          %v2226 = vpack.c.bf16 %v2194, %v2178
          %v2227 = vpack.c.bf16 %v2195, %v2179
          %v2228 = vpack.c.bf16 %v2196, %v2180
          %v2229 = vpack.c.bf16 %v2197, %v2181
          %v2230 = vpack.c.bf16 %v2198, %v2182
          %v2231 = vpack.c.bf16 %v2199, %v2183
          %v2232 = vpack.c.bf16 %v2200, %v2184
          %v2233 = vpack.c.bf16 %v2201, %v2185
          %v2234 = vpack.c.bf16 %v2202, %v2186
          %v2235 = vpack.c.bf16 %v2203, %v2187
          %v2236 = vpack.c.bf16 %v2204, %v2188
          %v2237 = vpack.c.bf16 %v2205, %v2189
          %v2238 = vpack.c.bf16 %v2206, %v2190
          %v2239 = vld [vmem:[%s820] sm:$0xf]
          %v2240 = vld [vmem:[%s820 + $0x4] sm:$0xf]
          %v2241 = vld [vmem:[%s820 + $0x8] sm:$0xf]
          %v2242 = vld [vmem:[%s820 + $0xc] sm:$0xf]
          %v2243 = vld [vmem:[%s820 + $0x10] sm:$0xf]
          %v2244 = vld [vmem:[%s820 + $0x14] sm:$0xf]
          %v2245 = vld [vmem:[%s820 + $0x18] sm:$0xf]
          %v2246 = vld [vmem:[%s820 + $0x1c] sm:$0xf]
          %v2247 = vld [vmem:[%s820 + $0x20] sm:$0xf]
          %v2248 = vld [vmem:[%s820 + $0x24] sm:$0xf]
          %v2249 = vld [vmem:[%s820 + $0x28] sm:$0xf]
          %v2250 = vld [vmem:[%s820 + $0x2c] sm:$0xf]
          %v2251 = vld [vmem:[%s820 + $0x30] sm:$0xf]
          %v2252 = vld [vmem:[%s820 + $0x34] sm:$0xf]
          %v2253 = vld [vmem:[%s820 + $0x38] sm:$0xf]
          %v2254 = vld [vmem:[%s820 + $0x3c] sm:$0xf]
          %v2255 = vld [vmem:[%s820 + $0x40] sm:$0xf]
          %v2256 = vld [vmem:[%s820 + $0x44] sm:$0xf]
          %v2257 = vld [vmem:[%s820 + $0x48] sm:$0xf]
          %v2258 = vld [vmem:[%s820 + $0x4c] sm:$0xf]
          %v2259 = vld [vmem:[%s820 + $0x50] sm:$0xf]
          %v2260 = vld [vmem:[%s820 + $0x54] sm:$0xf]
          %v2261 = vld [vmem:[%s820 + $0x58] sm:$0xf]
          %v2262 = vld [vmem:[%s820 + $0x5c] sm:$0xf]
          %v2263 = vld [vmem:[%s820 + $0x60] sm:$0xf]
          %v2264 = vld [vmem:[%s820 + $0x64] sm:$0xf]
          %v2265 = vld [vmem:[%s820 + $0x68] sm:$0xf]
          %v2266 = vld [vmem:[%s820 + $0x6c] sm:$0xf]
          %v2267 = vld [vmem:[%s820 + $0x70] sm:$0xf]
          %v2268 = vld [vmem:[%s820 + $0x74] sm:$0xf]
          %v2269 = vld [vmem:[%s820 + $0x78] sm:$0xf]
          %v2270 = vld [vmem:[%s820 + $0x7c] sm:$0xf]
          %v2271 = vld [vmem:[%s820 + $0x80] sm:$0xf]
          %v2272 = vld [vmem:[%s820 + $0x84] sm:$0xf]
          %v2273 = vld [vmem:[%s820 + $0x88] sm:$0xf]
          %v2274 = vld [vmem:[%s820 + $0x8c] sm:$0xf]
          %v2275 = vld [vmem:[%s820 + $0x90] sm:$0xf]
          %v2276 = vld [vmem:[%s820 + $0x94] sm:$0xf]
          %v2277 = vld [vmem:[%s820 + $0x98] sm:$0xf]
          %v2278 = vld [vmem:[%s820 + $0x9c] sm:$0xf]
          %v2279 = vld [vmem:[%s820 + $0xa0] sm:$0xf]
          %v2280 = vld [vmem:[%s820 + $0xa4] sm:$0xf]
          %v2281 = vld [vmem:[%s820 + $0xa8] sm:$0xf]
          %v2282 = vld [vmem:[%s820 + $0xac] sm:$0xf]
          %v2283 = vld [vmem:[%s820 + $0xb0] sm:$0xf]
          %v2284 = vld [vmem:[%s820 + $0xb4] sm:$0xf]
          %v2285 = vld [vmem:[%s820 + $0xb8] sm:$0xf]
          %v2286 = vld [vmem:[%s820 + $0xbc] sm:$0xf]
          %v2287 = vld [vmem:[%s820 + $0xc0] sm:$0xf]
          %v2288 = vld [vmem:[%s820 + $0xc4] sm:$0xf]
          %v2289 = vld [vmem:[%s820 + $0xc8] sm:$0xf]
          %v2290 = vld [vmem:[%s820 + $0xcc] sm:$0xf]
          %v2291 = vld [vmem:[%s820 + $0xd0] sm:$0xf]
          %v2292 = vld [vmem:[%s820 + $0xd4] sm:$0xf]
          %v2293 = vld [vmem:[%s820 + $0xd8] sm:$0xf]
          %v2294 = vld [vmem:[%s820 + $0xdc] sm:$0xf]
          %v2295 = vld [vmem:[%s820 + $0xe0] sm:$0xf]
          %v2296 = vld [vmem:[%s820 + $0xe4] sm:$0xf]
          %v2297 = vld [vmem:[%s820 + $0xe8] sm:$0xf]
          %v2298 = vld [vmem:[%s820 + $0xec] sm:$0xf]
          %v2299 = vld [vmem:[%s820 + $0xf0] sm:$0xf]
          %v2300 = vld [vmem:[%s820 + $0xf4] sm:$0xf]
          %v2301 = vld [vmem:[%s820 + $0xf8] sm:$0xf]
          %v2302 = vld [vmem:[%s820 + $0xfc] sm:$0xf]
          %v2303 = vld [vmem:[%s820 + $0x100] sm:$0xf]
          %v2304 = vld [vmem:[%s820 + $0x104] sm:$0xf]
          %v2305 = vld [vmem:[%s820 + $0x108] sm:$0xf]
          %v2306 = vld [vmem:[%s820 + $0x10c] sm:$0xf]
          %v2307 = vld [vmem:[%s820 + $0x110] sm:$0xf]
          %v2308 = vld [vmem:[%s820 + $0x114] sm:$0xf]
          %v2309 = vld [vmem:[%s820 + $0x118] sm:$0xf]
          %v2310 = vld [vmem:[%s820 + $0x11c] sm:$0xf]
          %v2311 = vld [vmem:[%s820 + $0x120] sm:$0xf]
          %v2312 = vld [vmem:[%s820 + $0x124] sm:$0xf]
          %v2313 = vld [vmem:[%s820 + $0x128] sm:$0xf]
          %v2314 = vld [vmem:[%s820 + $0x12c] sm:$0xf]
          %v2315 = vld [vmem:[%s820 + $0x130] sm:$0xf]
          %v2316 = vld [vmem:[%s820 + $0x134] sm:$0xf]
          %v2317 = vld [vmem:[%s820 + $0x138] sm:$0xf]
          %v2318 = vld [vmem:[%s820 + $0x13c] sm:$0xf]
          %v2319 = vld [vmem:[%s820 + $0x140] sm:$0xf]
          %v2320 = vld [vmem:[%s820 + $0x144] sm:$0xf]
          %v2321 = vld [vmem:[%s820 + $0x148] sm:$0xf]
          %v2322 = vld [vmem:[%s820 + $0x14c] sm:$0xf]
          %v2323 = vld [vmem:[%s820 + $0x150] sm:$0xf]
          %v2324 = vld [vmem:[%s820 + $0x154] sm:$0xf]
          %v2325 = vld [vmem:[%s820 + $0x158] sm:$0xf]
          %v2326 = vld [vmem:[%s820 + $0x15c] sm:$0xf]
          %v2327 = vld [vmem:[%s820 + $0x160] sm:$0xf]
          %v2328 = vld [vmem:[%s820 + $0x164] sm:$0xf]
          %v2329 = vld [vmem:[%s820 + $0x168] sm:$0xf]
          %v2330 = vld [vmem:[%s820 + $0x16c] sm:$0xf]
          %v2331 = vld [vmem:[%s820 + $0x170] sm:$0xf]
          %v2332 = vld [vmem:[%s820 + $0x174] sm:$0xf]
          %v2333 = vld [vmem:[%s820 + $0x178] sm:$0xf]
          %v2334 = vld [vmem:[%s820 + $0x17c] sm:$0xf]
          %v2335 = vld [vmem:[%s820 + $0x180] sm:$0xf]
          %v2336 = vld [vmem:[%s820 + $0x184] sm:$0xf]
          %v2337 = vld [vmem:[%s820 + $0x188] sm:$0xf]
          %v2338 = vld [vmem:[%s820 + $0x18c] sm:$0xf]
          %v2339 = vld [vmem:[%s820 + $0x190] sm:$0xf]
          %v2340 = vld [vmem:[%s820 + $0x194] sm:$0xf]
          %v2341 = vld [vmem:[%s820 + $0x198] sm:$0xf]
          %v2342 = vld [vmem:[%s820 + $0x19c] sm:$0xf]
          %v2343 = vld [vmem:[%s820 + $0x1a0] sm:$0xf]
          %v2344 = vld [vmem:[%s820 + $0x1a4] sm:$0xf]
          %v2345 = vld [vmem:[%s820 + $0x1a8] sm:$0xf]
          %v2346 = vld [vmem:[%s820 + $0x1ac] sm:$0xf]
          %v2347 = vld [vmem:[%s820 + $0x1b0] sm:$0xf]
          %v2348 = vld [vmem:[%s820 + $0x1b4] sm:$0xf]
          %v2349 = vld [vmem:[%s820 + $0x1b8] sm:$0xf]
          %v2350 = vld [vmem:[%s820 + $0x1bc] sm:$0xf]
          %v2351 = vld [vmem:[%s820 + $0x1c0] sm:$0xf]
          %v2352 = vld [vmem:[%s820 + $0x1c4] sm:$0xf]
          %v2353 = vld [vmem:[%s820 + $0x1c8] sm:$0xf]
          %v2354 = vld [vmem:[%s820 + $0x1cc] sm:$0xf]
          %v2355 = vld [vmem:[%s820 + $0x1d0] sm:$0xf]
          %v2356 = vld [vmem:[%s820 + $0x1d4] sm:$0xf]
          %v2357 = vld [vmem:[%s820 + $0x1d8] sm:$0xf]
          %v2358 = vld [vmem:[%s820 + $0x1dc] sm:$0xf]
          %v2359 = vld [vmem:[%s820 + $0x1e0] sm:$0xf]
          %v2360 = vld [vmem:[%s820 + $0x1e4] sm:$0xf]
          %v2361 = vld [vmem:[%s820 + $0x1e8] sm:$0xf]
          %v2362 = vld [vmem:[%s820 + $0x1ec] sm:$0xf]
          %v2363 = vld [vmem:[%s820 + $0x1f0] sm:$0xf]
          %v2364 = vld [vmem:[%s820 + $0x1f4] sm:$0xf]
          %v2365 = vld [vmem:[%s820 + $0x1f8] sm:$0xf]
          %v2366 = vld [vmem:[%s820 + $0x1fc] sm:$0xf]
          %v2367 = vld [vmem:[%s820 + $0x200] sm:$0xf]
          %v2368 = vld [vmem:[%s820 + $0x204] sm:$0xf]
          %v2369 = vld [vmem:[%s820 + $0x208] sm:$0xf]
          %v2370 = vld [vmem:[%s820 + $0x20c] sm:$0xf]
          %v2371 = vld [vmem:[%s820 + $0x210] sm:$0xf]
          %v2372 = vld [vmem:[%s820 + $0x214] sm:$0xf]
          %v2373 = vld [vmem:[%s820 + $0x218] sm:$0xf]
          %v2374 = vld [vmem:[%s820 + $0x21c] sm:$0xf]
          %v2375 = vld [vmem:[%s820 + $0x220] sm:$0xf]
          %v2376 = vld [vmem:[%s820 + $0x224] sm:$0xf]
          %v2377 = vld [vmem:[%s820 + $0x228] sm:$0xf]
          %v2378 = vld [vmem:[%s820 + $0x22c] sm:$0xf]
          %v2379 = vld [vmem:[%s820 + $0x230] sm:$0xf]
          %v2380 = vld [vmem:[%s820 + $0x234] sm:$0xf]
          %v2381 = vld [vmem:[%s820 + $0x238] sm:$0xf]
          %v2382 = vld [vmem:[%s820 + $0x23c] sm:$0xf]
          %v2383 = vld [vmem:[%s820 + $0x240] sm:$0xf]
          %v2384 = vld [vmem:[%s820 + $0x244] sm:$0xf]
          %v2385 = vld [vmem:[%s820 + $0x248] sm:$0xf]
          %v2386 = vld [vmem:[%s820 + $0x24c] sm:$0xf]
          %v2387 = vld [vmem:[%s820 + $0x250] sm:$0xf]
          %v2388 = vld [vmem:[%s820 + $0x254] sm:$0xf]
          %v2389 = vld [vmem:[%s820 + $0x258] sm:$0xf]
          %v2390 = vld [vmem:[%s820 + $0x25c] sm:$0xf]
          %v2391 = vld [vmem:[%s820 + $0x260] sm:$0xf]
          %v2392 = vld [vmem:[%s820 + $0x264] sm:$0xf]
          %v2393 = vld [vmem:[%s820 + $0x268] sm:$0xf]
          %v2394 = vld [vmem:[%s820 + $0x26c] sm:$0xf]
          %v2395 = vld [vmem:[%s820 + $0x270] sm:$0xf]
          %v2396 = vld [vmem:[%s820 + $0x274] sm:$0xf]
          %v2397 = vld [vmem:[%s820 + $0x278] sm:$0xf]
          %v2398 = vld [vmem:[%s820 + $0x27c] sm:$0xf]
          %v2399 = vld [vmem:[%s820 + $0x280] sm:$0xf]
          %v2400 = vld [vmem:[%s820 + $0x284] sm:$0xf]
          %v2401 = vld [vmem:[%s820 + $0x288] sm:$0xf]
          %v2402 = vld [vmem:[%s820 + $0x28c] sm:$0xf]
          %v2403 = vld [vmem:[%s820 + $0x290] sm:$0xf]
          %v2404 = vld [vmem:[%s820 + $0x294] sm:$0xf]
          %v2405 = vld [vmem:[%s820 + $0x298] sm:$0xf]
          %v2406 = vld [vmem:[%s820 + $0x29c] sm:$0xf]
          %v2407 = vld [vmem:[%s820 + $0x2a0] sm:$0xf]
          %v2408 = vld [vmem:[%s820 + $0x2a4] sm:$0xf]
          %v2409 = vld [vmem:[%s820 + $0x2a8] sm:$0xf]
          %v2410 = vld [vmem:[%s820 + $0x2ac] sm:$0xf]
          %v2411 = vld [vmem:[%s820 + $0x2b0] sm:$0xf]
          %v2412 = vld [vmem:[%s820 + $0x2b4] sm:$0xf]
          %v2413 = vld [vmem:[%s820 + $0x2b8] sm:$0xf]
          %v2414 = vld [vmem:[%s820 + $0x2bc] sm:$0xf]
          %v2415 = vld [vmem:[%s820 + $0x2c0] sm:$0xf]
          %v2416 = vld [vmem:[%s820 + $0x2c4] sm:$0xf]
          %v2417 = vld [vmem:[%s820 + $0x2c8] sm:$0xf]
          %v2418 = vld [vmem:[%s820 + $0x2cc] sm:$0xf]
          %v2419 = vld [vmem:[%s820 + $0x2d0] sm:$0xf]
          %v2420 = vld [vmem:[%s820 + $0x2d4] sm:$0xf]
          %v2421 = vld [vmem:[%s820 + $0x2d8] sm:$0xf]
          %v2422 = vld [vmem:[%s820 + $0x2dc] sm:$0xf]
          %v2423 = vld [vmem:[%s820 + $0x2e0] sm:$0xf]
          %v2424 = vld [vmem:[%s820 + $0x2e4] sm:$0xf]
          %v2425 = vld [vmem:[%s820 + $0x2e8] sm:$0xf]
          %v2426 = vld [vmem:[%s820 + $0x2ec] sm:$0xf]
          %v2427 = vld [vmem:[%s820 + $0x2f0] sm:$0xf]
          %v2428 = vld [vmem:[%s820 + $0x2f4] sm:$0xf]
          %v2429 = vld [vmem:[%s820 + $0x2f8] sm:$0xf]
          %v2430 = vld [vmem:[%s820 + $0x2fc] sm:$0xf]
          %v2431 = vld [vmem:[%s820 + $0x300] sm:$0xf]
          %v2432 = vld [vmem:[%s820 + $0x304] sm:$0xf]
          %v2433 = vld [vmem:[%s820 + $0x308] sm:$0xf]
          %v2434 = vld [vmem:[%s820 + $0x30c] sm:$0xf]
          %v2435 = vld [vmem:[%s820 + $0x310] sm:$0xf]
          %v2436 = vld [vmem:[%s820 + $0x314] sm:$0xf]
          %v2437 = vld [vmem:[%s820 + $0x318] sm:$0xf]
          %v2438 = vld [vmem:[%s820 + $0x31c] sm:$0xf]
          %v2439 = vld [vmem:[%s820 + $0x320] sm:$0xf]
          %v2440 = vld [vmem:[%s820 + $0x324] sm:$0xf]
          %v2441 = vld [vmem:[%s820 + $0x328] sm:$0xf]
          %v2442 = vld [vmem:[%s820 + $0x32c] sm:$0xf]
          %v2443 = vld [vmem:[%s820 + $0x330] sm:$0xf]
          %v2444 = vld [vmem:[%s820 + $0x334] sm:$0xf]
          %v2445 = vld [vmem:[%s820 + $0x338] sm:$0xf]
          %v2446 = vld [vmem:[%s820 + $0x33c] sm:$0xf]
          %v2447 = vld [vmem:[%s820 + $0x340] sm:$0xf]
          %v2448 = vld [vmem:[%s820 + $0x344] sm:$0xf]
          %v2449 = vld [vmem:[%s820 + $0x348] sm:$0xf]
          %v2450 = vld [vmem:[%s820 + $0x34c] sm:$0xf]
          %v2451 = vld [vmem:[%s820 + $0x350] sm:$0xf]
          %v2452 = vld [vmem:[%s820 + $0x354] sm:$0xf]
          %v2453 = vld [vmem:[%s820 + $0x358] sm:$0xf]
          %v2454 = vld [vmem:[%s820 + $0x35c] sm:$0xf]
          %v2455 = vld [vmem:[%s820 + $0x360] sm:$0xf]
          %v2456 = vld [vmem:[%s820 + $0x364] sm:$0xf]
          %v2457 = vld [vmem:[%s820 + $0x368] sm:$0xf]
          %v2458 = vld [vmem:[%s820 + $0x36c] sm:$0xf]
          %v2459 = vld [vmem:[%s820 + $0x370] sm:$0xf]
          %v2460 = vld [vmem:[%s820 + $0x374] sm:$0xf]
          %v2461 = vld [vmem:[%s820 + $0x378] sm:$0xf]
          %v2462 = vld [vmem:[%s820 + $0x37c] sm:$0xf]
          %v2463 = vld [vmem:[%s820 + $0x380] sm:$0xf]
          %v2464 = vld [vmem:[%s820 + $0x384] sm:$0xf]
          %v2465 = vld [vmem:[%s820 + $0x388] sm:$0xf]
          %v2466 = vld [vmem:[%s820 + $0x38c] sm:$0xf]
          %v2467 = vld [vmem:[%s820 + $0x390] sm:$0xf]
          %v2468 = vld [vmem:[%s820 + $0x394] sm:$0xf]
          %v2469 = vld [vmem:[%s820 + $0x398] sm:$0xf]
          %v2470 = vld [vmem:[%s820 + $0x39c] sm:$0xf]
          %v2471 = vld [vmem:[%s820 + $0x3a0] sm:$0xf]
          %v2472 = vld [vmem:[%s820 + $0x3a4] sm:$0xf]
          %v2473 = vld [vmem:[%s820 + $0x3a8] sm:$0xf]
          %v2474 = vld [vmem:[%s820 + $0x3ac] sm:$0xf]
          %v2475 = vld [vmem:[%s820 + $0x3b0] sm:$0xf]
          %v2476 = vld [vmem:[%s820 + $0x3b4] sm:$0xf]
          %v2477 = vld [vmem:[%s820 + $0x3b8] sm:$0xf]
          %v2478 = vld [vmem:[%s820 + $0x3bc] sm:$0xf]
          %v2479 = vld [vmem:[%s820 + $0x3c0] sm:$0xf]
          %v2480 = vld [vmem:[%s820 + $0x3c4] sm:$0xf]
          %v2481 = vld [vmem:[%s820 + $0x3c8] sm:$0xf]
          %v2482 = vld [vmem:[%s820 + $0x3cc] sm:$0xf]
          %v2483 = vld [vmem:[%s820 + $0x3d0] sm:$0xf]
          %v2484 = vld [vmem:[%s820 + $0x3d4] sm:$0xf]
          %v2485 = vld [vmem:[%s820 + $0x3d8] sm:$0xf]
          %v2486 = vld [vmem:[%s820 + $0x3dc] sm:$0xf]
          %v2487 = vld [vmem:[%s820 + $0x3e0] sm:$0xf]
          %v2488 = vld [vmem:[%s820 + $0x3e4] sm:$0xf]
          %v2489 = vld [vmem:[%s820 + $0x3e8] sm:$0xf]
          %v2490 = vld [vmem:[%s820 + $0x3ec] sm:$0xf]
          %v2491 = vld [vmem:[%s820 + $0x3f0] sm:$0xf]
          %v2492 = vld [vmem:[%s820 + $0x3f4] sm:$0xf]
          %v2493 = vld [vmem:[%s820 + $0x3f8] sm:$0xf]
          %v2494 = vld [vmem:[%s820 + $0x3fc] sm:$0xf]
          %v2495 = vld [vmem:[%s823] sm:$0x1]
          %v2497 = vlaneseq
          %v2498 = vshrl.u32 %v2497, 7
          %v2499 = vsub.s32 0, %v2498
          %v2500 = vrot.slane %v2495, %v2499
          %v2758 = vunpack.c.l.b16 %v2239
          %v2759 = vunpack.c.l.b16 %v2240
          %v2760 = vunpack.c.l.b16 %v2241
          %v2761 = vunpack.c.l.b16 %v2242
          %v2762 = vunpack.c.l.b16 %v2243
          %v2763 = vunpack.c.l.b16 %v2244
          %v2764 = vunpack.c.l.b16 %v2245
          %v2765 = vunpack.c.l.b16 %v2246
          %v2766 = vunpack.c.l.b16 %v2247
          %v2767 = vunpack.c.l.b16 %v2248
          %v2768 = vunpack.c.l.b16 %v2249
          %v2769 = vunpack.c.l.b16 %v2250
          %v2770 = vunpack.c.l.b16 %v2251
          %v2771 = vunpack.c.l.b16 %v2252
          %v2772 = vunpack.c.l.b16 %v2253
          %v2773 = vunpack.c.l.b16 %v2254
          %v2774 = vunpack.c.l.b16 %v2255
          %v2775 = vunpack.c.l.b16 %v2256
          %v2776 = vunpack.c.l.b16 %v2257
          %v2777 = vunpack.c.l.b16 %v2258
          %v2778 = vunpack.c.l.b16 %v2259
          %v2779 = vunpack.c.l.b16 %v2260
          %v2780 = vunpack.c.l.b16 %v2261
          %v2781 = vunpack.c.l.b16 %v2262
          %v2782 = vunpack.c.l.b16 %v2263
          %v2783 = vunpack.c.l.b16 %v2264
          %v2784 = vunpack.c.l.b16 %v2265
          %v2785 = vunpack.c.l.b16 %v2266
          %v2786 = vunpack.c.l.b16 %v2267
          %v2787 = vunpack.c.l.b16 %v2268
          %v2788 = vunpack.c.l.b16 %v2269
          %v2789 = vunpack.c.l.b16 %v2270
          %v2790 = vunpack.c.l.b16 %v2271
          %v2791 = vunpack.c.l.b16 %v2272
          %v2792 = vunpack.c.l.b16 %v2273
          %v2793 = vunpack.c.l.b16 %v2274
          %v2794 = vunpack.c.l.b16 %v2275
          %v2795 = vunpack.c.l.b16 %v2276
          %v2796 = vunpack.c.l.b16 %v2277
          %v2797 = vunpack.c.l.b16 %v2278
          %v2798 = vunpack.c.l.b16 %v2279
          %v2799 = vunpack.c.l.b16 %v2280
          %v2800 = vunpack.c.l.b16 %v2281
          %v2801 = vunpack.c.l.b16 %v2282
          %v2802 = vunpack.c.l.b16 %v2283
          %v2803 = vunpack.c.l.b16 %v2284
          %v2804 = vunpack.c.l.b16 %v2285
          %v2805 = vunpack.c.l.b16 %v2286
          %v2806 = vunpack.c.l.b16 %v2287
          %v2807 = vunpack.c.l.b16 %v2288
          %v2808 = vunpack.c.l.b16 %v2289
          %v2809 = vunpack.c.l.b16 %v2290
          %v2810 = vunpack.c.l.b16 %v2291
          %v2811 = vunpack.c.l.b16 %v2292
          %v2812 = vunpack.c.l.b16 %v2293
          %v2813 = vunpack.c.l.b16 %v2294
          %v2814 = vunpack.c.l.b16 %v2295
          %v2815 = vunpack.c.l.b16 %v2296
          %v2816 = vunpack.c.l.b16 %v2297
          %v2817 = vunpack.c.l.b16 %v2298
          %v2818 = vunpack.c.l.b16 %v2299
          %v2819 = vunpack.c.l.b16 %v2300
          %v2820 = vunpack.c.l.b16 %v2301
          %v2821 = vunpack.c.l.b16 %v2302
          %v2822 = vunpack.c.l.b16 %v2303
          %v2823 = vunpack.c.l.b16 %v2304
          %v2824 = vunpack.c.l.b16 %v2305
          %v2825 = vunpack.c.l.b16 %v2306
          %v2826 = vunpack.c.l.b16 %v2307
          %v2827 = vunpack.c.l.b16 %v2308
          %v2828 = vunpack.c.l.b16 %v2309
          %v2829 = vunpack.c.l.b16 %v2310
          %v2830 = vunpack.c.l.b16 %v2311
          %v2831 = vunpack.c.l.b16 %v2312
          %v2832 = vunpack.c.l.b16 %v2313
          %v2833 = vunpack.c.l.b16 %v2314
          %v2834 = vunpack.c.l.b16 %v2315
          %v2835 = vunpack.c.l.b16 %v2316
          %v2836 = vunpack.c.l.b16 %v2317
          %v2837 = vunpack.c.l.b16 %v2318
          %v2838 = vunpack.c.l.b16 %v2319
          %v2839 = vunpack.c.l.b16 %v2320
          %v2840 = vunpack.c.l.b16 %v2321
          %v2841 = vunpack.c.l.b16 %v2322
          %v2842 = vunpack.c.l.b16 %v2323
          %v2843 = vunpack.c.l.b16 %v2324
          %v2844 = vunpack.c.l.b16 %v2325
          %v2845 = vunpack.c.l.b16 %v2326
          %v2846 = vunpack.c.l.b16 %v2327
          %v2847 = vunpack.c.l.b16 %v2328
          %v2848 = vunpack.c.l.b16 %v2329
          %v2849 = vunpack.c.l.b16 %v2330
          %v2850 = vunpack.c.l.b16 %v2331
          %v2851 = vunpack.c.l.b16 %v2332
          %v2852 = vunpack.c.l.b16 %v2333
          %v2853 = vunpack.c.l.b16 %v2334
          %v2854 = vunpack.c.l.b16 %v2335
          %v2855 = vunpack.c.l.b16 %v2336
          %v2856 = vunpack.c.l.b16 %v2337
          %v2857 = vunpack.c.l.b16 %v2338
          %v2858 = vunpack.c.l.b16 %v2339
          %v2859 = vunpack.c.l.b16 %v2340
          %v2860 = vunpack.c.l.b16 %v2341
          %v2861 = vunpack.c.l.b16 %v2342
          %v2862 = vunpack.c.l.b16 %v2343
          %v2863 = vunpack.c.l.b16 %v2344
          %v2864 = vunpack.c.l.b16 %v2345
          %v2865 = vunpack.c.l.b16 %v2346
          %v2866 = vunpack.c.l.b16 %v2347
          %v2867 = vunpack.c.l.b16 %v2348
          %v2868 = vunpack.c.l.b16 %v2349
          %v2869 = vunpack.c.l.b16 %v2350
          %v2870 = vunpack.c.l.b16 %v2351
          %v2871 = vunpack.c.l.b16 %v2352
          %v2872 = vunpack.c.l.b16 %v2353
          %v2873 = vunpack.c.l.b16 %v2354
          %v2874 = vunpack.c.l.b16 %v2355
          %v2875 = vunpack.c.l.b16 %v2356
          %v2876 = vunpack.c.l.b16 %v2357
          %v2877 = vunpack.c.l.b16 %v2358
          %v2878 = vunpack.c.l.b16 %v2359
          %v2879 = vunpack.c.l.b16 %v2360
          %v2880 = vunpack.c.l.b16 %v2361
          %v2881 = vunpack.c.l.b16 %v2362
          %v2882 = vunpack.c.l.b16 %v2363
          %v2883 = vunpack.c.l.b16 %v2364
          %v2884 = vunpack.c.l.b16 %v2365
          %v2885 = vunpack.c.l.b16 %v2366
          %v2886 = vunpack.c.l.b16 %v2367
          %v2887 = vunpack.c.l.b16 %v2368
          %v2888 = vunpack.c.l.b16 %v2369
          %v2889 = vunpack.c.l.b16 %v2370
          %v2890 = vunpack.c.l.b16 %v2371
          %v2891 = vunpack.c.l.b16 %v2372
          %v2892 = vunpack.c.l.b16 %v2373
          %v2893 = vunpack.c.l.b16 %v2374
          %v2894 = vunpack.c.l.b16 %v2375
          %v2895 = vunpack.c.l.b16 %v2376
          %v2896 = vunpack.c.l.b16 %v2377
          %v2897 = vunpack.c.l.b16 %v2378
          %v2898 = vunpack.c.l.b16 %v2379
          %v2899 = vunpack.c.l.b16 %v2380
          %v2900 = vunpack.c.l.b16 %v2381
          %v2901 = vunpack.c.l.b16 %v2382
          %v2902 = vunpack.c.l.b16 %v2383
          %v2903 = vunpack.c.l.b16 %v2384
          %v2904 = vunpack.c.l.b16 %v2385
          %v2905 = vunpack.c.l.b16 %v2386
          %v2906 = vunpack.c.l.b16 %v2387
          %v2907 = vunpack.c.l.b16 %v2388
          %v2908 = vunpack.c.l.b16 %v2389
          %v2909 = vunpack.c.l.b16 %v2390
          %v2910 = vunpack.c.l.b16 %v2391
          %v2911 = vunpack.c.l.b16 %v2392
          %v2912 = vunpack.c.l.b16 %v2393
          %v2913 = vunpack.c.l.b16 %v2394
          %v2914 = vunpack.c.l.b16 %v2395
          %v2915 = vunpack.c.l.b16 %v2396
          %v2916 = vunpack.c.l.b16 %v2397
          %v2917 = vunpack.c.l.b16 %v2398
          %v2918 = vunpack.c.l.b16 %v2399
          %v2919 = vunpack.c.l.b16 %v2400
          %v2920 = vunpack.c.l.b16 %v2401
          %v2921 = vunpack.c.l.b16 %v2402
          %v2922 = vunpack.c.l.b16 %v2403
          %v2923 = vunpack.c.l.b16 %v2404
          %v2924 = vunpack.c.l.b16 %v2405
          %v2925 = vunpack.c.l.b16 %v2406
          %v2926 = vunpack.c.l.b16 %v2407
          %v2927 = vunpack.c.l.b16 %v2408
          %v2928 = vunpack.c.l.b16 %v2409
          %v2929 = vunpack.c.l.b16 %v2410
          %v2930 = vunpack.c.l.b16 %v2411
          %v2931 = vunpack.c.l.b16 %v2412
          %v2932 = vunpack.c.l.b16 %v2413
          %v2933 = vunpack.c.l.b16 %v2414
          %v2934 = vunpack.c.l.b16 %v2415
          %v2935 = vunpack.c.l.b16 %v2416
          %v2936 = vunpack.c.l.b16 %v2417
          %v2937 = vunpack.c.l.b16 %v2418
          %v2938 = vunpack.c.l.b16 %v2419
          %v2939 = vunpack.c.l.b16 %v2420
          %v2940 = vunpack.c.l.b16 %v2421
          %v2941 = vunpack.c.l.b16 %v2422
          %v2942 = vunpack.c.l.b16 %v2423
          %v2943 = vunpack.c.l.b16 %v2424
          %v2944 = vunpack.c.l.b16 %v2425
          %v2945 = vunpack.c.l.b16 %v2426
          %v2946 = vunpack.c.l.b16 %v2427
          %v2947 = vunpack.c.l.b16 %v2428
          %v2948 = vunpack.c.l.b16 %v2429
          %v2949 = vunpack.c.l.b16 %v2430
          %v2950 = vunpack.c.l.b16 %v2431
          %v2951 = vunpack.c.l.b16 %v2432
          %v2952 = vunpack.c.l.b16 %v2433
          %v2953 = vunpack.c.l.b16 %v2434
          %v2954 = vunpack.c.l.b16 %v2435
          %v2955 = vunpack.c.l.b16 %v2436
          %v2956 = vunpack.c.l.b16 %v2437
          %v2957 = vunpack.c.l.b16 %v2438
          %v2958 = vunpack.c.l.b16 %v2439
          %v2959 = vunpack.c.l.b16 %v2440
          %v2960 = vunpack.c.l.b16 %v2441
          %v2961 = vunpack.c.l.b16 %v2442
          %v2962 = vunpack.c.l.b16 %v2443
          %v2963 = vunpack.c.l.b16 %v2444
          %v2964 = vunpack.c.l.b16 %v2445
          %v2965 = vunpack.c.l.b16 %v2446
          %v2966 = vunpack.c.l.b16 %v2447
          %v2967 = vunpack.c.l.b16 %v2448
          %v2968 = vunpack.c.l.b16 %v2449
          %v2969 = vunpack.c.l.b16 %v2450
          %v2970 = vunpack.c.l.b16 %v2451
          %v2971 = vunpack.c.l.b16 %v2452
          %v2972 = vunpack.c.l.b16 %v2453
          %v2973 = vunpack.c.l.b16 %v2454
          %v2974 = vunpack.c.l.b16 %v2455
          %v2975 = vunpack.c.l.b16 %v2456
          %v2976 = vunpack.c.l.b16 %v2457
          %v2977 = vunpack.c.l.b16 %v2458
          %v2978 = vunpack.c.l.b16 %v2459
          %v2979 = vunpack.c.l.b16 %v2460
          %v2980 = vunpack.c.l.b16 %v2461
          %v2981 = vunpack.c.l.b16 %v2462
          %v2982 = vunpack.c.l.b16 %v2463
          %v2983 = vunpack.c.l.b16 %v2464
          %v2984 = vunpack.c.l.b16 %v2465
          %v2985 = vunpack.c.l.b16 %v2466
          %v2986 = vunpack.c.l.b16 %v2467
          %v2987 = vunpack.c.l.b16 %v2468
          %v2988 = vunpack.c.l.b16 %v2469
          %v2989 = vunpack.c.l.b16 %v2470
          %v2990 = vunpack.c.l.b16 %v2471
          %v2991 = vunpack.c.l.b16 %v2472
          %v2992 = vunpack.c.l.b16 %v2473
          %v2993 = vunpack.c.l.b16 %v2474
          %v2994 = vunpack.c.l.b16 %v2475
          %v2995 = vunpack.c.l.b16 %v2476
          %v2996 = vunpack.c.l.b16 %v2477
          %v2997 = vunpack.c.l.b16 %v2478
          %v2998 = vunpack.c.l.b16 %v2479
          %v2999 = vunpack.c.l.b16 %v2480
          %v3000 = vunpack.c.l.b16 %v2481
          %v3001 = vunpack.c.l.b16 %v2482
          %v3002 = vunpack.c.l.b16 %v2483
          %v3003 = vunpack.c.l.b16 %v2484
          %v3004 = vunpack.c.l.b16 %v2485
          %v3005 = vunpack.c.l.b16 %v2486
          %v3006 = vunpack.c.l.b16 %v2487
          %v3007 = vunpack.c.l.b16 %v2488
          %v3008 = vunpack.c.l.b16 %v2489
          %v3009 = vunpack.c.l.b16 %v2490
          %v3010 = vunpack.c.l.b16 %v2491
          %v3011 = vunpack.c.l.b16 %v2492
          %v3012 = vunpack.c.l.b16 %v2493
          %v3013 = vunpack.c.l.b16 %v2494
          %v3014 = vpack.c.b16 %v2759, %v2758
          %v3015 = vpack.c.b16 %v2761, %v2760
          %v3016 = vpack.c.b16 %v2763, %v2762
          %v3017 = vpack.c.b16 %v2765, %v2764
          %v3018 = vpack.c.b16 %v2767, %v2766
          %v3019 = vpack.c.b16 %v2769, %v2768
          %v3020 = vpack.c.b16 %v2771, %v2770
          %v3021 = vpack.c.b16 %v2773, %v2772
          %v3022 = vpack.c.b16 %v2775, %v2774
          %v3023 = vpack.c.b16 %v2777, %v2776
          %v3024 = vpack.c.b16 %v2779, %v2778
          %v3025 = vpack.c.b16 %v2781, %v2780
          %v3026 = vpack.c.b16 %v2783, %v2782
          %v3027 = vpack.c.b16 %v2785, %v2784
          %v3028 = vpack.c.b16 %v2787, %v2786
          %v3029 = vpack.c.b16 %v2789, %v2788
          %v3030 = vpack.c.b16 %v2791, %v2790
          %v3031 = vpack.c.b16 %v2793, %v2792
          %v3032 = vpack.c.b16 %v2795, %v2794
          %v3033 = vpack.c.b16 %v2797, %v2796
          %v3034 = vpack.c.b16 %v2799, %v2798
          %v3035 = vpack.c.b16 %v2801, %v2800
          %v3036 = vpack.c.b16 %v2803, %v2802
          %v3037 = vpack.c.b16 %v2805, %v2804
          %v3038 = vpack.c.b16 %v2807, %v2806
          %v3039 = vpack.c.b16 %v2809, %v2808
          %v3040 = vpack.c.b16 %v2811, %v2810
          %v3041 = vpack.c.b16 %v2813, %v2812
          %v3042 = vpack.c.b16 %v2815, %v2814
          %v3043 = vpack.c.b16 %v2817, %v2816
          %v3044 = vpack.c.b16 %v2819, %v2818
          %v3045 = vpack.c.b16 %v2821, %v2820
          %v3046 = vpack.c.b16 %v2823, %v2822
          %v3047 = vpack.c.b16 %v2825, %v2824
          %v3048 = vpack.c.b16 %v2827, %v2826
          %v3049 = vpack.c.b16 %v2829, %v2828
          %v3050 = vpack.c.b16 %v2831, %v2830
          %v3051 = vpack.c.b16 %v2833, %v2832
          %v3052 = vpack.c.b16 %v2835, %v2834
          %v3053 = vpack.c.b16 %v2837, %v2836
          %v3054 = vpack.c.b16 %v2839, %v2838
          %v3055 = vpack.c.b16 %v2841, %v2840
          %v3056 = vpack.c.b16 %v2843, %v2842
          %v3057 = vpack.c.b16 %v2845, %v2844
          %v3058 = vpack.c.b16 %v2847, %v2846
          %v3059 = vpack.c.b16 %v2849, %v2848
          %v3060 = vpack.c.b16 %v2851, %v2850
          %v3061 = vpack.c.b16 %v2853, %v2852
          %v3062 = vpack.c.b16 %v2855, %v2854
          %v3063 = vpack.c.b16 %v2857, %v2856
          %v3064 = vpack.c.b16 %v2859, %v2858
          %v3065 = vpack.c.b16 %v2861, %v2860
          %v3066 = vpack.c.b16 %v2863, %v2862
          %v3067 = vpack.c.b16 %v2865, %v2864
          %v3068 = vpack.c.b16 %v2867, %v2866
          %v3069 = vpack.c.b16 %v2869, %v2868
          %v3070 = vpack.c.b16 %v2871, %v2870
          %v3071 = vpack.c.b16 %v2873, %v2872
          %v3072 = vpack.c.b16 %v2875, %v2874
          %v3073 = vpack.c.b16 %v2877, %v2876
          %v3074 = vpack.c.b16 %v2879, %v2878
          %v3075 = vpack.c.b16 %v2881, %v2880
          %v3076 = vpack.c.b16 %v2883, %v2882
          %v3077 = vpack.c.b16 %v2885, %v2884
          %v3078 = vpack.c.b16 %v2887, %v2886
          %v3079 = vpack.c.b16 %v2889, %v2888
          %v3080 = vpack.c.b16 %v2891, %v2890
          %v3081 = vpack.c.b16 %v2893, %v2892
          %v3082 = vpack.c.b16 %v2895, %v2894
          %v3083 = vpack.c.b16 %v2897, %v2896
          %v3084 = vpack.c.b16 %v2899, %v2898
          %v3085 = vpack.c.b16 %v2901, %v2900
          %v3086 = vpack.c.b16 %v2903, %v2902
          %v3087 = vpack.c.b16 %v2905, %v2904
          %v3088 = vpack.c.b16 %v2907, %v2906
          %v3089 = vpack.c.b16 %v2909, %v2908
          %v3090 = vpack.c.b16 %v2911, %v2910
          %v3091 = vpack.c.b16 %v2913, %v2912
          %v3092 = vpack.c.b16 %v2915, %v2914
          %v3093 = vpack.c.b16 %v2917, %v2916
          %v3094 = vpack.c.b16 %v2919, %v2918
          %v3095 = vpack.c.b16 %v2921, %v2920
          %v3096 = vpack.c.b16 %v2923, %v2922
          %v3097 = vpack.c.b16 %v2925, %v2924
          %v3098 = vpack.c.b16 %v2927, %v2926
          %v3099 = vpack.c.b16 %v2929, %v2928
          %v3100 = vpack.c.b16 %v2931, %v2930
          %v3101 = vpack.c.b16 %v2933, %v2932
          %v3102 = vpack.c.b16 %v2935, %v2934
          %v3103 = vpack.c.b16 %v2937, %v2936
          %v3104 = vpack.c.b16 %v2939, %v2938
          %v3105 = vpack.c.b16 %v2941, %v2940
          %v3106 = vpack.c.b16 %v2943, %v2942
          %v3107 = vpack.c.b16 %v2945, %v2944
          %v3108 = vpack.c.b16 %v2947, %v2946
          %v3109 = vpack.c.b16 %v2949, %v2948
          %v3110 = vpack.c.b16 %v2951, %v2950
          %v3111 = vpack.c.b16 %v2953, %v2952
          %v3112 = vpack.c.b16 %v2955, %v2954
          %v3113 = vpack.c.b16 %v2957, %v2956
          %v3114 = vpack.c.b16 %v2959, %v2958
          %v3115 = vpack.c.b16 %v2961, %v2960
          %v3116 = vpack.c.b16 %v2963, %v2962
          %v3117 = vpack.c.b16 %v2965, %v2964
          %v3118 = vpack.c.b16 %v2967, %v2966
          %v3119 = vpack.c.b16 %v2969, %v2968
          %v3120 = vpack.c.b16 %v2971, %v2970
          %v3121 = vpack.c.b16 %v2973, %v2972
          %v3122 = vpack.c.b16 %v2975, %v2974
          %v3123 = vpack.c.b16 %v2977, %v2976
          %v3124 = vpack.c.b16 %v2979, %v2978
          %v3125 = vpack.c.b16 %v2981, %v2980
          %v3126 = vpack.c.b16 %v2983, %v2982
          %v3127 = vpack.c.b16 %v2985, %v2984
          %v3128 = vpack.c.b16 %v2987, %v2986
          %v3129 = vpack.c.b16 %v2989, %v2988
          %v3130 = vpack.c.b16 %v2991, %v2990
          %v3131 = vpack.c.b16 %v2993, %v2992
          %v3132 = vpack.c.b16 %v2995, %v2994
          %v3133 = vpack.c.b16 %v2997, %v2996
          %v3134 = vpack.c.b16 %v2999, %v2998
          %v3135 = vpack.c.b16 %v3001, %v3000
          %v3136 = vpack.c.b16 %v3003, %v3002
          %v3137 = vpack.c.b16 %v3005, %v3004
          %v3138 = vpack.c.b16 %v3007, %v3006
          %v3139 = vpack.c.b16 %v3009, %v3008
          %v3140 = vpack.c.b16 %v3011, %v3010
          %v3141 = vpack.c.b16 %v3013, %v3012
          %3270 = vmatprep.subr.bf16.mxu0 0
          %3271 = vmatpush1.bf16.msra.mxu0 %v3014
          %3272 = vmatprep.subr.bf16.mxu0 0
          %3273 = vmatpush1.bf16.msra.mxu0 %v3015
          %3274 = vmatprep.subr.bf16.mxu0 0
          %3275 = vmatpush1.bf16.msra.mxu0 %v3016
          %3276 = vmatprep.subr.bf16.mxu0 0
          %3277 = vmatpush1.bf16.msra.mxu0 %v3017
          %3278 = vmatprep.subr.bf16.mxu0 0
          %3279 = vmatpush1.bf16.msra.mxu0 %v3018
          %3280 = vmatprep.subr.bf16.mxu0 0
          %3281 = vmatpush1.bf16.msra.mxu0 %v3019
          %3282 = vmatprep.subr.bf16.mxu0 0
          %3283 = vmatpush1.bf16.msra.mxu0 %v3020
          %3284 = vmatprep.subr.bf16.mxu0 0
          %3285 = vmatpush1.bf16.msra.mxu0 %v3021
          %3286 = vmatprep.subr.bf16.mxu0 0
          %3287 = vmatpush1.bf16.msra.mxu0 %v3022
          %3288 = vmatprep.subr.bf16.mxu0 0
          %3289 = vmatpush1.bf16.msra.mxu0 %v3023
          %3290 = vmatprep.subr.bf16.mxu0 0
          %3291 = vmatpush1.bf16.msra.mxu0 %v3024
          %3292 = vmatprep.subr.bf16.mxu0 0
          %3293 = vmatpush1.bf16.msra.mxu0 %v3025
          %3294 = vmatprep.subr.bf16.mxu0 0
          %3295 = vmatpush1.bf16.msra.mxu0 %v3026
          %3296 = vmatprep.subr.bf16.mxu0 0
          %3297 = vmatpush1.bf16.msra.mxu0 %v3027
          %3298 = vmatprep.subr.bf16.mxu0 0
          %3299 = vmatpush1.bf16.msra.mxu0 %v3028
          %3300 = vmatprep.subr.bf16.mxu0 0
          %3301 = vmatpush1.bf16.msra.mxu0 %v3029
          %3302 = vmatprep.mubr.bf16.mxu0 %v2208
          %3303 = vmatmul.mubr.bf16.gmra.mrb[0].mxu0 %v2207
          %v3304 = vpop.f32.mrb[0].mxu0
          %v3305 = vadd.f32 %v2500, %v3304
          %v3306 = vpop.f32.mrb[0].mxu0
          %v3307 = vpop.f32.mrb[0].mxu0
          %v3308 = vadd.f32 %v2500, %v3307
          %v3309 = vpop.f32.mrb[0].mxu0
          %3310 = vmatprep.mubr.bf16.mxu0 %v2224
          %3311 = vmatmul.mubr.bf16.gmra.mrb[0].mxu0 %v2223
          %v3312 = vpop.f32.mrb[0].mxu0
          %v3313 = vadd.f32 %v2500, %v3312
          %v3314 = vpop.f32.mrb[0].mxu0
          %v3315 = vpop.f32.mrb[0].mxu0
          %v3316 = vadd.f32 %v2500, %v3315
          %v3317 = vpop.f32.mrb[0].mxu0
          %3318 = vdwg.mxu0
          %3319 = vmatprep.subr.bf16.mxu0 0
          %3320 = vmatpush1.bf16.msra.mxu0 %v3030
          %3321 = vmatprep.subr.bf16.mxu0 0
          %3322 = vmatpush1.bf16.msra.mxu0 %v3031
          %3323 = vmatprep.subr.bf16.mxu0 0
          %3324 = vmatpush1.bf16.msra.mxu0 %v3032
          %3325 = vmatprep.subr.bf16.mxu0 0
          %3326 = vmatpush1.bf16.msra.mxu0 %v3033
          %3327 = vmatprep.subr.bf16.mxu0 0
          %3328 = vmatpush1.bf16.msra.mxu0 %v3034
          %3329 = vmatprep.subr.bf16.mxu0 0
          %3330 = vmatpush1.bf16.msra.mxu0 %v3035
          %3331 = vmatprep.subr.bf16.mxu0 0
          %3332 = vmatpush1.bf16.msra.mxu0 %v3036
          %3333 = vmatprep.subr.bf16.mxu0 0
          %3334 = vmatpush1.bf16.msra.mxu0 %v3037
          %3335 = vmatprep.subr.bf16.mxu0 0
          %3336 = vmatpush1.bf16.msra.mxu0 %v3038
          %3337 = vmatprep.subr.bf16.mxu0 0
          %3338 = vmatpush1.bf16.msra.mxu0 %v3039
          %3339 = vmatprep.subr.bf16.mxu0 0
          %3340 = vmatpush1.bf16.msra.mxu0 %v3040
          %3341 = vmatprep.subr.bf16.mxu0 0
          %3342 = vmatpush1.bf16.msra.mxu0 %v3041
          %3343 = vmatprep.subr.bf16.mxu0 0
          %3344 = vmatpush1.bf16.msra.mxu0 %v3042
          %3345 = vmatprep.subr.bf16.mxu0 0
          %3346 = vmatpush1.bf16.msra.mxu0 %v3043
          %3347 = vmatprep.subr.bf16.mxu0 0
          %3348 = vmatpush1.bf16.msra.mxu0 %v3044
          %3349 = vmatprep.subr.bf16.mxu0 0
          %3350 = vmatpush1.bf16.msra.mxu0 %v3045
          %3351 = vmatprep.mubr.bf16.mxu0 %v2210
          %3352 = vmatmul.mubr.bf16.gmra.mrb[0].mxu0 %v2209
          %v3353 = vpop.f32.mrb[0].mxu0
          %v3354 = vadd.f32 %v3305, %v3353
          %v3355 = vpop.f32.mrb[0].mxu0
          %v3356 = vpop.f32.mrb[0].mxu0
          %v3357 = vadd.f32 %v3308, %v3356
          %v3358 = vpop.f32.mrb[0].mxu0
          %3359 = vmatprep.mubr.bf16.mxu0 %v2226
          %3360 = vmatmul.mubr.bf16.gmra.mrb[0].mxu0 %v2225
          %v3361 = vpop.f32.mrb[0].mxu0
          %v3362 = vadd.f32 %v3313, %v3361
          %v3363 = vpop.f32.mrb[0].mxu0
          %v3364 = vpop.f32.mrb[0].mxu0
          %v3365 = vadd.f32 %v3316, %v3364
          %v3366 = vpop.f32.mrb[0].mxu0
          %3367 = vdwg.mxu0
          %3368 = vmatprep.subr.bf16.mxu0 0
          %3369 = vmatpush1.bf16.msra.mxu0 %v3046
          %3370 = vmatprep.subr.bf16.mxu0 0
          %3371 = vmatpush1.bf16.msra.mxu0 %v3047
          %3372 = vmatprep.subr.bf16.mxu0 0
          %3373 = vmatpush1.bf16.msra.mxu0 %v3048
          %3374 = vmatprep.subr.bf16.mxu0 0
          %3375 = vmatpush1.bf16.msra.mxu0 %v3049
          %3376 = vmatprep.subr.bf16.mxu0 0
          %3377 = vmatpush1.bf16.msra.mxu0 %v3050
          %3378 = vmatprep.subr.bf16.mxu0 0
          %3379 = vmatpush1.bf16.msra.mxu0 %v3051
          %3380 = vmatprep.subr.bf16.mxu0 0
          %3381 = vmatpush1.bf16.msra.mxu0 %v3052
          %3382 = vmatprep.subr.bf16.mxu0 0
          %3383 = vmatpush1.bf16.msra.mxu0 %v3053
          %3384 = vmatprep.subr.bf16.mxu0 0
          %3385 = vmatpush1.bf16.msra.mxu0 %v3054
          %3386 = vmatprep.subr.bf16.mxu0 0
          %3387 = vmatpush1.bf16.msra.mxu0 %v3055
          %3388 = vmatprep.subr.bf16.mxu0 0
          %3389 = vmatpush1.bf16.msra.mxu0 %v3056
          %3390 = vmatprep.subr.bf16.mxu0 0
          %3391 = vmatpush1.bf16.msra.mxu0 %v3057
          %3392 = vmatprep.subr.bf16.mxu0 0
          %3393 = vmatpush1.bf16.msra.mxu0 %v3058
          %3394 = vmatprep.subr.bf16.mxu0 0
          %3395 = vmatpush1.bf16.msra.mxu0 %v3059
          %3396 = vmatprep.subr.bf16.mxu0 0
          %3397 = vmatpush1.bf16.msra.mxu0 %v3060
          %3398 = vmatprep.subr.bf16.mxu0 0
          %3399 = vmatpush1.bf16.msra.mxu0 %v3061
          %3400 = vmatprep.mubr.bf16.mxu0 %v2212
          %3401 = vmatmul.mubr.bf16.gmra.mrb[0].mxu0 %v2211
          %v3402 = vpop.f32.mrb[0].mxu0
          %v3403 = vadd.f32 %v3354, %v3402
          %v3404 = vpop.f32.mrb[0].mxu0
          %v3405 = vpop.f32.mrb[0].mxu0
          %v3406 = vadd.f32 %v3357, %v3405
          %v3407 = vpop.f32.mrb[0].mxu0
          %3408 = vmatprep.mubr.bf16.mxu0 %v2228
          %3409 = vmatmul.mubr.bf16.gmra.mrb[0].mxu0 %v2227
          %v3410 = vpop.f32.mrb[0].mxu0
          %v3411 = vadd.f32 %v3362, %v3410
          %v3412 = vpop.f32.mrb[0].mxu0
          %v3413 = vpop.f32.mrb[0].mxu0
          %v3414 = vadd.f32 %v3365, %v3413
          %v3415 = vpop.f32.mrb[0].mxu0
          %3416 = vdwg.mxu0
          %3417 = vmatprep.subr.bf16.mxu0 0
          %3418 = vmatpush1.bf16.msra.mxu0 %v3062
          %3419 = vmatprep.subr.bf16.mxu0 0
          %3420 = vmatpush1.bf16.msra.mxu0 %v3063
          %3421 = vmatprep.subr.bf16.mxu0 0
          %3422 = vmatpush1.bf16.msra.mxu0 %v3064
          %3423 = vmatprep.subr.bf16.mxu0 0
          %3424 = vmatpush1.bf16.msra.mxu0 %v3065
          %3425 = vmatprep.subr.bf16.mxu0 0
          %3426 = vmatpush1.bf16.msra.mxu0 %v3066
          %3427 = vmatprep.subr.bf16.mxu0 0
          %3428 = vmatpush1.bf16.msra.mxu0 %v3067
          %3429 = vmatprep.subr.bf16.mxu0 0
          %3430 = vmatpush1.bf16.msra.mxu0 %v3068
          %3431 = vmatprep.subr.bf16.mxu0 0
          %3432 = vmatpush1.bf16.msra.mxu0 %v3069
          %3433 = vmatprep.subr.bf16.mxu0 0
          %3434 = vmatpush1.bf16.msra.mxu0 %v3070
          %3435 = vmatprep.subr.bf16.mxu0 0
          %3436 = vmatpush1.bf16.msra.mxu0 %v3071
          %3437 = vmatprep.subr.bf16.mxu0 0
          %3438 = vmatpush1.bf16.msra.mxu0 %v3072
          %3439 = vmatprep.subr.bf16.mxu0 0
          %3440 = vmatpush1.bf16.msra.mxu0 %v3073
          %3441 = vmatprep.subr.bf16.mxu0 0
          %3442 = vmatpush1.bf16.msra.mxu0 %v3074
          %3443 = vmatprep.subr.bf16.mxu0 0
          %3444 = vmatpush1.bf16.msra.mxu0 %v3075
          %3445 = vmatprep.subr.bf16.mxu0 0
          %3446 = vmatpush1.bf16.msra.mxu0 %v3076
          %3447 = vmatprep.subr.bf16.mxu0 0
          %3448 = vmatpush1.bf16.msra.mxu0 %v3077
          %3449 = vmatprep.mubr.bf16.mxu0 %v2214
          %3450 = vmatmul.mubr.bf16.gmra.mrb[0].mxu0 %v2213
          %v3451 = vpop.f32.mrb[0].mxu0
          %v3452 = vadd.f32 %v3403, %v3451
          %v3453 = vpop.f32.mrb[0].mxu0
          %v3454 = vpop.f32.mrb[0].mxu0
          %v3455 = vadd.f32 %v3406, %v3454
          %v3456 = vpop.f32.mrb[0].mxu0
          %3457 = vmatprep.mubr.bf16.mxu0 %v2230
          %3458 = vmatmul.mubr.bf16.gmra.mrb[0].mxu0 %v2229
          %v3459 = vpop.f32.mrb[0].mxu0
          %v3460 = vadd.f32 %v3411, %v3459
          %v3461 = vpop.f32.mrb[0].mxu0
          %v3462 = vpop.f32.mrb[0].mxu0
          %v3463 = vadd.f32 %v3414, %v3462
          %v3464 = vpop.f32.mrb[0].mxu0
          %3465 = vdwg.mxu0
          %3466 = vmatprep.subr.bf16.mxu0 0
          %3467 = vmatpush1.bf16.msra.mxu0 %v3078
          %3468 = vmatprep.subr.bf16.mxu0 0
          %3469 = vmatpush1.bf16.msra.mxu0 %v3079
          %3470 = vmatprep.subr.bf16.mxu0 0
          %3471 = vmatpush1.bf16.msra.mxu0 %v3080
          %3472 = vmatprep.subr.bf16.mxu0 0
          %3473 = vmatpush1.bf16.msra.mxu0 %v3081
          %3474 = vmatprep.subr.bf16.mxu0 0
          %3475 = vmatpush1.bf16.msra.mxu0 %v3082
          %3476 = vmatprep.subr.bf16.mxu0 0
          %3477 = vmatpush1.bf16.msra.mxu0 %v3083
          %3478 = vmatprep.subr.bf16.mxu0 0
          %3479 = vmatpush1.bf16.msra.mxu0 %v3084
          %3480 = vmatprep.subr.bf16.mxu0 0
          %3481 = vmatpush1.bf16.msra.mxu0 %v3085
          %3482 = vmatprep.subr.bf16.mxu0 0
          %3483 = vmatpush1.bf16.msra.mxu0 %v3086
          %3484 = vmatprep.subr.bf16.mxu0 0
          %3485 = vmatpush1.bf16.msra.mxu0 %v3087
          %3486 = vmatprep.subr.bf16.mxu0 0
          %3487 = vmatpush1.bf16.msra.mxu0 %v3088
          %3488 = vmatprep.subr.bf16.mxu0 0
          %3489 = vmatpush1.bf16.msra.mxu0 %v3089
          %3490 = vmatprep.subr.bf16.mxu0 0
          %3491 = vmatpush1.bf16.msra.mxu0 %v3090
          %3492 = vmatprep.subr.bf16.mxu0 0
          %3493 = vmatpush1.bf16.msra.mxu0 %v3091
          %3494 = vmatprep.subr.bf16.mxu0 0
          %3495 = vmatpush1.bf16.msra.mxu0 %v3092
          %3496 = vmatprep.subr.bf16.mxu0 0
          %3497 = vmatpush1.bf16.msra.mxu0 %v3093
          %3498 = vmatprep.mubr.bf16.mxu0 %v2216
          %3499 = vmatmul.mubr.bf16.gmra.mrb[0].mxu0 %v2215
          %v3500 = vpop.f32.mrb[0].mxu0
          %v3501 = vadd.f32 %v3452, %v3500
          %v3502 = vpop.f32.mrb[0].mxu0
          %v3503 = vpop.f32.mrb[0].mxu0
          %v3504 = vadd.f32 %v3455, %v3503
          %v3505 = vpop.f32.mrb[0].mxu0
          %3506 = vmatprep.mubr.bf16.mxu0 %v2232
          %3507 = vmatmul.mubr.bf16.gmra.mrb[0].mxu0 %v2231
          %v3508 = vpop.f32.mrb[0].mxu0
          %v3509 = vadd.f32 %v3460, %v3508
          %v3510 = vpop.f32.mrb[0].mxu0
          %v3511 = vpop.f32.mrb[0].mxu0
          %v3512 = vadd.f32 %v3463, %v3511
          %v3513 = vpop.f32.mrb[0].mxu0
          %3514 = vdwg.mxu0
          %3515 = vmatprep.subr.bf16.mxu0 0
          %3516 = vmatpush1.bf16.msra.mxu0 %v3094
          %3517 = vmatprep.subr.bf16.mxu0 0
          %3518 = vmatpush1.bf16.msra.mxu0 %v3095
          %3519 = vmatprep.subr.bf16.mxu0 0
          %3520 = vmatpush1.bf16.msra.mxu0 %v3096
          %3521 = vmatprep.subr.bf16.mxu0 0
          %3522 = vmatpush1.bf16.msra.mxu0 %v3097
          %3523 = vmatprep.subr.bf16.mxu0 0
          %3524 = vmatpush1.bf16.msra.mxu0 %v3098
          %3525 = vmatprep.subr.bf16.mxu0 0
          %3526 = vmatpush1.bf16.msra.mxu0 %v3099
          %3527 = vmatprep.subr.bf16.mxu0 0
          %3528 = vmatpush1.bf16.msra.mxu0 %v3100
          %3529 = vmatprep.subr.bf16.mxu0 0
          %3530 = vmatpush1.bf16.msra.mxu0 %v3101
          %3531 = vmatprep.subr.bf16.mxu0 0
          %3532 = vmatpush1.bf16.msra.mxu0 %v3102
          %3533 = vmatprep.subr.bf16.mxu0 0
          %3534 = vmatpush1.bf16.msra.mxu0 %v3103
          %3535 = vmatprep.subr.bf16.mxu0 0
          %3536 = vmatpush1.bf16.msra.mxu0 %v3104
          %3537 = vmatprep.subr.bf16.mxu0 0
          %3538 = vmatpush1.bf16.msra.mxu0 %v3105
          %3539 = vmatprep.subr.bf16.mxu0 0
          %3540 = vmatpush1.bf16.msra.mxu0 %v3106
          %3541 = vmatprep.subr.bf16.mxu0 0
          %3542 = vmatpush1.bf16.msra.mxu0 %v3107
          %3543 = vmatprep.subr.bf16.mxu0 0
          %3544 = vmatpush1.bf16.msra.mxu0 %v3108
          %3545 = vmatprep.subr.bf16.mxu0 0
          %3546 = vmatpush1.bf16.msra.mxu0 %v3109
          %3547 = vmatprep.mubr.bf16.mxu0 %v2218
          %3548 = vmatmul.mubr.bf16.gmra.mrb[0].mxu0 %v2217
          %v3549 = vpop.f32.mrb[0].mxu0
          %v3550 = vadd.f32 %v3501, %v3549
          %v3551 = vpop.f32.mrb[0].mxu0
          %v3552 = vpop.f32.mrb[0].mxu0
          %v3553 = vadd.f32 %v3504, %v3552
          %v3554 = vpop.f32.mrb[0].mxu0
          %3555 = vmatprep.mubr.bf16.mxu0 %v2234
          %3556 = vmatmul.mubr.bf16.gmra.mrb[0].mxu0 %v2233
          %v3557 = vpop.f32.mrb[0].mxu0
          %v3558 = vadd.f32 %v3509, %v3557
          %v3559 = vpop.f32.mrb[0].mxu0
          %v3560 = vpop.f32.mrb[0].mxu0
          %v3561 = vadd.f32 %v3512, %v3560
          %v3562 = vpop.f32.mrb[0].mxu0
          %3563 = vdwg.mxu0
          %3564 = vmatprep.subr.bf16.mxu0 0
          %3565 = vmatpush1.bf16.msra.mxu0 %v3110
          %3566 = vmatprep.subr.bf16.mxu0 0
          %3567 = vmatpush1.bf16.msra.mxu0 %v3111
          %3568 = vmatprep.subr.bf16.mxu0 0
          %3569 = vmatpush1.bf16.msra.mxu0 %v3112
          %3570 = vmatprep.subr.bf16.mxu0 0
          %3571 = vmatpush1.bf16.msra.mxu0 %v3113
          %3572 = vmatprep.subr.bf16.mxu0 0
          %3573 = vmatpush1.bf16.msra.mxu0 %v3114
          %3574 = vmatprep.subr.bf16.mxu0 0
          %3575 = vmatpush1.bf16.msra.mxu0 %v3115
          %3576 = vmatprep.subr.bf16.mxu0 0
          %3577 = vmatpush1.bf16.msra.mxu0 %v3116
          %3578 = vmatprep.subr.bf16.mxu0 0
          %3579 = vmatpush1.bf16.msra.mxu0 %v3117
          %3580 = vmatprep.subr.bf16.mxu0 0
          %3581 = vmatpush1.bf16.msra.mxu0 %v3118
          %3582 = vmatprep.subr.bf16.mxu0 0
          %3583 = vmatpush1.bf16.msra.mxu0 %v3119
          %3584 = vmatprep.subr.bf16.mxu0 0
          %3585 = vmatpush1.bf16.msra.mxu0 %v3120
          %3586 = vmatprep.subr.bf16.mxu0 0
          %3587 = vmatpush1.bf16.msra.mxu0 %v3121
          %3588 = vmatprep.subr.bf16.mxu0 0
          %3589 = vmatpush1.bf16.msra.mxu0 %v3122
          %3590 = vmatprep.subr.bf16.mxu0 0
          %3591 = vmatpush1.bf16.msra.mxu0 %v3123
          %3592 = vmatprep.subr.bf16.mxu0 0
          %3593 = vmatpush1.bf16.msra.mxu0 %v3124
          %3594 = vmatprep.subr.bf16.mxu0 0
          %3595 = vmatpush1.bf16.msra.mxu0 %v3125
          %3596 = vmatprep.mubr.bf16.mxu0 %v2220
          %3597 = vmatmul.mubr.bf16.gmra.mrb[0].mxu0 %v2219
          %v3598 = vpop.f32.mrb[0].mxu0
          %v3599 = vadd.f32 %v3550, %v3598
          %v3600 = vpop.f32.mrb[0].mxu0
          %v3601 = vpop.f32.mrb[0].mxu0
          %v3602 = vadd.f32 %v3553, %v3601
          %v3603 = vpop.f32.mrb[0].mxu0
          %3604 = vmatprep.mubr.bf16.mxu0 %v2236
          %3605 = vmatmul.mubr.bf16.gmra.mrb[0].mxu0 %v2235
          %v3606 = vpop.f32.mrb[0].mxu0
          %v3607 = vadd.f32 %v3558, %v3606
          %v3608 = vpop.f32.mrb[0].mxu0
          %v3609 = vpop.f32.mrb[0].mxu0
          %v3610 = vadd.f32 %v3561, %v3609
          %v3611 = vpop.f32.mrb[0].mxu0
          %3612 = vdwg.mxu0
          %3613 = vmatprep.subr.bf16.mxu0 0
          %3614 = vmatpush1.bf16.msra.mxu0 %v3126
          %3615 = vmatprep.subr.bf16.mxu0 0
          %3616 = vmatpush1.bf16.msra.mxu0 %v3127
          %3617 = vmatprep.subr.bf16.mxu0 0
          %3618 = vmatpush1.bf16.msra.mxu0 %v3128
          %3619 = vmatprep.subr.bf16.mxu0 0
          %3620 = vmatpush1.bf16.msra.mxu0 %v3129
          %3621 = vmatprep.subr.bf16.mxu0 0
          %3622 = vmatpush1.bf16.msra.mxu0 %v3130
          %3623 = vmatprep.subr.bf16.mxu0 0
          %3624 = vmatpush1.bf16.msra.mxu0 %v3131
          %3625 = vmatprep.subr.bf16.mxu0 0
          %3626 = vmatpush1.bf16.msra.mxu0 %v3132
          %3627 = vmatprep.subr.bf16.mxu0 0
          %3628 = vmatpush1.bf16.msra.mxu0 %v3133
          %3629 = vmatprep.subr.bf16.mxu0 0
          %3630 = vmatpush1.bf16.msra.mxu0 %v3134
          %3631 = vmatprep.subr.bf16.mxu0 0
          %3632 = vmatpush1.bf16.msra.mxu0 %v3135
          %3633 = vmatprep.subr.bf16.mxu0 0
          %3634 = vmatpush1.bf16.msra.mxu0 %v3136
          %3635 = vmatprep.subr.bf16.mxu0 0
          %3636 = vmatpush1.bf16.msra.mxu0 %v3137
          %3637 = vmatprep.subr.bf16.mxu0 0
          %3638 = vmatpush1.bf16.msra.mxu0 %v3138
          %3639 = vmatprep.subr.bf16.mxu0 0
          %3640 = vmatpush1.bf16.msra.mxu0 %v3139
          %3641 = vmatprep.subr.bf16.mxu0 0
          %3642 = vmatpush1.bf16.msra.mxu0 %v3140
          %3643 = vmatprep.subr.bf16.mxu0 0
          %3644 = vmatpush1.bf16.msra.mxu0 %v3141
          %3645 = vmatprep.mubr.bf16.mxu0 %v2222
          %3646 = vmatmul.mubr.bf16.gmra.mrb[0].mxu0 %v2221
          %v3647 = vpop.f32.mrb[0].mxu0
          %v3648 = vadd.f32 %v3599, %v3647
          %v3649 = vpop.f32.mrb[0].mxu0
          %v3650 = vpop.f32.mrb[0].mxu0
          %v3651 = vadd.f32 %v3602, %v3650
          %v3652 = vpop.f32.mrb[0].mxu0
          %3653 = vmatprep.mubr.bf16.mxu0 %v2238
          %3654 = vmatmul.mubr.bf16.gmra.mrb[0].mxu0 %v2237
          %v3655 = vpop.f32.mrb[0].mxu0
          %v3656 = vadd.f32 %v3607, %v3655
          %v3657 = vpop.f32.mrb[0].mxu0
          %v3658 = vpop.f32.mrb[0].mxu0
          %v3659 = vadd.f32 %v3610, %v3658
          %v3660 = vpop.f32.mrb[0].mxu0
          %3661 = vdwg.mxu0
          %v3662 = vadd.f32 %v1431, %v3648
          %v3663 = vadd.f32 %v1432, %v3651
          %v3664 = vadd.f32 %v1433, %v3656
          %v3665 = vadd.f32 %v1434, %v3659
          %v3666 = vld [vmem:[%s826] sm:$0x1]
          %v3667 = vld [vmem:[%s829] sm:$0x1]
          %v3668 = vsel %vm940, %v3662, 0.0
          %3669 = vadd.xlane.f32.xlu0 %v3668
          %v3670 = vpop.xlane.xlu0 %3669
          %v3671 = vsel %vm940, %v3663, 0.0
          %3672 = vadd.xlane.f32.xlu0 %v3671
          %v3673 = vpop.xlane.xlu0 %3672
          %v3674 = vsel %vm940, %v3664, 0.0
          %3675 = vadd.xlane.f32.xlu0 %v3674
          %v3676 = vpop.xlane.xlu0 %3675
          %v3677 = vsel %vm940, %v3665, 0.0
          %3678 = vadd.xlane.f32.xlu0 %v3677
          %v3679 = vpop.xlane.xlu0 %3678
          %v3680 = vmul.f32 %v3670, %v1374
          %v3681 = vmul.f32 %v3673, %v1374
          %v3682 = vmul.f32 %v3676, %v1374
          %v3683 = vmul.f32 %v3679, %v1374
          %v3684 = vsub.f32 %v3662, %v3680
          %v3685 = vsub.f32 %v3663, %v3681
          %v3686 = vsub.f32 %v3664, %v3682
          %v3687 = vsub.f32 %v3665, %v3683
          %v3688 = vmul.f32 %v3684, %v3684
          %v3689 = vmul.f32 %v3685, %v3685
          %v3690 = vmul.f32 %v3686, %v3686
          %v3691 = vmul.f32 %v3687, %v3687
          %v3692 = vsel %vm940, %v3688, 0.0
          %3693 = vadd.xlane.f32.xlu0 %v3692
          %v3694 = vpop.xlane.xlu0 %3693
          %v3695 = vsel %vm940, %v3689, 0.0
          %3696 = vadd.xlane.f32.xlu0 %v3695
          %v3697 = vpop.xlane.xlu0 %3696
          %v3698 = vsel %vm940, %v3690, 0.0
          %3699 = vadd.xlane.f32.xlu0 %v3698
          %v3700 = vpop.xlane.xlu0 %3699
          %v3701 = vsel %vm940, %v3691, 0.0
          %3702 = vadd.xlane.f32.xlu0 %v3701
          %v3703 = vpop.xlane.xlu0 %3702
          %v3704 = vmul.f32 %v3694, %v1374
          %v3705 = vmul.f32 %v3697, %v1374
          %v3706 = vmul.f32 %v3700, %v1374
          %v3707 = vmul.f32 %v3703, %v1374
          %v3708 = vadd.f32 %v3704, 1e-05
          %v3709 = vadd.f32 %v3705, 1e-05
          %v3710 = vadd.f32 %v3706, 1e-05
          %v3711 = vadd.f32 %v3707, 1e-05
          %v3712 = vrsqrt.pop %v3708
          %v3713 = vrsqrt.pop %v3709
          %v3714 = vrsqrt.pop %v3710
          %v3715 = vrsqrt.pop %v3711
          %v3716 = vmul.f32 %v3684, %v3712
          %v3717 = vmul.f32 %v3685, %v3713
          %v3718 = vmul.f32 %v3686, %v3714
          %v3719 = vmul.f32 %v3687, %v3715
          %v3721 = vlaneseq
          %v3722 = vshrl.u32 %v3721, 7
          %v3723 = vsub.s32 0, %v3722
          %v3724 = vrot.slane %v3666, %v3723
          %v3726 = vmul.f32 %v3716, %v3724
          %v3727 = vmul.f32 %v3717, %v3724
          %v3728 = vmul.f32 %v3718, %v3724
          %v3729 = vmul.f32 %v3719, %v3724
          %v3731 = vlaneseq
          %v3732 = vshrl.u32 %v3731, 7
          %v3733 = vsub.s32 0, %v3732
          %v3734 = vrot.slane %v3667, %v3733
          %v3736 = vadd.f32 %v3726, %v3734
          %v3737 = vadd.f32 %v3727, %v3734
          %v3738 = vadd.f32 %v3728, %v3734
          %v3739 = vadd.f32 %v3729, %v3734
          %3740 = vst.msk [vmem:[#allocation2] sm:$0xff] %vm940, %v3736
          %3741 = vst.msk [vmem:[#allocation2 + $0x8] sm:$0xff] %vm940, %v3737
          %3742 = vst.msk [vmem:[#allocation2 + $0x10] sm:$0xff] %vm940, %v3738
          %3743 = vst.msk [vmem:[#allocation2 + $0x18] sm:$0xff] %vm940, %v3739
        $region108: #{tpu_custom_call.1} parent=99 // pred_fallthru
          _
        %p3744 = scmp.eq.s32.totalorder %s37, 1
        // Predicated region
        $region109: #{tpu_custom_call.1} parent=99 // pred_check
          %p3745 = pneg %p3744
        $region110: #{tpu_custom_call.1} parent=99 // pred_check_branch
          %3747 = sbr.rel (%p3745) target = $region112
        $region111: #{tpu_custom_call.1} parent=99 // pred_region
          %3750 = vrot.lane.b32.xlu0 %v982, 96
          %v3751 = vpop.permute.xlu0 %3750
          %3752 = vrot.lane.b32.xlu0 %v985, 96
          %v3753 = vpop.permute.xlu0 %3752
          %v3756 = vmul.f32 %v982, %v3751
          %v3757 = vmul.f32 %v985, %v3753
          %3760 = vrot.lane.b32.xlu0 %v990, 96
          %v3761 = vpop.permute.xlu0 %3760
          %3762 = vrot.lane.b32.xlu0 %v993, 96
          %v3763 = vpop.permute.xlu0 %3762
          %v3766 = vmul.f32 %v982, %v3761
          %v3767 = vmul.f32 %v985, %v3763
          %v3768 = vpack.c.bf16 %v3757, %v3756
          %v3769 = vpack.c.bf16 %v3767, %v3766
          %v3774 = vunpack.c.l.b16 %v996
          %v3775 = vunpack.c.l.b16 %v997
          %v3776 = vunpack.c.l.b16 %v998
          %v3777 = vunpack.c.l.b16 %v999
          %v3778 = vpack.c.b16 %v3775, %v3774
          %v3779 = vpack.c.b16 %v3777, %v3776
          %v3783 = vsel %vm940, %v3768, 0
          %v3786 = vsel %vm940, %v3769, 0
          %3788 = vmatprep.subr.bf16.mxu0 0
          %3789 = vmatpush1.bf16.msra.mxu0 %v3778
          %3790 = vmatprep.subr.bf16.mxu0 0
          %3791 = vmatpush1.bf16.msra.mxu0 %v3779
          %3792 = vmatprep.subr.bf16.mxu0 0
          %3793 = vmatpush1.bf16.msra.mxu0 0
          %3794 = vmatprep.subr.bf16.mxu0 0
          %3795 = vmatpush1.bf16.msra.mxu0 0
          %3796 = vmatprep.subr.bf16.mxu0 0
          %3797 = vmatpush1.bf16.msra.mxu0 0
          %3798 = vmatprep.subr.bf16.mxu0 0
          %3799 = vmatpush1.bf16.msra.mxu0 0
          %3800 = vmatprep.subr.bf16.mxu0 0
          %3801 = vmatpush1.bf16.msra.mxu0 0
          %3802 = vmatprep.subr.bf16.mxu0 0
          %3803 = vmatpush1.bf16.msra.mxu0 0
          %3804 = vmatprep.subr.bf16.mxu0 0
          %3805 = vmatpush1.bf16.msra.mxu0 0
          %3806 = vmatprep.subr.bf16.mxu0 0
          %3807 = vmatpush1.bf16.msra.mxu0 0
          %3808 = vmatprep.subr.bf16.mxu0 0
          %3809 = vmatpush1.bf16.msra.mxu0 0
          %3810 = vmatprep.subr.bf16.mxu0 0
          %3811 = vmatpush1.bf16.msra.mxu0 0
          %3812 = vmatprep.subr.bf16.mxu0 0
          %3813 = vmatpush1.bf16.msra.mxu0 0
          %3814 = vmatprep.subr.bf16.mxu0 0
          %3815 = vmatpush1.bf16.msra.mxu0 0
          %3816 = vmatprep.subr.bf16.mxu0 0
          %3817 = vmatpush1.bf16.msra.mxu0 0
          %3818 = vmatprep.subr.bf16.mxu0 0
          %3819 = vmatpush1.bf16.msra.mxu0 0
          %3820 = vmatprep.mubr.bf16.mxu0 0
          %3821 = vmatmul.mubr.bf16.gmra.mrb[0].mxu0 %v3783
          %v3822 = vpop.f32.mrb[0].mxu0
          %v3823 = vadd.f32 0.0, %v3822
          %v3824 = vpop.f32.mrb[0].mxu0
          %v3825 = vpop.f32.mrb[0].mxu0
          %v3826 = vadd.f32 0.0, %v3825
          %v3827 = vpop.f32.mrb[0].mxu0
          %3828 = vmatprep.mubr.bf16.mxu0 0
          %3829 = vmatmul.mubr.bf16.gmra.mrb[0].mxu0 %v3786
          %v3830 = vpop.f32.mrb[0].mxu0
          %v3831 = vadd.f32 0.0, %v3830
          %v3832 = vpop.f32.mrb[0].mxu0
          %v3833 = vpop.f32.mrb[0].mxu0
          %v3834 = vadd.f32 0.0, %v3833
          %v3835 = vpop.f32.mrb[0].mxu0
          %3836 = vdwg.mxu0
          %v3837 = vmax.f32 %v3823, %v3831
          %v3838 = vmax.f32 %v3826, %v3834
          %v3839 = vsub.f32 %v3823, %v3837
          %v3840 = vsub.f32 %v3826, %v3838
          %v3841 = vmul.f32 %v3839, 1.442695
          %v3842 = vpow.pop %v3841
          %v3843 = vmul.f32 %v3840, 1.442695
          %v3844 = vpow.pop %v3843
          %v3845 = vsub.f32 %v3831, %v3837
          %v3846 = vsub.f32 %v3834, %v3838
          %v3847 = vmul.f32 %v3845, 1.442695
          %v3848 = vpow.pop %v3847
          %v3849 = vmul.f32 %v3846, 1.442695
          %v3850 = vpow.pop %v3849
          %v3851 = vadd.f32 %v3842, %v3848
          %v3852 = vadd.f32 %v3844, %v3850
          %v3853 = vrcp.pop %v3851
          %v3854 = vmul.f32 %v3842, %v3853
          %v3855 = vrcp.pop %v3852
          %v3856 = vmul.f32 %v3844, %v3855
          %v3857 = vmul.f32 %v3848, %v3853
          %v3858 = vmul.f32 %v3850, %v3855
          %v3859 = vpack.c.bf16 %v3856, %v3854
          %v3860 = vpack.c.bf16 %v3858, %v3857
          %vm3861 = vcmask 31744
          %v3863 = vsel %vm3861, %v3859, 0
          %v3866 = vsel %vm3861, %v3860, 0
          %vm3868 = vcmask 1041408
          %v3870 = vsel %vm3868, %v1000, 0
          %3872 = vmatprep.subr.bf16.mxu0 0
          %3873 = vmatpush1.bf16.msra.mxu0 %v3870
          %3874 = vmatprep.subr.bf16.mxu0 0
          %3875 = vmatpush1.bf16.msra.mxu0 0
          %3876 = vmatprep.subr.bf16.mxu0 0
          %3877 = vmatpush1.bf16.msra.mxu0 0
          %3878 = vmatprep.subr.bf16.mxu0 0
          %3879 = vmatpush1.bf16.msra.mxu0 0
          %3880 = vmatprep.subr.bf16.mxu0 0
          %3881 = vmatpush1.bf16.msra.mxu0 0
          %3882 = vmatprep.subr.bf16.mxu0 0
          %3883 = vmatpush1.bf16.msra.mxu0 0
          %3884 = vmatprep.subr.bf16.mxu0 0
          %3885 = vmatpush1.bf16.msra.mxu0 0
          %3886 = vmatprep.subr.bf16.mxu0 0
          %3887 = vmatpush1.bf16.msra.mxu0 0
          %3888 = vmatprep.subr.bf16.mxu0 0
          %3889 = vmatpush1.bf16.msra.mxu0 0
          %3890 = vmatprep.subr.bf16.mxu0 0
          %3891 = vmatpush1.bf16.msra.mxu0 0
          %3892 = vmatprep.subr.bf16.mxu0 0
          %3893 = vmatpush1.bf16.msra.mxu0 0
          %3894 = vmatprep.subr.bf16.mxu0 0
          %3895 = vmatpush1.bf16.msra.mxu0 0
          %3896 = vmatprep.subr.bf16.mxu0 0
          %3897 = vmatpush1.bf16.msra.mxu0 0
          %3898 = vmatprep.subr.bf16.mxu0 0
          %3899 = vmatpush1.bf16.msra.mxu0 0
          %3900 = vmatprep.subr.bf16.mxu0 0
          %3901 = vmatpush1.bf16.msra.mxu0 0
          %3902 = vmatprep.subr.bf16.mxu0 0
          %3903 = vmatpush1.bf16.msra.mxu0 0
          %3904 = vmatprep.mubr.bf16.mxu0 0
          %3905 = vmatmul.mubr.bf16.gmra.mrb[0].mxu0 %v3863
          %v3906 = vpop.f32.mrb[0].mxu0
          %v3907 = vadd.f32 0.0, %v3906
          %v3908 = vpop.f32.mrb[0].mxu0
          %v3909 = vpop.f32.mrb[0].mxu0
          %v3910 = vadd.f32 0.0, %v3909
          %v3911 = vpop.f32.mrb[0].mxu0
          %3912 = vmatprep.mubr.bf16.mxu0 0
          %3913 = vmatmul.mubr.bf16.gmra.mrb[0].mxu0 %v3866
          %v3914 = vpop.f32.mrb[0].mxu0
          %v3915 = vadd.f32 0.0, %v3914
          %v3916 = vpop.f32.mrb[0].mxu0
          %v3917 = vpop.f32.mrb[0].mxu0
          %v3918 = vadd.f32 0.0, %v3917
          %v3919 = vpop.f32.mrb[0].mxu0
          %3920 = vdwg.mxu0
          %3921 = vrot.lane.b32.xlu0 %v982, 64
          %v3922 = vpop.permute.xlu0 %3921
          %3923 = vrot.lane.b32.xlu0 %v985, 64
          %v3924 = vpop.permute.xlu0 %3923
          %v3927 = vmul.f32 %v3907, %v3922
          %v3928 = vmul.f32 %v3910, %v3924
          %3929 = vrot.lane.b32.xlu0 %v990, 64
          %v3930 = vpop.permute.xlu0 %3929
          %3931 = vrot.lane.b32.xlu0 %v993, 64
          %v3932 = vpop.permute.xlu0 %3931
          %v3935 = vmul.f32 %v3915, %v3930
          %v3936 = vmul.f32 %v3918, %v3932
          %v3937 = vadd.f32 %v3927, %v3935
          %v3938 = vadd.f32 %v3928, %v3936
          %v3939 = vld [vmem:[%s797] sm:$0xf]
          %v3940 = vld [vmem:[%s797 + $0x4] sm:$0xf]
          %v3941 = vld [vmem:[%s797 + $0x8] sm:$0xf]
          %v3942 = vld [vmem:[%s797 + $0xc] sm:$0xf]
          %v3943 = vpack.c.bf16 %v3938, %v3937
          %v3944 = vld [vmem:[%s800] sm:$0x1]
          %v3946 = vlaneseq
          %v3947 = vshrl.u32 %v3946, 7
          %v3948 = vsub.s32 0, %v3947
          %v3949 = vrot.slane %v3944, %v3948
          %v3955 = vunpack.c.l.b16 %v3939
          %v3956 = vunpack.c.l.b16 %v3940
          %v3957 = vunpack.c.l.b16 %v3941
          %v3958 = vunpack.c.l.b16 %v3942
          %v3959 = vpack.c.b16 %v3956, %v3955
          %v3960 = vpack.c.b16 %v3958, %v3957
          %v3964 = vsel %vm940, %v3943, 0
          %3966 = vmatprep.subr.bf16.mxu0 0
          %3967 = vmatpush1.bf16.msra.mxu0 %v3959
          %3968 = vmatprep.subr.bf16.mxu0 0
          %3969 = vmatpush1.bf16.msra.mxu0 %v3960
          %3970 = vmatprep.subr.bf16.mxu0 0
          %3971 = vmatpush1.bf16.msra.mxu0 0
          %3972 = vmatprep.subr.bf16.mxu0 0
          %3973 = vmatpush1.bf16.msra.mxu0 0
          %3974 = vmatprep.subr.bf16.mxu0 0
          %3975 = vmatpush1.bf16.msra.mxu0 0
          %3976 = vmatprep.subr.bf16.mxu0 0
          %3977 = vmatpush1.bf16.msra.mxu0 0
          %3978 = vmatprep.subr.bf16.mxu0 0
          %3979 = vmatpush1.bf16.msra.mxu0 0
          %3980 = vmatprep.subr.bf16.mxu0 0
          %3981 = vmatpush1.bf16.msra.mxu0 0
          %3982 = vmatprep.subr.bf16.mxu0 0
          %3983 = vmatpush1.bf16.msra.mxu0 0
          %3984 = vmatprep.subr.bf16.mxu0 0
          %3985 = vmatpush1.bf16.msra.mxu0 0
          %3986 = vmatprep.subr.bf16.mxu0 0
          %3987 = vmatpush1.bf16.msra.mxu0 0
          %3988 = vmatprep.subr.bf16.mxu0 0
          %3989 = vmatpush1.bf16.msra.mxu0 0
          %3990 = vmatprep.subr.bf16.mxu0 0
          %3991 = vmatpush1.bf16.msra.mxu0 0
          %3992 = vmatprep.subr.bf16.mxu0 0
          %3993 = vmatpush1.bf16.msra.mxu0 0
          %3994 = vmatprep.subr.bf16.mxu0 0
          %3995 = vmatpush1.bf16.msra.mxu0 0
          %3996 = vmatprep.subr.bf16.mxu0 0
          %3997 = vmatpush1.bf16.msra.mxu0 0
          %3998 = vmatprep.mubr.bf16.mxu0 0
          %3999 = vmatmul.mubr.bf16.gmra.mrb[0].mxu0 %v3964
          %v4000 = vpop.f32.mrb[0].mxu0
          %v4001 = vadd.f32 %v3949, %v4000
          %v4002 = vpop.f32.mrb[0].mxu0
          %v4003 = vpop.f32.mrb[0].mxu0
          %v4004 = vadd.f32 %v3949, %v4003
          %v4005 = vpop.f32.mrb[0].mxu0
          %4006 = vdwg.mxu0
          %v4007 = vadd.f32 %v911, %v4001
          %v4008 = vadd.f32 %v912, %v4004
          %v4009 = vld [vmem:[%s803] sm:$0x1]
          %v4010 = vld [vmem:[%s806] sm:$0x1]
          %v4011 = vsel %vm940, %v4007, 0.0
          %4012 = vadd.xlane.f32.xlu0 %v4011
          %v4013 = vpop.xlane.xlu0 %4012
          %v4014 = vsel %vm940, %v4008, 0.0
          %4015 = vadd.xlane.f32.xlu0 %v4014
          %v4016 = vpop.xlane.xlu0 %4015
          %v4017 = vrcp.pop 32.0
          %v4018 = vmul.f32 %v4013, %v4017
          %v4019 = vmul.f32 %v4016, %v4017
          %v4020 = vsub.f32 %v4007, %v4018
          %v4021 = vsub.f32 %v4008, %v4019
          %v4022 = vmul.f32 %v4020, %v4020
          %v4023 = vmul.f32 %v4021, %v4021
          %v4024 = vsel %vm940, %v4022, 0.0
          %4025 = vadd.xlane.f32.xlu0 %v4024
          %v4026 = vpop.xlane.xlu0 %4025
          %v4027 = vsel %vm940, %v4023, 0.0
          %4028 = vadd.xlane.f32.xlu0 %v4027
          %v4029 = vpop.xlane.xlu0 %4028
          %v4030 = vmul.f32 %v4026, %v4017
          %v4031 = vmul.f32 %v4029, %v4017
          %v4032 = vadd.f32 %v4030, 1e-05
          %v4033 = vadd.f32 %v4031, 1e-05
          %v4034 = vrsqrt.pop %v4032
          %v4035 = vrsqrt.pop %v4033
          %v4036 = vmul.f32 %v4020, %v4034
          %v4037 = vmul.f32 %v4021, %v4035
          %v4039 = vlaneseq
          %v4040 = vshrl.u32 %v4039, 7
          %v4041 = vsub.s32 0, %v4040
          %v4042 = vrot.slane %v4009, %v4041
          %v4044 = vmul.f32 %v4036, %v4042
          %v4045 = vmul.f32 %v4037, %v4042
          %v4047 = vlaneseq
          %v4048 = vshrl.u32 %v4047, 7
          %v4049 = vsub.s32 0, %v4048
          %v4050 = vrot.slane %v4010, %v4049
          %v4052 = vadd.f32 %v4044, %v4050
          %v4053 = vadd.f32 %v4045, %v4050
          %v4054 = vld [vmem:[%s811] sm:$0xff]
          %v4055 = vld [vmem:[%s811 + $0x8] sm:$0xff]
          %v4056 = vld [vmem:[%s811 + $0x10] sm:$0xff]
          %v4057 = vld [vmem:[%s811 + $0x18] sm:$0xff]
          %v4058 = vld [vmem:[%s811 + $0x20] sm:$0xff]
          %v4059 = vld [vmem:[%s811 + $0x28] sm:$0xff]
          %v4060 = vld [vmem:[%s811 + $0x30] sm:$0xff]
          %v4061 = vld [vmem:[%s811 + $0x38] sm:$0xff]
          %v4062 = vld [vmem:[%s811 + $0x40] sm:$0xff]
          %v4063 = vld [vmem:[%s811 + $0x48] sm:$0xff]
          %v4064 = vld [vmem:[%s811 + $0x50] sm:$0xff]
          %v4065 = vld [vmem:[%s811 + $0x58] sm:$0xff]
          %v4066 = vld [vmem:[%s811 + $0x60] sm:$0xff]
          %v4067 = vld [vmem:[%s811 + $0x68] sm:$0xff]
          %v4068 = vld [vmem:[%s811 + $0x70] sm:$0xff]
          %v4069 = vld [vmem:[%s811 + $0x78] sm:$0xff]
          %v4070 = vld [vmem:[%s811 + $0x80] sm:$0xff]
          %v4071 = vld [vmem:[%s811 + $0x88] sm:$0xff]
          %v4072 = vld [vmem:[%s811 + $0x90] sm:$0xff]
          %v4073 = vld [vmem:[%s811 + $0x98] sm:$0xff]
          %v4074 = vld [vmem:[%s811 + $0xa0] sm:$0xff]
          %v4075 = vld [vmem:[%s811 + $0xa8] sm:$0xff]
          %v4076 = vld [vmem:[%s811 + $0xb0] sm:$0xff]
          %v4077 = vld [vmem:[%s811 + $0xb8] sm:$0xff]
          %v4078 = vld [vmem:[%s811 + $0xc0] sm:$0xff]
          %v4079 = vld [vmem:[%s811 + $0xc8] sm:$0xff]
          %v4080 = vld [vmem:[%s811 + $0xd0] sm:$0xff]
          %v4081 = vld [vmem:[%s811 + $0xd8] sm:$0xff]
          %v4082 = vld [vmem:[%s811 + $0xe0] sm:$0xff]
          %v4083 = vld [vmem:[%s811 + $0xe8] sm:$0xff]
          %v4084 = vld [vmem:[%s811 + $0xf0] sm:$0xff]
          %v4085 = vld [vmem:[%s811 + $0xf8] sm:$0xff]
          %v4086 = vpack.c.bf16 %v4053, %v4052
          %v4087 = vld [vmem:[%s815] sm:$0xff]
          %v4088 = vld [vmem:[%s815 + $0x8] sm:$0xff]
          %v4091 = vlaneseq
          %v4092 = vshrl.u32 %v4091, 7
          %v4093 = vsub.s32 0, %v4092
          %v4094 = vrot.slane %v4087, %v4093
          %v4095 = vlaneseq
          %v4096 = vshrl.u32 %v4095, 7
          %v4097 = vsub.s32 1, %v4096
          %v4098 = vrot.slane %v4087, %v4097
          %v4099 = vlaneseq
          %v4100 = vshrl.u32 %v4099, 7
          %v4101 = vsub.s32 2, %v4100
          %v4102 = vrot.slane %v4087, %v4101
          %v4103 = vlaneseq
          %v4104 = vshrl.u32 %v4103, 7
          %v4105 = vsub.s32 3, %v4104
          %v4106 = vrot.slane %v4087, %v4105
          %v4107 = vlaneseq
          %v4108 = vshrl.u32 %v4107, 7
          %v4109 = vsub.s32 4, %v4108
          %v4110 = vrot.slane %v4087, %v4109
          %v4111 = vlaneseq
          %v4112 = vshrl.u32 %v4111, 7
          %v4113 = vsub.s32 5, %v4112
          %v4114 = vrot.slane %v4087, %v4113
          %v4115 = vlaneseq
          %v4116 = vshrl.u32 %v4115, 7
          %v4117 = vsub.s32 6, %v4116
          %v4118 = vrot.slane %v4087, %v4117
          %v4119 = vlaneseq
          %v4120 = vshrl.u32 %v4119, 7
          %v4121 = vsub.s32 7, %v4120
          %v4122 = vrot.slane %v4087, %v4121
          %v4123 = vlaneseq
          %v4124 = vshrl.u32 %v4123, 7
          %v4125 = vsub.s32 0, %v4124
          %v4126 = vrot.slane %v4088, %v4125
          %v4127 = vlaneseq
          %v4128 = vshrl.u32 %v4127, 7
          %v4129 = vsub.s32 1, %v4128
          %v4130 = vrot.slane %v4088, %v4129
          %v4131 = vlaneseq
          %v4132 = vshrl.u32 %v4131, 7
          %v4133 = vsub.s32 2, %v4132
          %v4134 = vrot.slane %v4088, %v4133
          %v4135 = vlaneseq
          %v4136 = vshrl.u32 %v4135, 7
          %v4137 = vsub.s32 3, %v4136
          %v4138 = vrot.slane %v4088, %v4137
          %v4139 = vlaneseq
          %v4140 = vshrl.u32 %v4139, 7
          %v4141 = vsub.s32 4, %v4140
          %v4142 = vrot.slane %v4088, %v4141
          %v4143 = vlaneseq
          %v4144 = vshrl.u32 %v4143, 7
          %v4145 = vsub.s32 5, %v4144
          %v4146 = vrot.slane %v4088, %v4145
          %v4147 = vlaneseq
          %v4148 = vshrl.u32 %v4147, 7
          %v4149 = vsub.s32 6, %v4148
          %v4150 = vrot.slane %v4088, %v4149
          %v4151 = vlaneseq
          %v4152 = vshrl.u32 %v4151, 7
          %v4153 = vsub.s32 7, %v4152
          %v4154 = vrot.slane %v4088, %v4153
          %v4203 = vunpack.c.l.b16 %v4054
          %v4204 = vunpack.c.h.b16 %v4054
          %v4205 = vunpack.c.l.b16 %v4055
          %v4206 = vunpack.c.h.b16 %v4055
          %v4207 = vunpack.c.l.b16 %v4056
          %v4208 = vunpack.c.h.b16 %v4056
          %v4209 = vunpack.c.l.b16 %v4057
          %v4210 = vunpack.c.h.b16 %v4057
          %v4211 = vunpack.c.l.b16 %v4058
          %v4212 = vunpack.c.h.b16 %v4058
          %v4213 = vunpack.c.l.b16 %v4059
          %v4214 = vunpack.c.h.b16 %v4059
          %v4215 = vunpack.c.l.b16 %v4060
          %v4216 = vunpack.c.h.b16 %v4060
          %v4217 = vunpack.c.l.b16 %v4061
          %v4218 = vunpack.c.h.b16 %v4061
          %v4219 = vunpack.c.l.b16 %v4062
          %v4220 = vunpack.c.h.b16 %v4062
          %v4221 = vunpack.c.l.b16 %v4063
          %v4222 = vunpack.c.h.b16 %v4063
          %v4223 = vunpack.c.l.b16 %v4064
          %v4224 = vunpack.c.h.b16 %v4064
          %v4225 = vunpack.c.l.b16 %v4065
          %v4226 = vunpack.c.h.b16 %v4065
          %v4227 = vunpack.c.l.b16 %v4066
          %v4228 = vunpack.c.h.b16 %v4066
          %v4229 = vunpack.c.l.b16 %v4067
          %v4230 = vunpack.c.h.b16 %v4067
          %v4231 = vunpack.c.l.b16 %v4068
          %v4232 = vunpack.c.h.b16 %v4068
          %v4233 = vunpack.c.l.b16 %v4069
          %v4234 = vunpack.c.h.b16 %v4069
          %v4235 = vunpack.c.l.b16 %v4070
          %v4236 = vunpack.c.h.b16 %v4070
          %v4237 = vunpack.c.l.b16 %v4071
          %v4238 = vunpack.c.h.b16 %v4071
          %v4239 = vunpack.c.l.b16 %v4072
          %v4240 = vunpack.c.h.b16 %v4072
          %v4241 = vunpack.c.l.b16 %v4073
          %v4242 = vunpack.c.h.b16 %v4073
          %v4243 = vunpack.c.l.b16 %v4074
          %v4244 = vunpack.c.h.b16 %v4074
          %v4245 = vunpack.c.l.b16 %v4075
          %v4246 = vunpack.c.h.b16 %v4075
          %v4247 = vunpack.c.l.b16 %v4076
          %v4248 = vunpack.c.h.b16 %v4076
          %v4249 = vunpack.c.l.b16 %v4077
          %v4250 = vunpack.c.h.b16 %v4077
          %v4251 = vunpack.c.l.b16 %v4078
          %v4252 = vunpack.c.h.b16 %v4078
          %v4253 = vunpack.c.l.b16 %v4079
          %v4254 = vunpack.c.h.b16 %v4079
          %v4255 = vunpack.c.l.b16 %v4080
          %v4256 = vunpack.c.h.b16 %v4080
          %v4257 = vunpack.c.l.b16 %v4081
          %v4258 = vunpack.c.h.b16 %v4081
          %v4259 = vunpack.c.l.b16 %v4082
          %v4260 = vunpack.c.h.b16 %v4082
          %v4261 = vunpack.c.l.b16 %v4083
          %v4262 = vunpack.c.h.b16 %v4083
          %v4263 = vunpack.c.l.b16 %v4084
          %v4264 = vunpack.c.h.b16 %v4084
          %v4265 = vunpack.c.l.b16 %v4085
          %v4266 = vunpack.c.h.b16 %v4085
          %v4267 = vpack.c.b16 %v4219, %v4203
          %v4268 = vpack.c.b16 %v4220, %v4204
          %v4269 = vpack.c.b16 %v4221, %v4205
          %v4270 = vpack.c.b16 %v4222, %v4206
          %v4271 = vpack.c.b16 %v4223, %v4207
          %v4272 = vpack.c.b16 %v4224, %v4208
          %v4273 = vpack.c.b16 %v4225, %v4209
          %v4274 = vpack.c.b16 %v4226, %v4210
          %v4275 = vpack.c.b16 %v4227, %v4211
          %v4276 = vpack.c.b16 %v4228, %v4212
          %v4277 = vpack.c.b16 %v4229, %v4213
          %v4278 = vpack.c.b16 %v4230, %v4214
          %v4279 = vpack.c.b16 %v4231, %v4215
          %v4280 = vpack.c.b16 %v4232, %v4216
          %v4281 = vpack.c.b16 %v4233, %v4217
          %v4282 = vpack.c.b16 %v4234, %v4218
          %v4283 = vpack.c.b16 %v4251, %v4235
          %v4284 = vpack.c.b16 %v4252, %v4236
          %v4285 = vpack.c.b16 %v4253, %v4237
          %v4286 = vpack.c.b16 %v4254, %v4238
          %v4287 = vpack.c.b16 %v4255, %v4239
          %v4288 = vpack.c.b16 %v4256, %v4240
          %v4289 = vpack.c.b16 %v4257, %v4241
          %v4290 = vpack.c.b16 %v4258, %v4242
          %v4291 = vpack.c.b16 %v4259, %v4243
          %v4292 = vpack.c.b16 %v4260, %v4244
          %v4293 = vpack.c.b16 %v4261, %v4245
          %v4294 = vpack.c.b16 %v4262, %v4246
          %v4295 = vpack.c.b16 %v4263, %v4247
          %v4296 = vpack.c.b16 %v4264, %v4248
          %v4297 = vpack.c.b16 %v4265, %v4249
          %v4298 = vpack.c.b16 %v4266, %v4250
          %v4332 = vsel %vm940, %v4086, 0
          %4334 = vmatprep.subr.bf16.mxu0 %v4268
          %4335 = vmatpush1.bf16.msra.mxu0 %v4267
          %4336 = vmatprep.subr.bf16.mxu0 %v4284
          %4337 = vmatpush1.bf16.msra.mxu0 %v4283
          %4338 = vmatprep.subr.bf16.mxu0 0
          %4339 = vmatpush1.bf16.msra.mxu0 0
          %4340 = vmatprep.subr.bf16.mxu0 0
          %4341 = vmatpush1.bf16.msra.mxu0 0
          %4342 = vmatprep.subr.bf16.mxu0 0
          %4343 = vmatpush1.bf16.msra.mxu0 0
          %4344 = vmatprep.subr.bf16.mxu0 0
          %4345 = vmatpush1.bf16.msra.mxu0 0
          %4346 = vmatprep.subr.bf16.mxu0 0
          %4347 = vmatpush1.bf16.msra.mxu0 0
          %4348 = vmatprep.subr.bf16.mxu0 0
          %4349 = vmatpush1.bf16.msra.mxu0 0
          %4350 = vmatprep.subr.bf16.mxu0 0
          %4351 = vmatpush1.bf16.msra.mxu0 0
          %4352 = vmatprep.subr.bf16.mxu0 0
          %4353 = vmatpush1.bf16.msra.mxu0 0
          %4354 = vmatprep.subr.bf16.mxu0 0
          %4355 = vmatpush1.bf16.msra.mxu0 0
          %4356 = vmatprep.subr.bf16.mxu0 0
          %4357 = vmatpush1.bf16.msra.mxu0 0
          %4358 = vmatprep.subr.bf16.mxu0 0
          %4359 = vmatpush1.bf16.msra.mxu0 0
          %4360 = vmatprep.subr.bf16.mxu0 0
          %4361 = vmatpush1.bf16.msra.mxu0 0
          %4362 = vmatprep.subr.bf16.mxu0 0
          %4363 = vmatpush1.bf16.msra.mxu0 0
          %4364 = vmatprep.subr.bf16.mxu0 0
          %4365 = vmatpush1.bf16.msra.mxu0 0
          %4366 = vmatprep.mubr.bf16.mxu0 0
          %4367 = vmatmul.mubr.bf16.gmra.mrb[0].mxu0 %v4332
          %v4368 = vpop.f32.mrb[0].mxu0
          %v4369 = vadd.f32 %v4094, %v4368
          %v4370 = vpop.f32.mrb[0].mxu0
          %v4371 = vadd.f32 %v4098, %v4370
          %v4372 = vpop.f32.mrb[0].mxu0
          %v4373 = vadd.f32 %v4094, %v4372
          %v4374 = vpop.f32.mrb[0].mxu0
          %v4375 = vadd.f32 %v4098, %v4374
          %4376 = vdwg.mxu0
          %4377 = vmatprep.subr.bf16.mxu0 %v4270
          %4378 = vmatpush1.bf16.msra.mxu0 %v4269
          %4379 = vmatprep.subr.bf16.mxu0 %v4286
          %4380 = vmatpush1.bf16.msra.mxu0 %v4285
          %4381 = vmatprep.subr.bf16.mxu0 0
          %4382 = vmatpush1.bf16.msra.mxu0 0
          %4383 = vmatprep.subr.bf16.mxu0 0
          %4384 = vmatpush1.bf16.msra.mxu0 0
          %4385 = vmatprep.subr.bf16.mxu0 0
          %4386 = vmatpush1.bf16.msra.mxu0 0
          %4387 = vmatprep.subr.bf16.mxu0 0
          %4388 = vmatpush1.bf16.msra.mxu0 0
          %4389 = vmatprep.subr.bf16.mxu0 0
          %4390 = vmatpush1.bf16.msra.mxu0 0
          %4391 = vmatprep.subr.bf16.mxu0 0
          %4392 = vmatpush1.bf16.msra.mxu0 0
          %4393 = vmatprep.subr.bf16.mxu0 0
          %4394 = vmatpush1.bf16.msra.mxu0 0
          %4395 = vmatprep.subr.bf16.mxu0 0
          %4396 = vmatpush1.bf16.msra.mxu0 0
          %4397 = vmatprep.subr.bf16.mxu0 0
          %4398 = vmatpush1.bf16.msra.mxu0 0
          %4399 = vmatprep.subr.bf16.mxu0 0
          %4400 = vmatpush1.bf16.msra.mxu0 0
          %4401 = vmatprep.subr.bf16.mxu0 0
          %4402 = vmatpush1.bf16.msra.mxu0 0
          %4403 = vmatprep.subr.bf16.mxu0 0
          %4404 = vmatpush1.bf16.msra.mxu0 0
          %4405 = vmatprep.subr.bf16.mxu0 0
          %4406 = vmatpush1.bf16.msra.mxu0 0
          %4407 = vmatprep.subr.bf16.mxu0 0
          %4408 = vmatpush1.bf16.msra.mxu0 0
          %4409 = vmatprep.mubr.bf16.mxu0 0
          %4410 = vmatmul.mubr.bf16.gmra.mrb[0].mxu0 %v4332
          %v4411 = vpop.f32.mrb[0].mxu0
          %v4412 = vadd.f32 %v4102, %v4411
          %v4413 = vpop.f32.mrb[0].mxu0
          %v4414 = vadd.f32 %v4106, %v4413
          %v4415 = vpop.f32.mrb[0].mxu0
          %v4416 = vadd.f32 %v4102, %v4415
          %v4417 = vpop.f32.mrb[0].mxu0
          %v4418 = vadd.f32 %v4106, %v4417
          %4419 = vdwg.mxu0
          %4420 = vmatprep.subr.bf16.mxu0 %v4272
          %4421 = vmatpush1.bf16.msra.mxu0 %v4271
          %4422 = vmatprep.subr.bf16.mxu0 %v4288
          %4423 = vmatpush1.bf16.msra.mxu0 %v4287
          %4424 = vmatprep.subr.bf16.mxu0 0
          %4425 = vmatpush1.bf16.msra.mxu0 0
          %4426 = vmatprep.subr.bf16.mxu0 0
          %4427 = vmatpush1.bf16.msra.mxu0 0
          %4428 = vmatprep.subr.bf16.mxu0 0
          %4429 = vmatpush1.bf16.msra.mxu0 0
          %4430 = vmatprep.subr.bf16.mxu0 0
          %4431 = vmatpush1.bf16.msra.mxu0 0
          %4432 = vmatprep.subr.bf16.mxu0 0
          %4433 = vmatpush1.bf16.msra.mxu0 0
          %4434 = vmatprep.subr.bf16.mxu0 0
          %4435 = vmatpush1.bf16.msra.mxu0 0
          %4436 = vmatprep.subr.bf16.mxu0 0
          %4437 = vmatpush1.bf16.msra.mxu0 0
          %4438 = vmatprep.subr.bf16.mxu0 0
          %4439 = vmatpush1.bf16.msra.mxu0 0
          %4440 = vmatprep.subr.bf16.mxu0 0
          %4441 = vmatpush1.bf16.msra.mxu0 0
          %4442 = vmatprep.subr.bf16.mxu0 0
          %4443 = vmatpush1.bf16.msra.mxu0 0
          %4444 = vmatprep.subr.bf16.mxu0 0
          %4445 = vmatpush1.bf16.msra.mxu0 0
          %4446 = vmatprep.subr.bf16.mxu0 0
          %4447 = vmatpush1.bf16.msra.mxu0 0
          %4448 = vmatprep.subr.bf16.mxu0 0
          %4449 = vmatpush1.bf16.msra.mxu0 0
          %4450 = vmatprep.subr.bf16.mxu0 0
          %4451 = vmatpush1.bf16.msra.mxu0 0
          %4452 = vmatprep.mubr.bf16.mxu0 0
          %4453 = vmatmul.mubr.bf16.gmra.mrb[0].mxu0 %v4332
          %v4454 = vpop.f32.mrb[0].mxu0
          %v4455 = vadd.f32 %v4110, %v4454
          %v4456 = vpop.f32.mrb[0].mxu0
          %v4457 = vadd.f32 %v4114, %v4456
          %v4458 = vpop.f32.mrb[0].mxu0
          %v4459 = vadd.f32 %v4110, %v4458
          %v4460 = vpop.f32.mrb[0].mxu0
          %v4461 = vadd.f32 %v4114, %v4460
          %4462 = vdwg.mxu0
          %4463 = vmatprep.subr.bf16.mxu0 %v4274
          %4464 = vmatpush1.bf16.msra.mxu0 %v4273
          %4465 = vmatprep.subr.bf16.mxu0 %v4290
          %4466 = vmatpush1.bf16.msra.mxu0 %v4289
          %4467 = vmatprep.subr.bf16.mxu0 0
          %4468 = vmatpush1.bf16.msra.mxu0 0
          %4469 = vmatprep.subr.bf16.mxu0 0
          %4470 = vmatpush1.bf16.msra.mxu0 0
          %4471 = vmatprep.subr.bf16.mxu0 0
          %4472 = vmatpush1.bf16.msra.mxu0 0
          %4473 = vmatprep.subr.bf16.mxu0 0
          %4474 = vmatpush1.bf16.msra.mxu0 0
          %4475 = vmatprep.subr.bf16.mxu0 0
          %4476 = vmatpush1.bf16.msra.mxu0 0
          %4477 = vmatprep.subr.bf16.mxu0 0
          %4478 = vmatpush1.bf16.msra.mxu0 0
          %4479 = vmatprep.subr.bf16.mxu0 0
          %4480 = vmatpush1.bf16.msra.mxu0 0
          %4481 = vmatprep.subr.bf16.mxu0 0
          %4482 = vmatpush1.bf16.msra.mxu0 0
          %4483 = vmatprep.subr.bf16.mxu0 0
          %4484 = vmatpush1.bf16.msra.mxu0 0
          %4485 = vmatprep.subr.bf16.mxu0 0
          %4486 = vmatpush1.bf16.msra.mxu0 0
          %4487 = vmatprep.subr.bf16.mxu0 0
          %4488 = vmatpush1.bf16.msra.mxu0 0
          %4489 = vmatprep.subr.bf16.mxu0 0
          %4490 = vmatpush1.bf16.msra.mxu0 0
          %4491 = vmatprep.subr.bf16.mxu0 0
          %4492 = vmatpush1.bf16.msra.mxu0 0
          %4493 = vmatprep.subr.bf16.mxu0 0
          %4494 = vmatpush1.bf16.msra.mxu0 0
          %4495 = vmatprep.mubr.bf16.mxu0 0
          %4496 = vmatmul.mubr.bf16.gmra.mrb[0].mxu0 %v4332
          %v4497 = vpop.f32.mrb[0].mxu0
          %v4498 = vadd.f32 %v4118, %v4497
          %v4499 = vpop.f32.mrb[0].mxu0
          %v4500 = vadd.f32 %v4122, %v4499
          %v4501 = vpop.f32.mrb[0].mxu0
          %v4502 = vadd.f32 %v4118, %v4501
          %v4503 = vpop.f32.mrb[0].mxu0
          %v4504 = vadd.f32 %v4122, %v4503
          %4505 = vdwg.mxu0
          %4506 = vmatprep.subr.bf16.mxu0 %v4276
          %4507 = vmatpush1.bf16.msra.mxu0 %v4275
          %4508 = vmatprep.subr.bf16.mxu0 %v4292
          %4509 = vmatpush1.bf16.msra.mxu0 %v4291
          %4510 = vmatprep.subr.bf16.mxu0 0
          %4511 = vmatpush1.bf16.msra.mxu0 0
          %4512 = vmatprep.subr.bf16.mxu0 0
          %4513 = vmatpush1.bf16.msra.mxu0 0
          %4514 = vmatprep.subr.bf16.mxu0 0
          %4515 = vmatpush1.bf16.msra.mxu0 0
          %4516 = vmatprep.subr.bf16.mxu0 0
          %4517 = vmatpush1.bf16.msra.mxu0 0
          %4518 = vmatprep.subr.bf16.mxu0 0
          %4519 = vmatpush1.bf16.msra.mxu0 0
          %4520 = vmatprep.subr.bf16.mxu0 0
          %4521 = vmatpush1.bf16.msra.mxu0 0
          %4522 = vmatprep.subr.bf16.mxu0 0
          %4523 = vmatpush1.bf16.msra.mxu0 0
          %4524 = vmatprep.subr.bf16.mxu0 0
          %4525 = vmatpush1.bf16.msra.mxu0 0
          %4526 = vmatprep.subr.bf16.mxu0 0
          %4527 = vmatpush1.bf16.msra.mxu0 0
          %4528 = vmatprep.subr.bf16.mxu0 0
          %4529 = vmatpush1.bf16.msra.mxu0 0
          %4530 = vmatprep.subr.bf16.mxu0 0
          %4531 = vmatpush1.bf16.msra.mxu0 0
          %4532 = vmatprep.subr.bf16.mxu0 0
          %4533 = vmatpush1.bf16.msra.mxu0 0
          %4534 = vmatprep.subr.bf16.mxu0 0
          %4535 = vmatpush1.bf16.msra.mxu0 0
          %4536 = vmatprep.subr.bf16.mxu0 0
          %4537 = vmatpush1.bf16.msra.mxu0 0
          %4538 = vmatprep.mubr.bf16.mxu0 0
          %4539 = vmatmul.mubr.bf16.gmra.mrb[0].mxu0 %v4332
          %v4540 = vpop.f32.mrb[0].mxu0
          %v4541 = vadd.f32 %v4126, %v4540
          %v4542 = vpop.f32.mrb[0].mxu0
          %v4543 = vadd.f32 %v4130, %v4542
          %v4544 = vpop.f32.mrb[0].mxu0
          %v4545 = vadd.f32 %v4126, %v4544
          %v4546 = vpop.f32.mrb[0].mxu0
          %v4547 = vadd.f32 %v4130, %v4546
          %4548 = vdwg.mxu0
          %4549 = vmatprep.subr.bf16.mxu0 %v4278
          %4550 = vmatpush1.bf16.msra.mxu0 %v4277
          %4551 = vmatprep.subr.bf16.mxu0 %v4294
          %4552 = vmatpush1.bf16.msra.mxu0 %v4293
          %4553 = vmatprep.subr.bf16.mxu0 0
          %4554 = vmatpush1.bf16.msra.mxu0 0
          %4555 = vmatprep.subr.bf16.mxu0 0
          %4556 = vmatpush1.bf16.msra.mxu0 0
          %4557 = vmatprep.subr.bf16.mxu0 0
          %4558 = vmatpush1.bf16.msra.mxu0 0
          %4559 = vmatprep.subr.bf16.mxu0 0
          %4560 = vmatpush1.bf16.msra.mxu0 0
          %4561 = vmatprep.subr.bf16.mxu0 0
          %4562 = vmatpush1.bf16.msra.mxu0 0
          %4563 = vmatprep.subr.bf16.mxu0 0
          %4564 = vmatpush1.bf16.msra.mxu0 0
          %4565 = vmatprep.subr.bf16.mxu0 0
          %4566 = vmatpush1.bf16.msra.mxu0 0
          %4567 = vmatprep.subr.bf16.mxu0 0
          %4568 = vmatpush1.bf16.msra.mxu0 0
          %4569 = vmatprep.subr.bf16.mxu0 0
          %4570 = vmatpush1.bf16.msra.mxu0 0
          %4571 = vmatprep.subr.bf16.mxu0 0
          %4572 = vmatpush1.bf16.msra.mxu0 0
          %4573 = vmatprep.subr.bf16.mxu0 0
          %4574 = vmatpush1.bf16.msra.mxu0 0
          %4575 = vmatprep.subr.bf16.mxu0 0
          %4576 = vmatpush1.bf16.msra.mxu0 0
          %4577 = vmatprep.subr.bf16.mxu0 0
          %4578 = vmatpush1.bf16.msra.mxu0 0
          %4579 = vmatprep.subr.bf16.mxu0 0
          %4580 = vmatpush1.bf16.msra.mxu0 0
          %4581 = vmatprep.mubr.bf16.mxu0 0
          %4582 = vmatmul.mubr.bf16.gmra.mrb[0].mxu0 %v4332
          %v4583 = vpop.f32.mrb[0].mxu0
          %v4584 = vadd.f32 %v4134, %v4583
          %v4585 = vpop.f32.mrb[0].mxu0
          %v4586 = vadd.f32 %v4138, %v4585
          %v4587 = vpop.f32.mrb[0].mxu0
          %v4588 = vadd.f32 %v4134, %v4587
          %v4589 = vpop.f32.mrb[0].mxu0
          %v4590 = vadd.f32 %v4138, %v4589
          %4591 = vdwg.mxu0
          %4592 = vmatprep.subr.bf16.mxu0 %v4280
          %4593 = vmatpush1.bf16.msra.mxu0 %v4279
          %4594 = vmatprep.subr.bf16.mxu0 %v4296
          %4595 = vmatpush1.bf16.msra.mxu0 %v4295
          %4596 = vmatprep.subr.bf16.mxu0 0
          %4597 = vmatpush1.bf16.msra.mxu0 0
          %4598 = vmatprep.subr.bf16.mxu0 0
          %4599 = vmatpush1.bf16.msra.mxu0 0
          %4600 = vmatprep.subr.bf16.mxu0 0
          %4601 = vmatpush1.bf16.msra.mxu0 0
          %4602 = vmatprep.subr.bf16.mxu0 0
          %4603 = vmatpush1.bf16.msra.mxu0 0
          %4604 = vmatprep.subr.bf16.mxu0 0
          %4605 = vmatpush1.bf16.msra.mxu0 0
          %4606 = vmatprep.subr.bf16.mxu0 0
          %4607 = vmatpush1.bf16.msra.mxu0 0
          %4608 = vmatprep.subr.bf16.mxu0 0
          %4609 = vmatpush1.bf16.msra.mxu0 0
          %4610 = vmatprep.subr.bf16.mxu0 0
          %4611 = vmatpush1.bf16.msra.mxu0 0
          %4612 = vmatprep.subr.bf16.mxu0 0
          %4613 = vmatpush1.bf16.msra.mxu0 0
          %4614 = vmatprep.subr.bf16.mxu0 0
          %4615 = vmatpush1.bf16.msra.mxu0 0
          %4616 = vmatprep.subr.bf16.mxu0 0
          %4617 = vmatpush1.bf16.msra.mxu0 0
          %4618 = vmatprep.subr.bf16.mxu0 0
          %4619 = vmatpush1.bf16.msra.mxu0 0
          %4620 = vmatprep.subr.bf16.mxu0 0
          %4621 = vmatpush1.bf16.msra.mxu0 0
          %4622 = vmatprep.subr.bf16.mxu0 0
          %4623 = vmatpush1.bf16.msra.mxu0 0
          %4624 = vmatprep.mubr.bf16.mxu0 0
          %4625 = vmatmul.mubr.bf16.gmra.mrb[0].mxu0 %v4332
          %v4626 = vpop.f32.mrb[0].mxu0
          %v4627 = vadd.f32 %v4142, %v4626
          %v4628 = vpop.f32.mrb[0].mxu0
          %v4629 = vadd.f32 %v4146, %v4628
          %v4630 = vpop.f32.mrb[0].mxu0
          %v4631 = vadd.f32 %v4142, %v4630
          %v4632 = vpop.f32.mrb[0].mxu0
          %v4633 = vadd.f32 %v4146, %v4632
          %4634 = vdwg.mxu0
          %4635 = vmatprep.subr.bf16.mxu0 %v4282
          %4636 = vmatpush1.bf16.msra.mxu0 %v4281
          %4637 = vmatprep.subr.bf16.mxu0 %v4298
          %4638 = vmatpush1.bf16.msra.mxu0 %v4297
          %4639 = vmatprep.subr.bf16.mxu0 0
          %4640 = vmatpush1.bf16.msra.mxu0 0
          %4641 = vmatprep.subr.bf16.mxu0 0
          %4642 = vmatpush1.bf16.msra.mxu0 0
          %4643 = vmatprep.subr.bf16.mxu0 0
          %4644 = vmatpush1.bf16.msra.mxu0 0
          %4645 = vmatprep.subr.bf16.mxu0 0
          %4646 = vmatpush1.bf16.msra.mxu0 0
          %4647 = vmatprep.subr.bf16.mxu0 0
          %4648 = vmatpush1.bf16.msra.mxu0 0
          %4649 = vmatprep.subr.bf16.mxu0 0
          %4650 = vmatpush1.bf16.msra.mxu0 0
          %4651 = vmatprep.subr.bf16.mxu0 0
          %4652 = vmatpush1.bf16.msra.mxu0 0
          %4653 = vmatprep.subr.bf16.mxu0 0
          %4654 = vmatpush1.bf16.msra.mxu0 0
          %4655 = vmatprep.subr.bf16.mxu0 0
          %4656 = vmatpush1.bf16.msra.mxu0 0
          %4657 = vmatprep.subr.bf16.mxu0 0
          %4658 = vmatpush1.bf16.msra.mxu0 0
          %4659 = vmatprep.subr.bf16.mxu0 0
          %4660 = vmatpush1.bf16.msra.mxu0 0
          %4661 = vmatprep.subr.bf16.mxu0 0
          %4662 = vmatpush1.bf16.msra.mxu0 0
          %4663 = vmatprep.subr.bf16.mxu0 0
          %4664 = vmatpush1.bf16.msra.mxu0 0
          %4665 = vmatprep.subr.bf16.mxu0 0
          %4666 = vmatpush1.bf16.msra.mxu0 0
          %4667 = vmatprep.mubr.bf16.mxu0 0
          %4668 = vmatmul.mubr.bf16.gmra.mrb[0].mxu0 %v4332
          %v4669 = vpop.f32.mrb[0].mxu0
          %v4670 = vadd.f32 %v4150, %v4669
          %v4671 = vpop.f32.mrb[0].mxu0
          %v4672 = vadd.f32 %v4154, %v4671
          %v4673 = vpop.f32.mrb[0].mxu0
          %v4674 = vadd.f32 %v4150, %v4673
          %v4675 = vpop.f32.mrb[0].mxu0
          %v4676 = vadd.f32 %v4154, %v4675
          %4677 = vdwg.mxu0
          %v4678 = vmax.f32 %v4369, 0.0
          %v4679 = vmax.f32 %v4371, 0.0
          %v4680 = vmax.f32 %v4412, 0.0
          %v4681 = vmax.f32 %v4414, 0.0
          %v4682 = vmax.f32 %v4455, 0.0
          %v4683 = vmax.f32 %v4457, 0.0
          %v4684 = vmax.f32 %v4498, 0.0
          %v4685 = vmax.f32 %v4500, 0.0
          %v4686 = vmax.f32 %v4541, 0.0
          %v4687 = vmax.f32 %v4543, 0.0
          %v4688 = vmax.f32 %v4584, 0.0
          %v4689 = vmax.f32 %v4586, 0.0
          %v4690 = vmax.f32 %v4627, 0.0
          %v4691 = vmax.f32 %v4629, 0.0
          %v4692 = vmax.f32 %v4670, 0.0
          %v4693 = vmax.f32 %v4672, 0.0
          %v4694 = vmax.f32 %v4373, 0.0
          %v4695 = vmax.f32 %v4375, 0.0
          %v4696 = vmax.f32 %v4416, 0.0
          %v4697 = vmax.f32 %v4418, 0.0
          %v4698 = vmax.f32 %v4459, 0.0
          %v4699 = vmax.f32 %v4461, 0.0
          %v4700 = vmax.f32 %v4502, 0.0
          %v4701 = vmax.f32 %v4504, 0.0
          %v4702 = vmax.f32 %v4545, 0.0
          %v4703 = vmax.f32 %v4547, 0.0
          %v4704 = vmax.f32 %v4588, 0.0
          %v4705 = vmax.f32 %v4590, 0.0
          %v4706 = vmax.f32 %v4631, 0.0
          %v4707 = vmax.f32 %v4633, 0.0
          %v4708 = vmax.f32 %v4674, 0.0
          %v4709 = vmax.f32 %v4676, 0.0
          %v4710 = vpack.c.bf16 %v4694, %v4678
          %v4711 = vpack.c.bf16 %v4695, %v4679
          %v4712 = vpack.c.bf16 %v4696, %v4680
          %v4713 = vpack.c.bf16 %v4697, %v4681
          %v4714 = vpack.c.bf16 %v4698, %v4682
          %v4715 = vpack.c.bf16 %v4699, %v4683
          %v4716 = vpack.c.bf16 %v4700, %v4684
          %v4717 = vpack.c.bf16 %v4701, %v4685
          %v4718 = vpack.c.bf16 %v4702, %v4686
          %v4719 = vpack.c.bf16 %v4703, %v4687
          %v4720 = vpack.c.bf16 %v4704, %v4688
          %v4721 = vpack.c.bf16 %v4705, %v4689
          %v4722 = vpack.c.bf16 %v4706, %v4690
          %v4723 = vpack.c.bf16 %v4707, %v4691
          %v4724 = vpack.c.bf16 %v4708, %v4692
          %v4725 = vpack.c.bf16 %v4709, %v4693
          %v4726 = vld [vmem:[%s820] sm:$0xf]
          %v4727 = vld [vmem:[%s820 + $0x4] sm:$0xf]
          %v4728 = vld [vmem:[%s820 + $0x8] sm:$0xf]
          %v4729 = vld [vmem:[%s820 + $0xc] sm:$0xf]
          %v4730 = vld [vmem:[%s820 + $0x10] sm:$0xf]
          %v4731 = vld [vmem:[%s820 + $0x14] sm:$0xf]
          %v4732 = vld [vmem:[%s820 + $0x18] sm:$0xf]
          %v4733 = vld [vmem:[%s820 + $0x1c] sm:$0xf]
          %v4734 = vld [vmem:[%s820 + $0x20] sm:$0xf]
          %v4735 = vld [vmem:[%s820 + $0x24] sm:$0xf]
          %v4736 = vld [vmem:[%s820 + $0x28] sm:$0xf]
          %v4737 = vld [vmem:[%s820 + $0x2c] sm:$0xf]
          %v4738 = vld [vmem:[%s820 + $0x30] sm:$0xf]
          %v4739 = vld [vmem:[%s820 + $0x34] sm:$0xf]
          %v4740 = vld [vmem:[%s820 + $0x38] sm:$0xf]
          %v4741 = vld [vmem:[%s820 + $0x3c] sm:$0xf]
          %v4742 = vld [vmem:[%s820 + $0x40] sm:$0xf]
          %v4743 = vld [vmem:[%s820 + $0x44] sm:$0xf]
          %v4744 = vld [vmem:[%s820 + $0x48] sm:$0xf]
          %v4745 = vld [vmem:[%s820 + $0x4c] sm:$0xf]
          %v4746 = vld [vmem:[%s820 + $0x50] sm:$0xf]
          %v4747 = vld [vmem:[%s820 + $0x54] sm:$0xf]
          %v4748 = vld [vmem:[%s820 + $0x58] sm:$0xf]
          %v4749 = vld [vmem:[%s820 + $0x5c] sm:$0xf]
          %v4750 = vld [vmem:[%s820 + $0x60] sm:$0xf]
          %v4751 = vld [vmem:[%s820 + $0x64] sm:$0xf]
          %v4752 = vld [vmem:[%s820 + $0x68] sm:$0xf]
          %v4753 = vld [vmem:[%s820 + $0x6c] sm:$0xf]
          %v4754 = vld [vmem:[%s820 + $0x70] sm:$0xf]
          %v4755 = vld [vmem:[%s820 + $0x74] sm:$0xf]
          %v4756 = vld [vmem:[%s820 + $0x78] sm:$0xf]
          %v4757 = vld [vmem:[%s820 + $0x7c] sm:$0xf]
          %v4758 = vld [vmem:[%s820 + $0x80] sm:$0xf]
          %v4759 = vld [vmem:[%s820 + $0x84] sm:$0xf]
          %v4760 = vld [vmem:[%s820 + $0x88] sm:$0xf]
          %v4761 = vld [vmem:[%s820 + $0x8c] sm:$0xf]
          %v4762 = vld [vmem:[%s820 + $0x90] sm:$0xf]
          %v4763 = vld [vmem:[%s820 + $0x94] sm:$0xf]
          %v4764 = vld [vmem:[%s820 + $0x98] sm:$0xf]
          %v4765 = vld [vmem:[%s820 + $0x9c] sm:$0xf]
          %v4766 = vld [vmem:[%s820 + $0xa0] sm:$0xf]
          %v4767 = vld [vmem:[%s820 + $0xa4] sm:$0xf]
          %v4768 = vld [vmem:[%s820 + $0xa8] sm:$0xf]
          %v4769 = vld [vmem:[%s820 + $0xac] sm:$0xf]
          %v4770 = vld [vmem:[%s820 + $0xb0] sm:$0xf]
          %v4771 = vld [vmem:[%s820 + $0xb4] sm:$0xf]
          %v4772 = vld [vmem:[%s820 + $0xb8] sm:$0xf]
          %v4773 = vld [vmem:[%s820 + $0xbc] sm:$0xf]
          %v4774 = vld [vmem:[%s820 + $0xc0] sm:$0xf]
          %v4775 = vld [vmem:[%s820 + $0xc4] sm:$0xf]
          %v4776 = vld [vmem:[%s820 + $0xc8] sm:$0xf]
          %v4777 = vld [vmem:[%s820 + $0xcc] sm:$0xf]
          %v4778 = vld [vmem:[%s820 + $0xd0] sm:$0xf]
          %v4779 = vld [vmem:[%s820 + $0xd4] sm:$0xf]
          %v4780 = vld [vmem:[%s820 + $0xd8] sm:$0xf]
          %v4781 = vld [vmem:[%s820 + $0xdc] sm:$0xf]
          %v4782 = vld [vmem:[%s820 + $0xe0] sm:$0xf]
          %v4783 = vld [vmem:[%s820 + $0xe4] sm:$0xf]
          %v4784 = vld [vmem:[%s820 + $0xe8] sm:$0xf]
          %v4785 = vld [vmem:[%s820 + $0xec] sm:$0xf]
          %v4786 = vld [vmem:[%s820 + $0xf0] sm:$0xf]
          %v4787 = vld [vmem:[%s820 + $0xf4] sm:$0xf]
          %v4788 = vld [vmem:[%s820 + $0xf8] sm:$0xf]
          %v4789 = vld [vmem:[%s820 + $0xfc] sm:$0xf]
          %v4790 = vld [vmem:[%s820 + $0x100] sm:$0xf]
          %v4791 = vld [vmem:[%s820 + $0x104] sm:$0xf]
          %v4792 = vld [vmem:[%s820 + $0x108] sm:$0xf]
          %v4793 = vld [vmem:[%s820 + $0x10c] sm:$0xf]
          %v4794 = vld [vmem:[%s820 + $0x110] sm:$0xf]
          %v4795 = vld [vmem:[%s820 + $0x114] sm:$0xf]
          %v4796 = vld [vmem:[%s820 + $0x118] sm:$0xf]
          %v4797 = vld [vmem:[%s820 + $0x11c] sm:$0xf]
          %v4798 = vld [vmem:[%s820 + $0x120] sm:$0xf]
          %v4799 = vld [vmem:[%s820 + $0x124] sm:$0xf]
          %v4800 = vld [vmem:[%s820 + $0x128] sm:$0xf]
          %v4801 = vld [vmem:[%s820 + $0x12c] sm:$0xf]
          %v4802 = vld [vmem:[%s820 + $0x130] sm:$0xf]
          %v4803 = vld [vmem:[%s820 + $0x134] sm:$0xf]
          %v4804 = vld [vmem:[%s820 + $0x138] sm:$0xf]
          %v4805 = vld [vmem:[%s820 + $0x13c] sm:$0xf]
          %v4806 = vld [vmem:[%s820 + $0x140] sm:$0xf]
          %v4807 = vld [vmem:[%s820 + $0x144] sm:$0xf]
          %v4808 = vld [vmem:[%s820 + $0x148] sm:$0xf]
          %v4809 = vld [vmem:[%s820 + $0x14c] sm:$0xf]
          %v4810 = vld [vmem:[%s820 + $0x150] sm:$0xf]
          %v4811 = vld [vmem:[%s820 + $0x154] sm:$0xf]
          %v4812 = vld [vmem:[%s820 + $0x158] sm:$0xf]
          %v4813 = vld [vmem:[%s820 + $0x15c] sm:$0xf]
          %v4814 = vld [vmem:[%s820 + $0x160] sm:$0xf]
          %v4815 = vld [vmem:[%s820 + $0x164] sm:$0xf]
          %v4816 = vld [vmem:[%s820 + $0x168] sm:$0xf]
          %v4817 = vld [vmem:[%s820 + $0x16c] sm:$0xf]
          %v4818 = vld [vmem:[%s820 + $0x170] sm:$0xf]
          %v4819 = vld [vmem:[%s820 + $0x174] sm:$0xf]
          %v4820 = vld [vmem:[%s820 + $0x178] sm:$0xf]
          %v4821 = vld [vmem:[%s820 + $0x17c] sm:$0xf]
          %v4822 = vld [vmem:[%s820 + $0x180] sm:$0xf]
          %v4823 = vld [vmem:[%s820 + $0x184] sm:$0xf]
          %v4824 = vld [vmem:[%s820 + $0x188] sm:$0xf]
          %v4825 = vld [vmem:[%s820 + $0x18c] sm:$0xf]
          %v4826 = vld [vmem:[%s820 + $0x190] sm:$0xf]
          %v4827 = vld [vmem:[%s820 + $0x194] sm:$0xf]
          %v4828 = vld [vmem:[%s820 + $0x198] sm:$0xf]
          %v4829 = vld [vmem:[%s820 + $0x19c] sm:$0xf]
          %v4830 = vld [vmem:[%s820 + $0x1a0] sm:$0xf]
          %v4831 = vld [vmem:[%s820 + $0x1a4] sm:$0xf]
          %v4832 = vld [vmem:[%s820 + $0x1a8] sm:$0xf]
          %v4833 = vld [vmem:[%s820 + $0x1ac] sm:$0xf]
          %v4834 = vld [vmem:[%s820 + $0x1b0] sm:$0xf]
          %v4835 = vld [vmem:[%s820 + $0x1b4] sm:$0xf]
          %v4836 = vld [vmem:[%s820 + $0x1b8] sm:$0xf]
          %v4837 = vld [vmem:[%s820 + $0x1bc] sm:$0xf]
          %v4838 = vld [vmem:[%s820 + $0x1c0] sm:$0xf]
          %v4839 = vld [vmem:[%s820 + $0x1c4] sm:$0xf]
          %v4840 = vld [vmem:[%s820 + $0x1c8] sm:$0xf]
          %v4841 = vld [vmem:[%s820 + $0x1cc] sm:$0xf]
          %v4842 = vld [vmem:[%s820 + $0x1d0] sm:$0xf]
          %v4843 = vld [vmem:[%s820 + $0x1d4] sm:$0xf]
          %v4844 = vld [vmem:[%s820 + $0x1d8] sm:$0xf]
          %v4845 = vld [vmem:[%s820 + $0x1dc] sm:$0xf]
          %v4846 = vld [vmem:[%s820 + $0x1e0] sm:$0xf]
          %v4847 = vld [vmem:[%s820 + $0x1e4] sm:$0xf]
          %v4848 = vld [vmem:[%s820 + $0x1e8] sm:$0xf]
          %v4849 = vld [vmem:[%s820 + $0x1ec] sm:$0xf]
          %v4850 = vld [vmem:[%s820 + $0x1f0] sm:$0xf]
          %v4851 = vld [vmem:[%s820 + $0x1f4] sm:$0xf]
          %v4852 = vld [vmem:[%s820 + $0x1f8] sm:$0xf]
          %v4853 = vld [vmem:[%s820 + $0x1fc] sm:$0xf]
          %v4854 = vld [vmem:[%s820 + $0x200] sm:$0xf]
          %v4855 = vld [vmem:[%s820 + $0x204] sm:$0xf]
          %v4856 = vld [vmem:[%s820 + $0x208] sm:$0xf]
          %v4857 = vld [vmem:[%s820 + $0x20c] sm:$0xf]
          %v4858 = vld [vmem:[%s820 + $0x210] sm:$0xf]
          %v4859 = vld [vmem:[%s820 + $0x214] sm:$0xf]
          %v4860 = vld [vmem:[%s820 + $0x218] sm:$0xf]
          %v4861 = vld [vmem:[%s820 + $0x21c] sm:$0xf]
          %v4862 = vld [vmem:[%s820 + $0x220] sm:$0xf]
          %v4863 = vld [vmem:[%s820 + $0x224] sm:$0xf]
          %v4864 = vld [vmem:[%s820 + $0x228] sm:$0xf]
          %v4865 = vld [vmem:[%s820 + $0x22c] sm:$0xf]
          %v4866 = vld [vmem:[%s820 + $0x230] sm:$0xf]
          %v4867 = vld [vmem:[%s820 + $0x234] sm:$0xf]
          %v4868 = vld [vmem:[%s820 + $0x238] sm:$0xf]
          %v4869 = vld [vmem:[%s820 + $0x23c] sm:$0xf]
          %v4870 = vld [vmem:[%s820 + $0x240] sm:$0xf]
          %v4871 = vld [vmem:[%s820 + $0x244] sm:$0xf]
          %v4872 = vld [vmem:[%s820 + $0x248] sm:$0xf]
          %v4873 = vld [vmem:[%s820 + $0x24c] sm:$0xf]
          %v4874 = vld [vmem:[%s820 + $0x250] sm:$0xf]
          %v4875 = vld [vmem:[%s820 + $0x254] sm:$0xf]
          %v4876 = vld [vmem:[%s820 + $0x258] sm:$0xf]
          %v4877 = vld [vmem:[%s820 + $0x25c] sm:$0xf]
          %v4878 = vld [vmem:[%s820 + $0x260] sm:$0xf]
          %v4879 = vld [vmem:[%s820 + $0x264] sm:$0xf]
          %v4880 = vld [vmem:[%s820 + $0x268] sm:$0xf]
          %v4881 = vld [vmem:[%s820 + $0x26c] sm:$0xf]
          %v4882 = vld [vmem:[%s820 + $0x270] sm:$0xf]
          %v4883 = vld [vmem:[%s820 + $0x274] sm:$0xf]
          %v4884 = vld [vmem:[%s820 + $0x278] sm:$0xf]
          %v4885 = vld [vmem:[%s820 + $0x27c] sm:$0xf]
          %v4886 = vld [vmem:[%s820 + $0x280] sm:$0xf]
          %v4887 = vld [vmem:[%s820 + $0x284] sm:$0xf]
          %v4888 = vld [vmem:[%s820 + $0x288] sm:$0xf]
          %v4889 = vld [vmem:[%s820 + $0x28c] sm:$0xf]
          %v4890 = vld [vmem:[%s820 + $0x290] sm:$0xf]
          %v4891 = vld [vmem:[%s820 + $0x294] sm:$0xf]
          %v4892 = vld [vmem:[%s820 + $0x298] sm:$0xf]
          %v4893 = vld [vmem:[%s820 + $0x29c] sm:$0xf]
          %v4894 = vld [vmem:[%s820 + $0x2a0] sm:$0xf]
          %v4895 = vld [vmem:[%s820 + $0x2a4] sm:$0xf]
          %v4896 = vld [vmem:[%s820 + $0x2a8] sm:$0xf]
          %v4897 = vld [vmem:[%s820 + $0x2ac] sm:$0xf]
          %v4898 = vld [vmem:[%s820 + $0x2b0] sm:$0xf]
          %v4899 = vld [vmem:[%s820 + $0x2b4] sm:$0xf]
          %v4900 = vld [vmem:[%s820 + $0x2b8] sm:$0xf]
          %v4901 = vld [vmem:[%s820 + $0x2bc] sm:$0xf]
          %v4902 = vld [vmem:[%s820 + $0x2c0] sm:$0xf]
          %v4903 = vld [vmem:[%s820 + $0x2c4] sm:$0xf]
          %v4904 = vld [vmem:[%s820 + $0x2c8] sm:$0xf]
          %v4905 = vld [vmem:[%s820 + $0x2cc] sm:$0xf]
          %v4906 = vld [vmem:[%s820 + $0x2d0] sm:$0xf]
          %v4907 = vld [vmem:[%s820 + $0x2d4] sm:$0xf]
          %v4908 = vld [vmem:[%s820 + $0x2d8] sm:$0xf]
          %v4909 = vld [vmem:[%s820 + $0x2dc] sm:$0xf]
          %v4910 = vld [vmem:[%s820 + $0x2e0] sm:$0xf]
          %v4911 = vld [vmem:[%s820 + $0x2e4] sm:$0xf]
          %v4912 = vld [vmem:[%s820 + $0x2e8] sm:$0xf]
          %v4913 = vld [vmem:[%s820 + $0x2ec] sm:$0xf]
          %v4914 = vld [vmem:[%s820 + $0x2f0] sm:$0xf]
          %v4915 = vld [vmem:[%s820 + $0x2f4] sm:$0xf]
          %v4916 = vld [vmem:[%s820 + $0x2f8] sm:$0xf]
          %v4917 = vld [vmem:[%s820 + $0x2fc] sm:$0xf]
          %v4918 = vld [vmem:[%s820 + $0x300] sm:$0xf]
          %v4919 = vld [vmem:[%s820 + $0x304] sm:$0xf]
          %v4920 = vld [vmem:[%s820 + $0x308] sm:$0xf]
          %v4921 = vld [vmem:[%s820 + $0x30c] sm:$0xf]
          %v4922 = vld [vmem:[%s820 + $0x310] sm:$0xf]
          %v4923 = vld [vmem:[%s820 + $0x314] sm:$0xf]
          %v4924 = vld [vmem:[%s820 + $0x318] sm:$0xf]
          %v4925 = vld [vmem:[%s820 + $0x31c] sm:$0xf]
          %v4926 = vld [vmem:[%s820 + $0x320] sm:$0xf]
          %v4927 = vld [vmem:[%s820 + $0x324] sm:$0xf]
          %v4928 = vld [vmem:[%s820 + $0x328] sm:$0xf]
          %v4929 = vld [vmem:[%s820 + $0x32c] sm:$0xf]
          %v4930 = vld [vmem:[%s820 + $0x330] sm:$0xf]
          %v4931 = vld [vmem:[%s820 + $0x334] sm:$0xf]
          %v4932 = vld [vmem:[%s820 + $0x338] sm:$0xf]
          %v4933 = vld [vmem:[%s820 + $0x33c] sm:$0xf]
          %v4934 = vld [vmem:[%s820 + $0x340] sm:$0xf]
          %v4935 = vld [vmem:[%s820 + $0x344] sm:$0xf]
          %v4936 = vld [vmem:[%s820 + $0x348] sm:$0xf]
          %v4937 = vld [vmem:[%s820 + $0x34c] sm:$0xf]
          %v4938 = vld [vmem:[%s820 + $0x350] sm:$0xf]
          %v4939 = vld [vmem:[%s820 + $0x354] sm:$0xf]
          %v4940 = vld [vmem:[%s820 + $0x358] sm:$0xf]
          %v4941 = vld [vmem:[%s820 + $0x35c] sm:$0xf]
          %v4942 = vld [vmem:[%s820 + $0x360] sm:$0xf]
          %v4943 = vld [vmem:[%s820 + $0x364] sm:$0xf]
          %v4944 = vld [vmem:[%s820 + $0x368] sm:$0xf]
          %v4945 = vld [vmem:[%s820 + $0x36c] sm:$0xf]
          %v4946 = vld [vmem:[%s820 + $0x370] sm:$0xf]
          %v4947 = vld [vmem:[%s820 + $0x374] sm:$0xf]
          %v4948 = vld [vmem:[%s820 + $0x378] sm:$0xf]
          %v4949 = vld [vmem:[%s820 + $0x37c] sm:$0xf]
          %v4950 = vld [vmem:[%s820 + $0x380] sm:$0xf]
          %v4951 = vld [vmem:[%s820 + $0x384] sm:$0xf]
          %v4952 = vld [vmem:[%s820 + $0x388] sm:$0xf]
          %v4953 = vld [vmem:[%s820 + $0x38c] sm:$0xf]
          %v4954 = vld [vmem:[%s820 + $0x390] sm:$0xf]
          %v4955 = vld [vmem:[%s820 + $0x394] sm:$0xf]
          %v4956 = vld [vmem:[%s820 + $0x398] sm:$0xf]
          %v4957 = vld [vmem:[%s820 + $0x39c] sm:$0xf]
          %v4958 = vld [vmem:[%s820 + $0x3a0] sm:$0xf]
          %v4959 = vld [vmem:[%s820 + $0x3a4] sm:$0xf]
          %v4960 = vld [vmem:[%s820 + $0x3a8] sm:$0xf]
          %v4961 = vld [vmem:[%s820 + $0x3ac] sm:$0xf]
          %v4962 = vld [vmem:[%s820 + $0x3b0] sm:$0xf]
          %v4963 = vld [vmem:[%s820 + $0x3b4] sm:$0xf]
          %v4964 = vld [vmem:[%s820 + $0x3b8] sm:$0xf]
          %v4965 = vld [vmem:[%s820 + $0x3bc] sm:$0xf]
          %v4966 = vld [vmem:[%s820 + $0x3c0] sm:$0xf]
          %v4967 = vld [vmem:[%s820 + $0x3c4] sm:$0xf]
          %v4968 = vld [vmem:[%s820 + $0x3c8] sm:$0xf]
          %v4969 = vld [vmem:[%s820 + $0x3cc] sm:$0xf]
          %v4970 = vld [vmem:[%s820 + $0x3d0] sm:$0xf]
          %v4971 = vld [vmem:[%s820 + $0x3d4] sm:$0xf]
          %v4972 = vld [vmem:[%s820 + $0x3d8] sm:$0xf]
          %v4973 = vld [vmem:[%s820 + $0x3dc] sm:$0xf]
          %v4974 = vld [vmem:[%s820 + $0x3e0] sm:$0xf]
          %v4975 = vld [vmem:[%s820 + $0x3e4] sm:$0xf]
          %v4976 = vld [vmem:[%s820 + $0x3e8] sm:$0xf]
          %v4977 = vld [vmem:[%s820 + $0x3ec] sm:$0xf]
          %v4978 = vld [vmem:[%s820 + $0x3f0] sm:$0xf]
          %v4979 = vld [vmem:[%s820 + $0x3f4] sm:$0xf]
          %v4980 = vld [vmem:[%s820 + $0x3f8] sm:$0xf]
          %v4981 = vld [vmem:[%s820 + $0x3fc] sm:$0xf]
          %v4982 = vld [vmem:[%s823] sm:$0x1]
          %v4984 = vlaneseq
          %v4985 = vshrl.u32 %v4984, 7
          %v4986 = vsub.s32 0, %v4985
          %v4987 = vrot.slane %v4982, %v4986
          %v5245 = vunpack.c.l.b16 %v4726
          %v5246 = vunpack.c.l.b16 %v4727
          %v5247 = vunpack.c.l.b16 %v4728
          %v5248 = vunpack.c.l.b16 %v4729
          %v5249 = vunpack.c.l.b16 %v4730
          %v5250 = vunpack.c.l.b16 %v4731
          %v5251 = vunpack.c.l.b16 %v4732
          %v5252 = vunpack.c.l.b16 %v4733
          %v5253 = vunpack.c.l.b16 %v4734
          %v5254 = vunpack.c.l.b16 %v4735
          %v5255 = vunpack.c.l.b16 %v4736
          %v5256 = vunpack.c.l.b16 %v4737
          %v5257 = vunpack.c.l.b16 %v4738
          %v5258 = vunpack.c.l.b16 %v4739
          %v5259 = vunpack.c.l.b16 %v4740
          %v5260 = vunpack.c.l.b16 %v4741
          %v5261 = vunpack.c.l.b16 %v4742
          %v5262 = vunpack.c.l.b16 %v4743
          %v5263 = vunpack.c.l.b16 %v4744
          %v5264 = vunpack.c.l.b16 %v4745
          %v5265 = vunpack.c.l.b16 %v4746
          %v5266 = vunpack.c.l.b16 %v4747
          %v5267 = vunpack.c.l.b16 %v4748
          %v5268 = vunpack.c.l.b16 %v4749
          %v5269 = vunpack.c.l.b16 %v4750
          %v5270 = vunpack.c.l.b16 %v4751
          %v5271 = vunpack.c.l.b16 %v4752
          %v5272 = vunpack.c.l.b16 %v4753
          %v5273 = vunpack.c.l.b16 %v4754
          %v5274 = vunpack.c.l.b16 %v4755
          %v5275 = vunpack.c.l.b16 %v4756
          %v5276 = vunpack.c.l.b16 %v4757
          %v5277 = vunpack.c.l.b16 %v4758
          %v5278 = vunpack.c.l.b16 %v4759
          %v5279 = vunpack.c.l.b16 %v4760
          %v5280 = vunpack.c.l.b16 %v4761
          %v5281 = vunpack.c.l.b16 %v4762
          %v5282 = vunpack.c.l.b16 %v4763
          %v5283 = vunpack.c.l.b16 %v4764
          %v5284 = vunpack.c.l.b16 %v4765
          %v5285 = vunpack.c.l.b16 %v4766
          %v5286 = vunpack.c.l.b16 %v4767
          %v5287 = vunpack.c.l.b16 %v4768
          %v5288 = vunpack.c.l.b16 %v4769
          %v5289 = vunpack.c.l.b16 %v4770
          %v5290 = vunpack.c.l.b16 %v4771
          %v5291 = vunpack.c.l.b16 %v4772
          %v5292 = vunpack.c.l.b16 %v4773
          %v5293 = vunpack.c.l.b16 %v4774
          %v5294 = vunpack.c.l.b16 %v4775
          %v5295 = vunpack.c.l.b16 %v4776
          %v5296 = vunpack.c.l.b16 %v4777
          %v5297 = vunpack.c.l.b16 %v4778
          %v5298 = vunpack.c.l.b16 %v4779
          %v5299 = vunpack.c.l.b16 %v4780
          %v5300 = vunpack.c.l.b16 %v4781
          %v5301 = vunpack.c.l.b16 %v4782
          %v5302 = vunpack.c.l.b16 %v4783
          %v5303 = vunpack.c.l.b16 %v4784
          %v5304 = vunpack.c.l.b16 %v4785
          %v5305 = vunpack.c.l.b16 %v4786
          %v5306 = vunpack.c.l.b16 %v4787
          %v5307 = vunpack.c.l.b16 %v4788
          %v5308 = vunpack.c.l.b16 %v4789
          %v5309 = vunpack.c.l.b16 %v4790
          %v5310 = vunpack.c.l.b16 %v4791
          %v5311 = vunpack.c.l.b16 %v4792
          %v5312 = vunpack.c.l.b16 %v4793
          %v5313 = vunpack.c.l.b16 %v4794
          %v5314 = vunpack.c.l.b16 %v4795
          %v5315 = vunpack.c.l.b16 %v4796
          %v5316 = vunpack.c.l.b16 %v4797
          %v5317 = vunpack.c.l.b16 %v4798
          %v5318 = vunpack.c.l.b16 %v4799
          %v5319 = vunpack.c.l.b16 %v4800
          %v5320 = vunpack.c.l.b16 %v4801
          %v5321 = vunpack.c.l.b16 %v4802
          %v5322 = vunpack.c.l.b16 %v4803
          %v5323 = vunpack.c.l.b16 %v4804
          %v5324 = vunpack.c.l.b16 %v4805
          %v5325 = vunpack.c.l.b16 %v4806
          %v5326 = vunpack.c.l.b16 %v4807
          %v5327 = vunpack.c.l.b16 %v4808
          %v5328 = vunpack.c.l.b16 %v4809
          %v5329 = vunpack.c.l.b16 %v4810
          %v5330 = vunpack.c.l.b16 %v4811
          %v5331 = vunpack.c.l.b16 %v4812
          %v5332 = vunpack.c.l.b16 %v4813
          %v5333 = vunpack.c.l.b16 %v4814
          %v5334 = vunpack.c.l.b16 %v4815
          %v5335 = vunpack.c.l.b16 %v4816
          %v5336 = vunpack.c.l.b16 %v4817
          %v5337 = vunpack.c.l.b16 %v4818
          %v5338 = vunpack.c.l.b16 %v4819
          %v5339 = vunpack.c.l.b16 %v4820
          %v5340 = vunpack.c.l.b16 %v4821
          %v5341 = vunpack.c.l.b16 %v4822
          %v5342 = vunpack.c.l.b16 %v4823
          %v5343 = vunpack.c.l.b16 %v4824
          %v5344 = vunpack.c.l.b16 %v4825
          %v5345 = vunpack.c.l.b16 %v4826
          %v5346 = vunpack.c.l.b16 %v4827
          %v5347 = vunpack.c.l.b16 %v4828
          %v5348 = vunpack.c.l.b16 %v4829
          %v5349 = vunpack.c.l.b16 %v4830
          %v5350 = vunpack.c.l.b16 %v4831
          %v5351 = vunpack.c.l.b16 %v4832
          %v5352 = vunpack.c.l.b16 %v4833
          %v5353 = vunpack.c.l.b16 %v4834
          %v5354 = vunpack.c.l.b16 %v4835
          %v5355 = vunpack.c.l.b16 %v4836
          %v5356 = vunpack.c.l.b16 %v4837
          %v5357 = vunpack.c.l.b16 %v4838
          %v5358 = vunpack.c.l.b16 %v4839
          %v5359 = vunpack.c.l.b16 %v4840
          %v5360 = vunpack.c.l.b16 %v4841
          %v5361 = vunpack.c.l.b16 %v4842
          %v5362 = vunpack.c.l.b16 %v4843
          %v5363 = vunpack.c.l.b16 %v4844
          %v5364 = vunpack.c.l.b16 %v4845
          %v5365 = vunpack.c.l.b16 %v4846
          %v5366 = vunpack.c.l.b16 %v4847
          %v5367 = vunpack.c.l.b16 %v4848
          %v5368 = vunpack.c.l.b16 %v4849
          %v5369 = vunpack.c.l.b16 %v4850
          %v5370 = vunpack.c.l.b16 %v4851
          %v5371 = vunpack.c.l.b16 %v4852
          %v5372 = vunpack.c.l.b16 %v4853
          %v5373 = vunpack.c.l.b16 %v4854
          %v5374 = vunpack.c.l.b16 %v4855
          %v5375 = vunpack.c.l.b16 %v4856
          %v5376 = vunpack.c.l.b16 %v4857
          %v5377 = vunpack.c.l.b16 %v4858
          %v5378 = vunpack.c.l.b16 %v4859
          %v5379 = vunpack.c.l.b16 %v4860
          %v5380 = vunpack.c.l.b16 %v4861
          %v5381 = vunpack.c.l.b16 %v4862
          %v5382 = vunpack.c.l.b16 %v4863
          %v5383 = vunpack.c.l.b16 %v4864
          %v5384 = vunpack.c.l.b16 %v4865
          %v5385 = vunpack.c.l.b16 %v4866
          %v5386 = vunpack.c.l.b16 %v4867
          %v5387 = vunpack.c.l.b16 %v4868
          %v5388 = vunpack.c.l.b16 %v4869
          %v5389 = vunpack.c.l.b16 %v4870
          %v5390 = vunpack.c.l.b16 %v4871
          %v5391 = vunpack.c.l.b16 %v4872
          %v5392 = vunpack.c.l.b16 %v4873
          %v5393 = vunpack.c.l.b16 %v4874
          %v5394 = vunpack.c.l.b16 %v4875
          %v5395 = vunpack.c.l.b16 %v4876
          %v5396 = vunpack.c.l.b16 %v4877
          %v5397 = vunpack.c.l.b16 %v4878
          %v5398 = vunpack.c.l.b16 %v4879
          %v5399 = vunpack.c.l.b16 %v4880
          %v5400 = vunpack.c.l.b16 %v4881
          %v5401 = vunpack.c.l.b16 %v4882
          %v5402 = vunpack.c.l.b16 %v4883
          %v5403 = vunpack.c.l.b16 %v4884
          %v5404 = vunpack.c.l.b16 %v4885
          %v5405 = vunpack.c.l.b16 %v4886
          %v5406 = vunpack.c.l.b16 %v4887
          %v5407 = vunpack.c.l.b16 %v4888
          %v5408 = vunpack.c.l.b16 %v4889
          %v5409 = vunpack.c.l.b16 %v4890
          %v5410 = vunpack.c.l.b16 %v4891
          %v5411 = vunpack.c.l.b16 %v4892
          %v5412 = vunpack.c.l.b16 %v4893
          %v5413 = vunpack.c.l.b16 %v4894
          %v5414 = vunpack.c.l.b16 %v4895
          %v5415 = vunpack.c.l.b16 %v4896
          %v5416 = vunpack.c.l.b16 %v4897
          %v5417 = vunpack.c.l.b16 %v4898
          %v5418 = vunpack.c.l.b16 %v4899
          %v5419 = vunpack.c.l.b16 %v4900
          %v5420 = vunpack.c.l.b16 %v4901
          %v5421 = vunpack.c.l.b16 %v4902
          %v5422 = vunpack.c.l.b16 %v4903
          %v5423 = vunpack.c.l.b16 %v4904
          %v5424 = vunpack.c.l.b16 %v4905
          %v5425 = vunpack.c.l.b16 %v4906
          %v5426 = vunpack.c.l.b16 %v4907
          %v5427 = vunpack.c.l.b16 %v4908
          %v5428 = vunpack.c.l.b16 %v4909
          %v5429 = vunpack.c.l.b16 %v4910
          %v5430 = vunpack.c.l.b16 %v4911
          %v5431 = vunpack.c.l.b16 %v4912
          %v5432 = vunpack.c.l.b16 %v4913
          %v5433 = vunpack.c.l.b16 %v4914
          %v5434 = vunpack.c.l.b16 %v4915
          %v5435 = vunpack.c.l.b16 %v4916
          %v5436 = vunpack.c.l.b16 %v4917
          %v5437 = vunpack.c.l.b16 %v4918
          %v5438 = vunpack.c.l.b16 %v4919
          %v5439 = vunpack.c.l.b16 %v4920
          %v5440 = vunpack.c.l.b16 %v4921
          %v5441 = vunpack.c.l.b16 %v4922
          %v5442 = vunpack.c.l.b16 %v4923
          %v5443 = vunpack.c.l.b16 %v4924
          %v5444 = vunpack.c.l.b16 %v4925
          %v5445 = vunpack.c.l.b16 %v4926
          %v5446 = vunpack.c.l.b16 %v4927
          %v5447 = vunpack.c.l.b16 %v4928
          %v5448 = vunpack.c.l.b16 %v4929
          %v5449 = vunpack.c.l.b16 %v4930
          %v5450 = vunpack.c.l.b16 %v4931
          %v5451 = vunpack.c.l.b16 %v4932
          %v5452 = vunpack.c.l.b16 %v4933
          %v5453 = vunpack.c.l.b16 %v4934
          %v5454 = vunpack.c.l.b16 %v4935
          %v5455 = vunpack.c.l.b16 %v4936
          %v5456 = vunpack.c.l.b16 %v4937
          %v5457 = vunpack.c.l.b16 %v4938
          %v5458 = vunpack.c.l.b16 %v4939
          %v5459 = vunpack.c.l.b16 %v4940
          %v5460 = vunpack.c.l.b16 %v4941
          %v5461 = vunpack.c.l.b16 %v4942
          %v5462 = vunpack.c.l.b16 %v4943
          %v5463 = vunpack.c.l.b16 %v4944
          %v5464 = vunpack.c.l.b16 %v4945
          %v5465 = vunpack.c.l.b16 %v4946
          %v5466 = vunpack.c.l.b16 %v4947
          %v5467 = vunpack.c.l.b16 %v4948
          %v5468 = vunpack.c.l.b16 %v4949
          %v5469 = vunpack.c.l.b16 %v4950
          %v5470 = vunpack.c.l.b16 %v4951
          %v5471 = vunpack.c.l.b16 %v4952
          %v5472 = vunpack.c.l.b16 %v4953
          %v5473 = vunpack.c.l.b16 %v4954
          %v5474 = vunpack.c.l.b16 %v4955
          %v5475 = vunpack.c.l.b16 %v4956
          %v5476 = vunpack.c.l.b16 %v4957
          %v5477 = vunpack.c.l.b16 %v4958
          %v5478 = vunpack.c.l.b16 %v4959
          %v5479 = vunpack.c.l.b16 %v4960
          %v5480 = vunpack.c.l.b16 %v4961
          %v5481 = vunpack.c.l.b16 %v4962
          %v5482 = vunpack.c.l.b16 %v4963
          %v5483 = vunpack.c.l.b16 %v4964
          %v5484 = vunpack.c.l.b16 %v4965
          %v5485 = vunpack.c.l.b16 %v4966
          %v5486 = vunpack.c.l.b16 %v4967
          %v5487 = vunpack.c.l.b16 %v4968
          %v5488 = vunpack.c.l.b16 %v4969
          %v5489 = vunpack.c.l.b16 %v4970
          %v5490 = vunpack.c.l.b16 %v4971
          %v5491 = vunpack.c.l.b16 %v4972
          %v5492 = vunpack.c.l.b16 %v4973
          %v5493 = vunpack.c.l.b16 %v4974
          %v5494 = vunpack.c.l.b16 %v4975
          %v5495 = vunpack.c.l.b16 %v4976
          %v5496 = vunpack.c.l.b16 %v4977
          %v5497 = vunpack.c.l.b16 %v4978
          %v5498 = vunpack.c.l.b16 %v4979
          %v5499 = vunpack.c.l.b16 %v4980
          %v5500 = vunpack.c.l.b16 %v4981
          %v5501 = vpack.c.b16 %v5246, %v5245
          %v5502 = vpack.c.b16 %v5248, %v5247
          %v5503 = vpack.c.b16 %v5250, %v5249
          %v5504 = vpack.c.b16 %v5252, %v5251
          %v5505 = vpack.c.b16 %v5254, %v5253
          %v5506 = vpack.c.b16 %v5256, %v5255
          %v5507 = vpack.c.b16 %v5258, %v5257
          %v5508 = vpack.c.b16 %v5260, %v5259
          %v5509 = vpack.c.b16 %v5262, %v5261
          %v5510 = vpack.c.b16 %v5264, %v5263
          %v5511 = vpack.c.b16 %v5266, %v5265
          %v5512 = vpack.c.b16 %v5268, %v5267
          %v5513 = vpack.c.b16 %v5270, %v5269
          %v5514 = vpack.c.b16 %v5272, %v5271
          %v5515 = vpack.c.b16 %v5274, %v5273
          %v5516 = vpack.c.b16 %v5276, %v5275
          %v5517 = vpack.c.b16 %v5278, %v5277
          %v5518 = vpack.c.b16 %v5280, %v5279
          %v5519 = vpack.c.b16 %v5282, %v5281
          %v5520 = vpack.c.b16 %v5284, %v5283
          %v5521 = vpack.c.b16 %v5286, %v5285
          %v5522 = vpack.c.b16 %v5288, %v5287
          %v5523 = vpack.c.b16 %v5290, %v5289
          %v5524 = vpack.c.b16 %v5292, %v5291
          %v5525 = vpack.c.b16 %v5294, %v5293
          %v5526 = vpack.c.b16 %v5296, %v5295
          %v5527 = vpack.c.b16 %v5298, %v5297
          %v5528 = vpack.c.b16 %v5300, %v5299
          %v5529 = vpack.c.b16 %v5302, %v5301
          %v5530 = vpack.c.b16 %v5304, %v5303
          %v5531 = vpack.c.b16 %v5306, %v5305
          %v5532 = vpack.c.b16 %v5308, %v5307
          %v5533 = vpack.c.b16 %v5310, %v5309
          %v5534 = vpack.c.b16 %v5312, %v5311
          %v5535 = vpack.c.b16 %v5314, %v5313
          %v5536 = vpack.c.b16 %v5316, %v5315
          %v5537 = vpack.c.b16 %v5318, %v5317
          %v5538 = vpack.c.b16 %v5320, %v5319
          %v5539 = vpack.c.b16 %v5322, %v5321
          %v5540 = vpack.c.b16 %v5324, %v5323
          %v5541 = vpack.c.b16 %v5326, %v5325
          %v5542 = vpack.c.b16 %v5328, %v5327
          %v5543 = vpack.c.b16 %v5330, %v5329
          %v5544 = vpack.c.b16 %v5332, %v5331
          %v5545 = vpack.c.b16 %v5334, %v5333
          %v5546 = vpack.c.b16 %v5336, %v5335
          %v5547 = vpack.c.b16 %v5338, %v5337
          %v5548 = vpack.c.b16 %v5340, %v5339
          %v5549 = vpack.c.b16 %v5342, %v5341
          %v5550 = vpack.c.b16 %v5344, %v5343
          %v5551 = vpack.c.b16 %v5346, %v5345
          %v5552 = vpack.c.b16 %v5348, %v5347
          %v5553 = vpack.c.b16 %v5350, %v5349
          %v5554 = vpack.c.b16 %v5352, %v5351
          %v5555 = vpack.c.b16 %v5354, %v5353
          %v5556 = vpack.c.b16 %v5356, %v5355
          %v5557 = vpack.c.b16 %v5358, %v5357
          %v5558 = vpack.c.b16 %v5360, %v5359
          %v5559 = vpack.c.b16 %v5362, %v5361
          %v5560 = vpack.c.b16 %v5364, %v5363
          %v5561 = vpack.c.b16 %v5366, %v5365
          %v5562 = vpack.c.b16 %v5368, %v5367
          %v5563 = vpack.c.b16 %v5370, %v5369
          %v5564 = vpack.c.b16 %v5372, %v5371
          %v5565 = vpack.c.b16 %v5374, %v5373
          %v5566 = vpack.c.b16 %v5376, %v5375
          %v5567 = vpack.c.b16 %v5378, %v5377
          %v5568 = vpack.c.b16 %v5380, %v5379
          %v5569 = vpack.c.b16 %v5382, %v5381
          %v5570 = vpack.c.b16 %v5384, %v5383
          %v5571 = vpack.c.b16 %v5386, %v5385
          %v5572 = vpack.c.b16 %v5388, %v5387
          %v5573 = vpack.c.b16 %v5390, %v5389
          %v5574 = vpack.c.b16 %v5392, %v5391
          %v5575 = vpack.c.b16 %v5394, %v5393
          %v5576 = vpack.c.b16 %v5396, %v5395
          %v5577 = vpack.c.b16 %v5398, %v5397
          %v5578 = vpack.c.b16 %v5400, %v5399
          %v5579 = vpack.c.b16 %v5402, %v5401
          %v5580 = vpack.c.b16 %v5404, %v5403
          %v5581 = vpack.c.b16 %v5406, %v5405
          %v5582 = vpack.c.b16 %v5408, %v5407
          %v5583 = vpack.c.b16 %v5410, %v5409
          %v5584 = vpack.c.b16 %v5412, %v5411
          %v5585 = vpack.c.b16 %v5414, %v5413
          %v5586 = vpack.c.b16 %v5416, %v5415
          %v5587 = vpack.c.b16 %v5418, %v5417
          %v5588 = vpack.c.b16 %v5420, %v5419
          %v5589 = vpack.c.b16 %v5422, %v5421
          %v5590 = vpack.c.b16 %v5424, %v5423
          %v5591 = vpack.c.b16 %v5426, %v5425
          %v5592 = vpack.c.b16 %v5428, %v5427
          %v5593 = vpack.c.b16 %v5430, %v5429
          %v5594 = vpack.c.b16 %v5432, %v5431
          %v5595 = vpack.c.b16 %v5434, %v5433
          %v5596 = vpack.c.b16 %v5436, %v5435
          %v5597 = vpack.c.b16 %v5438, %v5437
          %v5598 = vpack.c.b16 %v5440, %v5439
          %v5599 = vpack.c.b16 %v5442, %v5441
          %v5600 = vpack.c.b16 %v5444, %v5443
          %v5601 = vpack.c.b16 %v5446, %v5445
          %v5602 = vpack.c.b16 %v5448, %v5447
          %v5603 = vpack.c.b16 %v5450, %v5449
          %v5604 = vpack.c.b16 %v5452, %v5451
          %v5605 = vpack.c.b16 %v5454, %v5453
          %v5606 = vpack.c.b16 %v5456, %v5455
          %v5607 = vpack.c.b16 %v5458, %v5457
          %v5608 = vpack.c.b16 %v5460, %v5459
          %v5609 = vpack.c.b16 %v5462, %v5461
          %v5610 = vpack.c.b16 %v5464, %v5463
          %v5611 = vpack.c.b16 %v5466, %v5465
          %v5612 = vpack.c.b16 %v5468, %v5467
          %v5613 = vpack.c.b16 %v5470, %v5469
          %v5614 = vpack.c.b16 %v5472, %v5471
          %v5615 = vpack.c.b16 %v5474, %v5473
          %v5616 = vpack.c.b16 %v5476, %v5475
          %v5617 = vpack.c.b16 %v5478, %v5477
          %v5618 = vpack.c.b16 %v5480, %v5479
          %v5619 = vpack.c.b16 %v5482, %v5481
          %v5620 = vpack.c.b16 %v5484, %v5483
          %v5621 = vpack.c.b16 %v5486, %v5485
          %v5622 = vpack.c.b16 %v5488, %v5487
          %v5623 = vpack.c.b16 %v5490, %v5489
          %v5624 = vpack.c.b16 %v5492, %v5491
          %v5625 = vpack.c.b16 %v5494, %v5493
          %v5626 = vpack.c.b16 %v5496, %v5495
          %v5627 = vpack.c.b16 %v5498, %v5497
          %v5628 = vpack.c.b16 %v5500, %v5499
          %5757 = vmatprep.subr.bf16.mxu0 0
          %5758 = vmatpush1.bf16.msra.mxu0 %v5501
          %5759 = vmatprep.subr.bf16.mxu0 0
          %5760 = vmatpush1.bf16.msra.mxu0 %v5502
          %5761 = vmatprep.subr.bf16.mxu0 0
          %5762 = vmatpush1.bf16.msra.mxu0 %v5503
          %5763 = vmatprep.subr.bf16.mxu0 0
          %5764 = vmatpush1.bf16.msra.mxu0 %v5504
          %5765 = vmatprep.subr.bf16.mxu0 0
          %5766 = vmatpush1.bf16.msra.mxu0 %v5505
          %5767 = vmatprep.subr.bf16.mxu0 0
          %5768 = vmatpush1.bf16.msra.mxu0 %v5506
          %5769 = vmatprep.subr.bf16.mxu0 0
          %5770 = vmatpush1.bf16.msra.mxu0 %v5507
          %5771 = vmatprep.subr.bf16.mxu0 0
          %5772 = vmatpush1.bf16.msra.mxu0 %v5508
          %5773 = vmatprep.subr.bf16.mxu0 0
          %5774 = vmatpush1.bf16.msra.mxu0 %v5509
          %5775 = vmatprep.subr.bf16.mxu0 0
          %5776 = vmatpush1.bf16.msra.mxu0 %v5510
          %5777 = vmatprep.subr.bf16.mxu0 0
          %5778 = vmatpush1.bf16.msra.mxu0 %v5511
          %5779 = vmatprep.subr.bf16.mxu0 0
          %5780 = vmatpush1.bf16.msra.mxu0 %v5512
          %5781 = vmatprep.subr.bf16.mxu0 0
          %5782 = vmatpush1.bf16.msra.mxu0 %v5513
          %5783 = vmatprep.subr.bf16.mxu0 0
          %5784 = vmatpush1.bf16.msra.mxu0 %v5514
          %5785 = vmatprep.subr.bf16.mxu0 0
          %5786 = vmatpush1.bf16.msra.mxu0 %v5515
          %5787 = vmatprep.subr.bf16.mxu0 0
          %5788 = vmatpush1.bf16.msra.mxu0 %v5516
          %5789 = vmatprep.mubr.bf16.mxu0 %v4711
          %5790 = vmatmul.mubr.bf16.gmra.mrb[0].mxu0 %v4710
          %v5791 = vpop.f32.mrb[0].mxu0
          %v5792 = vadd.f32 %v4987, %v5791
          %v5793 = vpop.f32.mrb[0].mxu0
          %v5794 = vpop.f32.mrb[0].mxu0
          %v5795 = vadd.f32 %v4987, %v5794
          %v5796 = vpop.f32.mrb[0].mxu0
          %5797 = vdwg.mxu0
          %5798 = vmatprep.subr.bf16.mxu0 0
          %5799 = vmatpush1.bf16.msra.mxu0 %v5517
          %5800 = vmatprep.subr.bf16.mxu0 0
          %5801 = vmatpush1.bf16.msra.mxu0 %v5518
          %5802 = vmatprep.subr.bf16.mxu0 0
          %5803 = vmatpush1.bf16.msra.mxu0 %v5519
          %5804 = vmatprep.subr.bf16.mxu0 0
          %5805 = vmatpush1.bf16.msra.mxu0 %v5520
          %5806 = vmatprep.subr.bf16.mxu0 0
          %5807 = vmatpush1.bf16.msra.mxu0 %v5521
          %5808 = vmatprep.subr.bf16.mxu0 0
          %5809 = vmatpush1.bf16.msra.mxu0 %v5522
          %5810 = vmatprep.subr.bf16.mxu0 0
          %5811 = vmatpush1.bf16.msra.mxu0 %v5523
          %5812 = vmatprep.subr.bf16.mxu0 0
          %5813 = vmatpush1.bf16.msra.mxu0 %v5524
          %5814 = vmatprep.subr.bf16.mxu0 0
          %5815 = vmatpush1.bf16.msra.mxu0 %v5525
          %5816 = vmatprep.subr.bf16.mxu0 0
          %5817 = vmatpush1.bf16.msra.mxu0 %v5526
          %5818 = vmatprep.subr.bf16.mxu0 0
          %5819 = vmatpush1.bf16.msra.mxu0 %v5527
          %5820 = vmatprep.subr.bf16.mxu0 0
          %5821 = vmatpush1.bf16.msra.mxu0 %v5528
          %5822 = vmatprep.subr.bf16.mxu0 0
          %5823 = vmatpush1.bf16.msra.mxu0 %v5529
          %5824 = vmatprep.subr.bf16.mxu0 0
          %5825 = vmatpush1.bf16.msra.mxu0 %v5530
          %5826 = vmatprep.subr.bf16.mxu0 0
          %5827 = vmatpush1.bf16.msra.mxu0 %v5531
          %5828 = vmatprep.subr.bf16.mxu0 0
          %5829 = vmatpush1.bf16.msra.mxu0 %v5532
          %5830 = vmatprep.mubr.bf16.mxu0 %v4713
          %5831 = vmatmul.mubr.bf16.gmra.mrb[0].mxu0 %v4712
          %v5832 = vpop.f32.mrb[0].mxu0
          %v5833 = vadd.f32 %v5792, %v5832
          %v5834 = vpop.f32.mrb[0].mxu0
          %v5835 = vpop.f32.mrb[0].mxu0
          %v5836 = vadd.f32 %v5795, %v5835
          %v5837 = vpop.f32.mrb[0].mxu0
          %5838 = vdwg.mxu0
          %5839 = vmatprep.subr.bf16.mxu0 0
          %5840 = vmatpush1.bf16.msra.mxu0 %v5533
          %5841 = vmatprep.subr.bf16.mxu0 0
          %5842 = vmatpush1.bf16.msra.mxu0 %v5534
          %5843 = vmatprep.subr.bf16.mxu0 0
          %5844 = vmatpush1.bf16.msra.mxu0 %v5535
          %5845 = vmatprep.subr.bf16.mxu0 0
          %5846 = vmatpush1.bf16.msra.mxu0 %v5536
          %5847 = vmatprep.subr.bf16.mxu0 0
          %5848 = vmatpush1.bf16.msra.mxu0 %v5537
          %5849 = vmatprep.subr.bf16.mxu0 0
          %5850 = vmatpush1.bf16.msra.mxu0 %v5538
          %5851 = vmatprep.subr.bf16.mxu0 0
          %5852 = vmatpush1.bf16.msra.mxu0 %v5539
          %5853 = vmatprep.subr.bf16.mxu0 0
          %5854 = vmatpush1.bf16.msra.mxu0 %v5540
          %5855 = vmatprep.subr.bf16.mxu0 0
          %5856 = vmatpush1.bf16.msra.mxu0 %v5541
          %5857 = vmatprep.subr.bf16.mxu0 0
          %5858 = vmatpush1.bf16.msra.mxu0 %v5542
          %5859 = vmatprep.subr.bf16.mxu0 0
          %5860 = vmatpush1.bf16.msra.mxu0 %v5543
          %5861 = vmatprep.subr.bf16.mxu0 0
          %5862 = vmatpush1.bf16.msra.mxu0 %v5544
          %5863 = vmatprep.subr.bf16.mxu0 0
          %5864 = vmatpush1.bf16.msra.mxu0 %v5545
          %5865 = vmatprep.subr.bf16.mxu0 0
          %5866 = vmatpush1.bf16.msra.mxu0 %v5546
          %5867 = vmatprep.subr.bf16.mxu0 0
          %5868 = vmatpush1.bf16.msra.mxu0 %v5547
          %5869 = vmatprep.subr.bf16.mxu0 0
          %5870 = vmatpush1.bf16.msra.mxu0 %v5548
          %5871 = vmatprep.mubr.bf16.mxu0 %v4715
          %5872 = vmatmul.mubr.bf16.gmra.mrb[0].mxu0 %v4714
          %v5873 = vpop.f32.mrb[0].mxu0
          %v5874 = vadd.f32 %v5833, %v5873
          %v5875 = vpop.f32.mrb[0].mxu0
          %v5876 = vpop.f32.mrb[0].mxu0
          %v5877 = vadd.f32 %v5836, %v5876
          %v5878 = vpop.f32.mrb[0].mxu0
          %5879 = vdwg.mxu0
          %5880 = vmatprep.subr.bf16.mxu0 0
          %5881 = vmatpush1.bf16.msra.mxu0 %v5549
          %5882 = vmatprep.subr.bf16.mxu0 0
          %5883 = vmatpush1.bf16.msra.mxu0 %v5550
          %5884 = vmatprep.subr.bf16.mxu0 0
          %5885 = vmatpush1.bf16.msra.mxu0 %v5551
          %5886 = vmatprep.subr.bf16.mxu0 0
          %5887 = vmatpush1.bf16.msra.mxu0 %v5552
          %5888 = vmatprep.subr.bf16.mxu0 0
          %5889 = vmatpush1.bf16.msra.mxu0 %v5553
          %5890 = vmatprep.subr.bf16.mxu0 0
          %5891 = vmatpush1.bf16.msra.mxu0 %v5554
          %5892 = vmatprep.subr.bf16.mxu0 0
          %5893 = vmatpush1.bf16.msra.mxu0 %v5555
          %5894 = vmatprep.subr.bf16.mxu0 0
          %5895 = vmatpush1.bf16.msra.mxu0 %v5556
          %5896 = vmatprep.subr.bf16.mxu0 0
          %5897 = vmatpush1.bf16.msra.mxu0 %v5557
          %5898 = vmatprep.subr.bf16.mxu0 0
          %5899 = vmatpush1.bf16.msra.mxu0 %v5558
          %5900 = vmatprep.subr.bf16.mxu0 0
          %5901 = vmatpush1.bf16.msra.mxu0 %v5559
          %5902 = vmatprep.subr.bf16.mxu0 0
          %5903 = vmatpush1.bf16.msra.mxu0 %v5560
          %5904 = vmatprep.subr.bf16.mxu0 0
          %5905 = vmatpush1.bf16.msra.mxu0 %v5561
          %5906 = vmatprep.subr.bf16.mxu0 0
          %5907 = vmatpush1.bf16.msra.mxu0 %v5562
          %5908 = vmatprep.subr.bf16.mxu0 0
          %5909 = vmatpush1.bf16.msra.mxu0 %v5563
          %5910 = vmatprep.subr.bf16.mxu0 0
          %5911 = vmatpush1.bf16.msra.mxu0 %v5564
          %5912 = vmatprep.mubr.bf16.mxu0 %v4717
          %5913 = vmatmul.mubr.bf16.gmra.mrb[0].mxu0 %v4716
          %v5914 = vpop.f32.mrb[0].mxu0
          %v5915 = vadd.f32 %v5874, %v5914
          %v5916 = vpop.f32.mrb[0].mxu0
          %v5917 = vpop.f32.mrb[0].mxu0
          %v5918 = vadd.f32 %v5877, %v5917
          %v5919 = vpop.f32.mrb[0].mxu0
          %5920 = vdwg.mxu0
          %5921 = vmatprep.subr.bf16.mxu0 0
          %5922 = vmatpush1.bf16.msra.mxu0 %v5565
          %5923 = vmatprep.subr.bf16.mxu0 0
          %5924 = vmatpush1.bf16.msra.mxu0 %v5566
          %5925 = vmatprep.subr.bf16.mxu0 0
          %5926 = vmatpush1.bf16.msra.mxu0 %v5567
          %5927 = vmatprep.subr.bf16.mxu0 0
          %5928 = vmatpush1.bf16.msra.mxu0 %v5568
          %5929 = vmatprep.subr.bf16.mxu0 0
          %5930 = vmatpush1.bf16.msra.mxu0 %v5569
          %5931 = vmatprep.subr.bf16.mxu0 0
          %5932 = vmatpush1.bf16.msra.mxu0 %v5570
          %5933 = vmatprep.subr.bf16.mxu0 0
          %5934 = vmatpush1.bf16.msra.mxu0 %v5571
          %5935 = vmatprep.subr.bf16.mxu0 0
          %5936 = vmatpush1.bf16.msra.mxu0 %v5572
          %5937 = vmatprep.subr.bf16.mxu0 0
          %5938 = vmatpush1.bf16.msra.mxu0 %v5573
          %5939 = vmatprep.subr.bf16.mxu0 0
          %5940 = vmatpush1.bf16.msra.mxu0 %v5574
          %5941 = vmatprep.subr.bf16.mxu0 0
          %5942 = vmatpush1.bf16.msra.mxu0 %v5575
          %5943 = vmatprep.subr.bf16.mxu0 0
          %5944 = vmatpush1.bf16.msra.mxu0 %v5576
          %5945 = vmatprep.subr.bf16.mxu0 0
          %5946 = vmatpush1.bf16.msra.mxu0 %v5577
          %5947 = vmatprep.subr.bf16.mxu0 0
          %5948 = vmatpush1.bf16.msra.mxu0 %v5578
          %5949 = vmatprep.subr.bf16.mxu0 0
          %5950 = vmatpush1.bf16.msra.mxu0 %v5579
          %5951 = vmatprep.subr.bf16.mxu0 0
          %5952 = vmatpush1.bf16.msra.mxu0 %v5580
          %5953 = vmatprep.mubr.bf16.mxu0 %v4719
          %5954 = vmatmul.mubr.bf16.gmra.mrb[0].mxu0 %v4718
          %v5955 = vpop.f32.mrb[0].mxu0
          %v5956 = vadd.f32 %v5915, %v5955
          %v5957 = vpop.f32.mrb[0].mxu0
          %v5958 = vpop.f32.mrb[0].mxu0
          %v5959 = vadd.f32 %v5918, %v5958
          %v5960 = vpop.f32.mrb[0].mxu0
          %5961 = vdwg.mxu0
          %5962 = vmatprep.subr.bf16.mxu0 0
          %5963 = vmatpush1.bf16.msra.mxu0 %v5581
          %5964 = vmatprep.subr.bf16.mxu0 0
          %5965 = vmatpush1.bf16.msra.mxu0 %v5582
          %5966 = vmatprep.subr.bf16.mxu0 0
          %5967 = vmatpush1.bf16.msra.mxu0 %v5583
          %5968 = vmatprep.subr.bf16.mxu0 0
          %5969 = vmatpush1.bf16.msra.mxu0 %v5584
          %5970 = vmatprep.subr.bf16.mxu0 0
          %5971 = vmatpush1.bf16.msra.mxu0 %v5585
          %5972 = vmatprep.subr.bf16.mxu0 0
          %5973 = vmatpush1.bf16.msra.mxu0 %v5586
          %5974 = vmatprep.subr.bf16.mxu0 0
          %5975 = vmatpush1.bf16.msra.mxu0 %v5587
          %5976 = vmatprep.subr.bf16.mxu0 0
          %5977 = vmatpush1.bf16.msra.mxu0 %v5588
          %5978 = vmatprep.subr.bf16.mxu0 0
          %5979 = vmatpush1.bf16.msra.mxu0 %v5589
          %5980 = vmatprep.subr.bf16.mxu0 0
          %5981 = vmatpush1.bf16.msra.mxu0 %v5590
          %5982 = vmatprep.subr.bf16.mxu0 0
          %5983 = vmatpush1.bf16.msra.mxu0 %v5591
          %5984 = vmatprep.subr.bf16.mxu0 0
          %5985 = vmatpush1.bf16.msra.mxu0 %v5592
          %5986 = vmatprep.subr.bf16.mxu0 0
          %5987 = vmatpush1.bf16.msra.mxu0 %v5593
          %5988 = vmatprep.subr.bf16.mxu0 0
          %5989 = vmatpush1.bf16.msra.mxu0 %v5594
          %5990 = vmatprep.subr.bf16.mxu0 0
          %5991 = vmatpush1.bf16.msra.mxu0 %v5595
          %5992 = vmatprep.subr.bf16.mxu0 0
          %5993 = vmatpush1.bf16.msra.mxu0 %v5596
          %5994 = vmatprep.mubr.bf16.mxu0 %v4721
          %5995 = vmatmul.mubr.bf16.gmra.mrb[0].mxu0 %v4720
          %v5996 = vpop.f32.mrb[0].mxu0
          %v5997 = vadd.f32 %v5956, %v5996
          %v5998 = vpop.f32.mrb[0].mxu0
          %v5999 = vpop.f32.mrb[0].mxu0
          %v6000 = vadd.f32 %v5959, %v5999
          %v6001 = vpop.f32.mrb[0].mxu0
          %6002 = vdwg.mxu0
          %6003 = vmatprep.subr.bf16.mxu0 0
          %6004 = vmatpush1.bf16.msra.mxu0 %v5597
          %6005 = vmatprep.subr.bf16.mxu0 0
          %6006 = vmatpush1.bf16.msra.mxu0 %v5598
          %6007 = vmatprep.subr.bf16.mxu0 0
          %6008 = vmatpush1.bf16.msra.mxu0 %v5599
          %6009 = vmatprep.subr.bf16.mxu0 0
          %6010 = vmatpush1.bf16.msra.mxu0 %v5600
          %6011 = vmatprep.subr.bf16.mxu0 0
          %6012 = vmatpush1.bf16.msra.mxu0 %v5601
          %6013 = vmatprep.subr.bf16.mxu0 0
          %6014 = vmatpush1.bf16.msra.mxu0 %v5602
          %6015 = vmatprep.subr.bf16.mxu0 0
          %6016 = vmatpush1.bf16.msra.mxu0 %v5603
          %6017 = vmatprep.subr.bf16.mxu0 0
          %6018 = vmatpush1.bf16.msra.mxu0 %v5604
          %6019 = vmatprep.subr.bf16.mxu0 0
          %6020 = vmatpush1.bf16.msra.mxu0 %v5605
          %6021 = vmatprep.subr.bf16.mxu0 0
          %6022 = vmatpush1.bf16.msra.mxu0 %v5606
          %6023 = vmatprep.subr.bf16.mxu0 0
          %6024 = vmatpush1.bf16.msra.mxu0 %v5607
          %6025 = vmatprep.subr.bf16.mxu0 0
          %6026 = vmatpush1.bf16.msra.mxu0 %v5608
          %6027 = vmatprep.subr.bf16.mxu0 0
          %6028 = vmatpush1.bf16.msra.mxu0 %v5609
          %6029 = vmatprep.subr.bf16.mxu0 0
          %6030 = vmatpush1.bf16.msra.mxu0 %v5610
          %6031 = vmatprep.subr.bf16.mxu0 0
          %6032 = vmatpush1.bf16.msra.mxu0 %v5611
          %6033 = vmatprep.subr.bf16.mxu0 0
          %6034 = vmatpush1.bf16.msra.mxu0 %v5612
          %6035 = vmatprep.mubr.bf16.mxu0 %v4723
          %6036 = vmatmul.mubr.bf16.gmra.mrb[0].mxu0 %v4722
          %v6037 = vpop.f32.mrb[0].mxu0
          %v6038 = vadd.f32 %v5997, %v6037
          %v6039 = vpop.f32.mrb[0].mxu0
          %v6040 = vpop.f32.mrb[0].mxu0
          %v6041 = vadd.f32 %v6000, %v6040
          %v6042 = vpop.f32.mrb[0].mxu0
          %6043 = vdwg.mxu0
          %6044 = vmatprep.subr.bf16.mxu0 0
          %6045 = vmatpush1.bf16.msra.mxu0 %v5613
          %6046 = vmatprep.subr.bf16.mxu0 0
          %6047 = vmatpush1.bf16.msra.mxu0 %v5614
          %6048 = vmatprep.subr.bf16.mxu0 0
          %6049 = vmatpush1.bf16.msra.mxu0 %v5615
          %6050 = vmatprep.subr.bf16.mxu0 0
          %6051 = vmatpush1.bf16.msra.mxu0 %v5616
          %6052 = vmatprep.subr.bf16.mxu0 0
          %6053 = vmatpush1.bf16.msra.mxu0 %v5617
          %6054 = vmatprep.subr.bf16.mxu0 0
          %6055 = vmatpush1.bf16.msra.mxu0 %v5618
          %6056 = vmatprep.subr.bf16.mxu0 0
          %6057 = vmatpush1.bf16.msra.mxu0 %v5619
          %6058 = vmatprep.subr.bf16.mxu0 0
          %6059 = vmatpush1.bf16.msra.mxu0 %v5620
          %6060 = vmatprep.subr.bf16.mxu0 0
          %6061 = vmatpush1.bf16.msra.mxu0 %v5621
          %6062 = vmatprep.subr.bf16.mxu0 0
          %6063 = vmatpush1.bf16.msra.mxu0 %v5622
          %6064 = vmatprep.subr.bf16.mxu0 0
          %6065 = vmatpush1.bf16.msra.mxu0 %v5623
          %6066 = vmatprep.subr.bf16.mxu0 0
          %6067 = vmatpush1.bf16.msra.mxu0 %v5624
          %6068 = vmatprep.subr.bf16.mxu0 0
          %6069 = vmatpush1.bf16.msra.mxu0 %v5625
          %6070 = vmatprep.subr.bf16.mxu0 0
          %6071 = vmatpush1.bf16.msra.mxu0 %v5626
          %6072 = vmatprep.subr.bf16.mxu0 0
          %6073 = vmatpush1.bf16.msra.mxu0 %v5627
          %6074 = vmatprep.subr.bf16.mxu0 0
          %6075 = vmatpush1.bf16.msra.mxu0 %v5628
          %6076 = vmatprep.mubr.bf16.mxu0 %v4725
          %6077 = vmatmul.mubr.bf16.gmra.mrb[0].mxu0 %v4724
          %v6078 = vpop.f32.mrb[0].mxu0
          %v6079 = vadd.f32 %v6038, %v6078
          %v6080 = vpop.f32.mrb[0].mxu0
          %v6081 = vpop.f32.mrb[0].mxu0
          %v6082 = vadd.f32 %v6041, %v6081
          %v6083 = vpop.f32.mrb[0].mxu0
          %6084 = vdwg.mxu0
          %v6085 = vadd.f32 %v4052, %v6079
          %v6086 = vadd.f32 %v4053, %v6082
          %v6087 = vld [vmem:[%s826] sm:$0x1]
          %v6088 = vld [vmem:[%s829] sm:$0x1]
          %v6089 = vsel %vm940, %v6085, 0.0
          %6090 = vadd.xlane.f32.xlu0 %v6089
          %v6091 = vpop.xlane.xlu0 %6090
          %v6092 = vsel %vm940, %v6086, 0.0
          %6093 = vadd.xlane.f32.xlu0 %v6092
          %v6094 = vpop.xlane.xlu0 %6093
          %v6095 = vmul.f32 %v6091, %v4017
          %v6096 = vmul.f32 %v6094, %v4017
          %v6097 = vsub.f32 %v6085, %v6095
          %v6098 = vsub.f32 %v6086, %v6096
          %v6099 = vmul.f32 %v6097, %v6097
          %v6100 = vmul.f32 %v6098, %v6098
          %v6101 = vsel %vm940, %v6099, 0.0
          %6102 = vadd.xlane.f32.xlu0 %v6101
          %v6103 = vpop.xlane.xlu0 %6102
          %v6104 = vsel %vm940, %v6100, 0.0
          %6105 = vadd.xlane.f32.xlu0 %v6104
          %v6106 = vpop.xlane.xlu0 %6105
          %v6107 = vmul.f32 %v6103, %v4017
          %v6108 = vmul.f32 %v6106, %v4017
          %v6109 = vadd.f32 %v6107, 1e-05
          %v6110 = vadd.f32 %v6108, 1e-05
          %v6111 = vrsqrt.pop %v6109
          %v6112 = vrsqrt.pop %v6110
          %v6113 = vmul.f32 %v6097, %v6111
          %v6114 = vmul.f32 %v6098, %v6112
          %v6116 = vlaneseq
          %v6117 = vshrl.u32 %v6116, 7
          %v6118 = vsub.s32 0, %v6117
          %v6119 = vrot.slane %v6087, %v6118
          %v6121 = vmul.f32 %v6113, %v6119
          %v6122 = vmul.f32 %v6114, %v6119
          %v6124 = vlaneseq
          %v6125 = vshrl.u32 %v6124, 7
          %v6126 = vsub.s32 0, %v6125
          %v6127 = vrot.slane %v6088, %v6126
          %v6129 = vadd.f32 %v6121, %v6127
          %v6130 = vadd.f32 %v6122, %v6127
          %v6131 = vld [vmem:[%s18] sm:$0xf]
          %v6132 = vld [vmem:[%s18 + $0x4] sm:$0xf]
          %v6133 = vld [vmem:[%s18 + $0x8] sm:$0xf]
          %v6134 = vld [vmem:[%s18 + $0xc] sm:$0xf]
          %v6135 = vpack.c.bf16 %v6130, %v6129
          %v6136 = vld [vmem:[%s19] sm:$0x1]
          %v6138 = vlaneseq
          %v6139 = vshrl.u32 %v6138, 7
          %v6140 = vsub.s32 0, %v6139
          %v6141 = vrot.slane %v6136, %v6140
          %v6147 = vunpack.c.l.b16 %v6131
          %v6148 = vunpack.c.l.b16 %v6132
          %v6149 = vunpack.c.l.b16 %v6133
          %v6150 = vunpack.c.l.b16 %v6134
          %v6151 = vpack.c.b16 %v6148, %v6147
          %v6152 = vpack.c.b16 %v6150, %v6149
          %v6156 = vsel %vm940, %v6135, 0
          %6158 = vmatprep.subr.bf16.mxu0 0
          %6159 = vmatpush1.bf16.msra.mxu0 %v6151
          %6160 = vmatprep.subr.bf16.mxu0 0
          %6161 = vmatpush1.bf16.msra.mxu0 %v6152
          %6162 = vmatprep.subr.bf16.mxu0 0
          %6163 = vmatpush1.bf16.msra.mxu0 0
          %6164 = vmatprep.subr.bf16.mxu0 0
          %6165 = vmatpush1.bf16.msra.mxu0 0
          %6166 = vmatprep.subr.bf16.mxu0 0
          %6167 = vmatpush1.bf16.msra.mxu0 0
          %6168 = vmatprep.subr.bf16.mxu0 0
          %6169 = vmatpush1.bf16.msra.mxu0 0
          %6170 = vmatprep.subr.bf16.mxu0 0
          %6171 = vmatpush1.bf16.msra.mxu0 0
          %6172 = vmatprep.subr.bf16.mxu0 0
          %6173 = vmatpush1.bf16.msra.mxu0 0
          %6174 = vmatprep.subr.bf16.mxu0 0
          %6175 = vmatpush1.bf16.msra.mxu0 0
          %6176 = vmatprep.subr.bf16.mxu0 0
          %6177 = vmatpush1.bf16.msra.mxu0 0
          %6178 = vmatprep.subr.bf16.mxu0 0
          %6179 = vmatpush1.bf16.msra.mxu0 0
          %6180 = vmatprep.subr.bf16.mxu0 0
          %6181 = vmatpush1.bf16.msra.mxu0 0
          %6182 = vmatprep.subr.bf16.mxu0 0
          %6183 = vmatpush1.bf16.msra.mxu0 0
          %6184 = vmatprep.subr.bf16.mxu0 0
          %6185 = vmatpush1.bf16.msra.mxu0 0
          %6186 = vmatprep.subr.bf16.mxu0 0
          %6187 = vmatpush1.bf16.msra.mxu0 0
          %6188 = vmatprep.subr.bf16.mxu0 0
          %6189 = vmatpush1.bf16.msra.mxu0 0
          %6190 = vmatprep.mubr.bf16.mxu0 0
          %6191 = vmatmul.mubr.bf16.gmra.mrb[0].mxu0 %v6156
          %v6192 = vpop.f32.mrb[0].mxu0
          %v6193 = vadd.f32 %v6141, %v6192
          %v6194 = vpop.f32.mrb[0].mxu0
          %v6195 = vpop.f32.mrb[0].mxu0
          %v6196 = vadd.f32 %v6141, %v6195
          %v6197 = vpop.f32.mrb[0].mxu0
          %6198 = vdwg.mxu0
          %6199 = vst [vmem:[#allocation3] sm:$0xff] %v6193
          %6200 = vst [vmem:[#allocation3 + $0x8] sm:$0xff] %v6196
        $region112: #{tpu_custom_call.1} parent=99 // pred_fallthru
          _
        // Predicated region
        $region113: #{tpu_custom_call.1} parent=99 // pred_check
          %p6201 = pneg %p547
        $region114: #{tpu_custom_call.1} parent=99 // pred_check_branch
          %6203 = sbr.rel (%p6201) target = $region116
        $region115: #{tpu_custom_call.1} parent=99 // pred_region
          %s6204 = smul.u32 2, %s36
          %s6206 = ssub.s32 256, 256
          %6207 = vsyncadd [#allocation4], %s6206
          %s6208 = smul.addr %s6204, 128
          %s6209 = scalar_lea.hbm %s20, %s6208
          %s6210 = sshll.u32 [#allocation3], 4
          %s6211 = int_to_ptr.vmem [resolvable:$true] %s6210
          %6216 = dma.vmem_to_hbm [thread:$0]  %s6211, 256, %s6209, [#allocation4], 128, 128, 8
        $region116: #{tpu_custom_call.1} parent=99 // pred_fallthru
          _
        // Predicated region
        $region117: #{tpu_custom_call.1} parent=99 // pred_check
          %p6217 = pneg %p547
        $region118: #{tpu_custom_call.1} parent=99 // pred_check_branch
          %6219 = sbr.rel (%p6217) target = $region120
        $region119: #{tpu_custom_call.1} parent=99 // pred_region
          %6220 = dma.done [#allocation4], 256
        $region120: #{tpu_custom_call.1} parent=99 // pred_fallthru
          _
      $region100: #{tpu_custom_call.1} parent=5 // pred_fallthru
        _
      %p6221 = scmp.le.s32.totalorder 2, %s27
      // Predicated region
      $region121: #{tpu_custom_call.1} parent=5 // pred_check
        %p6222 = pneg %p6221
      $region122: #{tpu_custom_call.1} parent=5 // pred_check_branch
        %6224 = sbr.rel (%p6222) target = $region124
      $region123: #{tpu_custom_call.1} parent=5 // pred_region
        %s6225 = ssub.s32 %s27, 2
      $region124: #{tpu_custom_call.1} parent=5 // pred_fallthru
        _
    $region6: #{tpu_custom_call.1} parent=1 // loop_footer
      %s31 = sadd.s32 1, %s27
    $region7: #{tpu_custom_call.1} parent=1 // loop_footer_branch
      %26 = sbr.rel target = $region3
    $region8: #{tpu_custom_call.1} parent=1 // loop_exit
      _
    %6226 = vsyncpa [#allocation4], 1
    %s6227 = scalar_lea.sflag [#allocation4], 1
    %6228 = vsyncpa %s6227, 1

</llo_original>
